<compile_context>
chip_gen: v6e
topology: v6e:2x2x1
jax: 0.10.0
libtpu: 0.0.40
codegen_flags: <defaults>
</compile_context>

<pallas_src>
import functools

import jax
import jax.numpy as jnp
from jax import lax
from jax.experimental import pallas as pl
from jax.experimental.pallas import tpu as pltpu


# ----------------------------------------------------------------------------
# Fused direct-conv kernel:  out = relu?( conv(x, W*bn_scale) + bn_bias [+ sc] )
# ----------------------------------------------------------------------------
def _conv_kernel(x_ref, w_ref, b_ref, *rest, taps, out_rows, relu, has_shortcut):
    """One grid step = one image x one Cout tile.

    x_ref : (P, Lin, Cin)      phase-split, spatially flattened padded input (bf16)
    w_ref : (k*k, Cin, TN)     BN-scale-folded weights (bf16)
    b_ref : (1, TN)            folded BN bias (f32)
    sc_ref: (1, out_rows, TN)  optional shortcut, same flattened layout as out
    o_ref : (1, out_rows, TN)  output (bf16)
    """
    if has_shortcut:
        sc_ref, o_ref = rest
    else:
        (o_ref,) = rest
    tn = o_ref.shape[-1]

    acc = jnp.zeros((out_rows, tn), jnp.float32)
    # Static unroll over the k*k taps: each tap is a contiguous slice of the
    # flattened (per-phase) input and one bf16 matmul accumulated in f32.
    for phase, off, t in taps:
        tap = x_ref[phase, off:off + out_rows, :]            # (out_rows, Cin)
        acc = acc + jnp.dot(tap, w_ref[t],
                            preferred_element_type=jnp.float32)
    acc = acc + b_ref[...]                                   # folded BN bias
    if has_shortcut:
        acc = acc + sc_ref[0].astype(jnp.float32)            # residual add
    if relu:
        acc = jnp.maximum(acc, 0.0)
    o_ref[0] = acc.astype(o_ref.dtype)


def conv_bn_act(x, p, *, stride, pad, relu, shortcut=None):
    """x: (N, H, W, Cin) bf16 NHWC -> (N, Ho, Wo, Cout) bf16.

    Computes relu?( conv_{k,stride,pad}(x, W_folded) + bias [+ shortcut] ).
    """
    N, H, W, Cin = x.shape
    k, Cout, s = p["k"], p["cout"], stride
    Ho = (H + 2 * pad - k) // s + 1
    Wo = (W + 2 * pad - k) // s + 1

    # Phase (space-to-depth) geometry: Wq/Hq are the per-phase width/height.
    Wq = -(-(W + 2 * pad) // s)                 # ceil
    Hq = -(-(H + 2 * pad) // s) + 1             # +1 safety row -> all tap slices in-bounds
    Lin, L = Hq * Wq, Ho * Wq                   # flattened in/out rows (L has Wq-Wo garbage cols/row)

    # Zero-pad once; this is the only activation copy (vs k*k copies for im2col).
    xp = jnp.pad(x, ((0, 0),
                     (pad, Hq * s - H - pad),
                     (pad, Wq * s - W - pad),
                     (0, 0)))
    needed = sorted({(dy % s, dx % s) for dy in range(k) for dx in range(k)})
    P = len(needed)
    if s == 1:
        phases = xp.reshape(N, 1, Lin, Cin)
    else:
        xr = xp.reshape(N, Hq, s, Wq, s, Cin)
        phases = jnp.stack([xr[:, :, py, :, px, :].reshape(N, Lin, Cin)
                            for (py, px) in needed], axis=1)
    phases = phases.reshape(N * P, Lin, Cin)

    pidx = {pp: i for i, pp in enumerate(needed)}
    # tap = (phase index, flat row offset inside the phase, weight tap index)
    taps = tuple((pidx[(dy % s, dx % s)], (dy // s) * Wq + dx // s, dy * k + dx)
                 for dy in range(k) for dx in range(k))

    # Lane-dense 128-wide Cout tiles at real channel counts; full Cout otherwise.
    TN = 128 if (Cout > 128 and Cout % 128 == 0) else Cout

    args = [phases, p["w"], p["b"]]
    in_specs = [
        pl.BlockSpec((P, Lin, Cin), lambda n, j: (n, 0, 0)),
        pl.BlockSpec((k * k, Cin, TN), lambda n, j: (0, 0, j)),
        pl.BlockSpec((1, TN), lambda n, j: (0, j)),
    ]
    if shortcut is not None:
        scp = jnp.pad(shortcut, ((0, 0), (0, 0), (0, Wq - Wo), (0, 0)))
        args.append(scp.reshape(N, L, Cout))
        in_specs.append(pl.BlockSpec((1, L, TN), lambda n, j: (n, 0, j)))

    out = pl.pallas_call(
        functools.partial(_conv_kernel, taps=taps, out_rows=L, relu=relu,
                          has_shortcut=shortcut is not None),
        out_shape=jax.ShapeDtypeStruct((N, L, Cout), jnp.bfloat16),
        grid=(N, Cout // TN),
        in_specs=in_specs,
        out_specs=pl.BlockSpec((1, L, TN), lambda n, j: (n, 0, j)),
        compiler_params=pltpu.CompilerParams(
            dimension_semantics=("parallel", "parallel")),
    )(*args)

    # Drop the Wq-Wo garbage columns of the flattened layout.
    return out.reshape(N, Ho, Wq, Cout)[:, :, :Wo, :]


# ----------------------------------------------------------------------------
# Parameters (deterministic synthetic, BN folded in inference mode)
# ----------------------------------------------------------------------------
def _fold_bn(gamma, beta, mean, var, eps=1e-5):
    scale = gamma / jnp.sqrt(var + eps)
    return scale, beta - mean * scale


def init_conv_bn(key, cin, cout, k):
    kw, kg, kb, km, kv = jax.random.split(key, 5)
    w = jax.random.normal(kw, (cout, cin, k, k), jnp.float32)
    w = w * (1.0 / jnp.sqrt(jnp.float32(cin * k * k)))
    gamma = 1.0 + 0.1 * jax.random.normal(kg, (cout,), jnp.float32)
    beta = 0.1 * jax.random.normal(kb, (cout,), jnp.float32)
    mean = 0.1 * jax.random.normal(km, (cout,), jnp.float32)
    var = 1.0 + 0.1 * jnp.abs(jax.random.normal(kv, (cout,), jnp.float32))
    scale, bias = _fold_bn(gamma, beta, mean, var)

    w_fold = w * scale[:, None, None, None]                     # (Cout,Cin,k,k)
    # Kernel layout: (k*k, Cin, Cout) bf16, BN scale folded in.
    w_bf16 = jnp.transpose(w_fold, (2, 3, 1, 0)).reshape(k * k, cin, cout)
    w_bf16 = w_bf16.astype(jnp.bfloat16)
    # Same (bf16-rounded) weights in HWIO f32 for the pure-JAX reference check.
    w_hwio = jnp.transpose(w_fold.astype(jnp.bfloat16).astype(jnp.float32),
                           (2, 3, 1, 0))
    return dict(k=k, cout=cout,
                w=w_bf16, b=bias.reshape(1, cout).astype(jnp.float32),
                w_hwio_f32=w_hwio, b_f32=bias)


def init_resblock(key, cin, cout, stride):
    k1, k2, k3 = jax.random.split(key, 3)
    p = dict(stride=stride,
             conv1=init_conv_bn(k1, cin, cout, 3),
             conv2=init_conv_bn(k2, cout, cout, 3),
             downsample=None)
    if stride != 1 or cin != cout:
        p["downsample"] = init_conv_bn(k3, cin, cout, 1)
    return p


# ----------------------------------------------------------------------------
# Forward passes
# ----------------------------------------------------------------------------
def resblock_forward(x, p):
    """x: (N,H,W,Cin) bf16 NHWC -> (N,Ho,Wo,Cout) bf16; matches ResBlock.forward."""
    s = p["stride"]
    if p["downsample"] is not None:
        sc = conv_bn_act(x, p["downsample"], stride=s, pad=0, relu=False)
    else:
        sc = x
    h = conv_bn_act(x, p["conv1"], stride=s, pad=1, relu=True)
    # conv2 + bn2 + residual add + final ReLU all fused into one kernel epilogue.
    return conv_bn_act(h, p["conv2"], stride=1, pad=1, relu=True, shortcut=sc)


def _conv_ref(x, p, stride, pad):
    y = lax.conv_general_dilated(
        x, p["w_hwio_f32"], window_strides=(stride, stride),
        padding=[(pad, pad), (pad, pad)],
        dimension_numbers=("NHWC", "HWIO", "NHWC"),
        precision=lax.Precision.HIGHEST)
    return y + p["b_f32"]


def resblock_ref(x, p):
    """Pure-JAX reference (f32 NHWC), mirroring the bf16 activation storage."""
    s = p["stride"]
    sc = x if p["downsample"] is None else _conv_ref(x, p["downsample"], s, 0)
    h = jax.nn.relu(_conv_ref(x, p["conv1"], s, 1))
    h = h.astype(jnp.bfloat16).astype(jnp.float32)
    sc = sc.astype(jnp.bfloat16).astype(jnp.float32)
    return jax.nn.relu(_conv_ref(h, p["conv2"], 1, 1) + sc)


# ----------------------------------------------------------------------------
if __name__ == "__main__":
    key = jax.random.PRNGKey(0)
    kx, ka, kb = jax.random.split(key, 3)

    # NCHW f32 input, like the PyTorch module.
    x_nchw = jax.random.normal(kx, (2, 4, 16, 16), jnp.float32)

    # Two chained ResBlocks exercising both shortcut paths:
    #   block_a: ResBlock(4, 8, stride=2)  -> 1x1 stride-2 downsample path
    #   block_b: ResBlock(8, 8, stride=1)  -> identity shortcut path
    block_a = init_resblock(ka, 4, 8, 2)
    block_b = init_resblock(kb, 8, 8, 1)

    @jax.jit
    def forward(xn):
        xh = jnp.transpose(xn, (0, 2, 3, 1)).astype(jnp.bfloat16)  # NCHW->NHWC bf16
        y = resblock_forward(xh, block_a)
        y = resblock_forward(y, block_b)
        return jnp.transpose(y.astype(jnp.float32), (0, 3, 1, 2))  # back to NCHW f32

    out = jax.block_until_ready(forward(x_nchw))
    assert out.shape == (2, 8, 8, 8)
    assert bool(jnp.all(jnp.isfinite(out)))

    # Pure-JAX reference with the same bf16-rounded weights/activations.
    xh = jnp.transpose(x_nchw, (0, 2, 3, 1)).astype(jnp.bfloat16).astype(jnp.float32)
    ref = resblock_ref(xh, block_a)
    ref = resblock_ref(ref.astype(jnp.bfloat16).astype(jnp.float32), block_b)
    ref = jnp.transpose(ref, (0, 3, 1, 2))
    err = float(jnp.max(jnp.abs(out - ref)))
    assert err < 1e-1, f"max abs error vs reference: {err}"

    print("KERNEL_OK")
</pallas_src>

<mosaic_0001>
module attributes {stable_mosaic.version = 11 : i64} {
  func.func @_conv_kernel(%arg0: i32, %arg1: i32, %arg2: memref<4x90x4xbf16, #tpu.memory_space<vmem>>, %arg3: memref<9x4x8xbf16, #tpu.memory_space<vmem>>, %arg4: memref<1x8xf32, #tpu.memory_space<vmem>>, %arg5: memref<1x72x8xbf16, #tpu.memory_space<vmem>>) attributes {dimension_semantics = [#tpu.dimension_semantics<parallel>, #tpu.dimension_semantics<parallel>], iteration_bounds = array<i64: 2, 1>, scalar_prefetch = 0 : i64, scratch_operands = 0 : i64, tpu.core_type = #tpu.core_type<tc>, window_params = [{transform_indices = @transform_0, window_bounds = array<i64: 4, 90, 4>}, {transform_indices = @transform_1, window_bounds = array<i64: 9, 4, 8>}, {transform_indices = @transform_2, window_bounds = array<i64: 1, 8>}, {transform_indices = @transform_3, window_bounds = array<i64: 1, 72, 8>}]} {
    %cst = arith.constant 0.000000e+00 : f32
    %0 = vector.broadcast %cst : f32 to vector<72x8xf32>
    %c0 = arith.constant 0 : index
    %c0_0 = arith.constant 0 : index
    %c0_1 = arith.constant 0 : index
    %1 = vector.load %arg2[%c0, %c0_0, %c0_1] : memref<4x90x4xbf16, #tpu.memory_space<vmem>>, vector<1x72x4xbf16>
    %2 = vector.shape_cast %1 : vector<1x72x4xbf16> to vector<72x4xbf16>
    %c0_2 = arith.constant 0 : index
    %c0_3 = arith.constant 0 : index
    %c0_4 = arith.constant 0 : index
    %3 = vector.load %arg3[%c0_2, %c0_3, %c0_4] : memref<9x4x8xbf16, #tpu.memory_space<vmem>>, vector<1x4x8xbf16>
    %4 = vector.shape_cast %3 : vector<1x4x8xbf16> to vector<4x8xbf16>
    %cst_5 = arith.constant dense<0.000000e+00> : vector<72x8xf32>
    %5 = tpu.matmul %2, %4, %cst_5 {dimension_numbers = #tpu.dot_dimension_numbers<[1], [0], [0], [1], [0, 0, 1, 1], [], []>} : vector<72x4xbf16>, vector<4x8xbf16>, vector<72x8xf32> -> vector<72x8xf32>
    %6 = arith.addf %0, %5 : vector<72x8xf32>
    %c1 = arith.constant 1 : index
    %c0_6 = arith.constant 0 : index
    %c0_7 = arith.constant 0 : index
    %7 = vector.load %arg2[%c1, %c0_6, %c0_7] : memref<4x90x4xbf16, #tpu.memory_space<vmem>>, vector<1x72x4xbf16>
    %8 = vector.shape_cast %7 : vector<1x72x4xbf16> to vector<72x4xbf16>
    %c1_8 = arith.constant 1 : index
    %c0_9 = arith.constant 0 : index
    %c0_10 = arith.constant 0 : index
    %9 = vector.load %arg3[%c1_8, %c0_9, %c0_10] : memref<9x4x8xbf16, #tpu.memory_space<vmem>>, vector<1x4x8xbf16>
    %10 = vector.shape_cast %9 : vector<1x4x8xbf16> to vector<4x8xbf16>
    %cst_11 = arith.constant dense<0.000000e+00> : vector<72x8xf32>
    %11 = tpu.matmul %8, %10, %cst_11 {dimension_numbers = #tpu.dot_dimension_numbers<[1], [0], [0], [1], [0, 0, 1, 1], [], []>} : vector<72x4xbf16>, vector<4x8xbf16>, vector<72x8xf32> -> vector<72x8xf32>
    %12 = arith.addf %6, %11 : vector<72x8xf32>
    %c0_12 = arith.constant 0 : index
    %c1_13 = arith.constant 1 : index
    %c0_14 = arith.constant 0 : index
    %13 = vector.load %arg2[%c0_12, %c1_13, %c0_14] : memref<4x90x4xbf16, #tpu.memory_space<vmem>>, vector<1x72x4xbf16>
    %14 = vector.shape_cast %13 : vector<1x72x4xbf16> to vector<72x4xbf16>
    %c2 = arith.constant 2 : index
    %c0_15 = arith.constant 0 : index
    %c0_16 = arith.constant 0 : index
    %15 = vector.load %arg3[%c2, %c0_15, %c0_16] : memref<9x4x8xbf16, #tpu.memory_space<vmem>>, vector<1x4x8xbf16>
    %16 = vector.shape_cast %15 : vector<1x4x8xbf16> to vector<4x8xbf16>
    %cst_17 = arith.constant dense<0.000000e+00> : vector<72x8xf32>
    %17 = tpu.matmul %14, %16, %cst_17 {dimension_numbers = #tpu.dot_dimension_numbers<[1], [0], [0], [1], [0, 0, 1, 1], [], []>} : vector<72x4xbf16>, vector<4x8xbf16>, vector<72x8xf32> -> vector<72x8xf32>
    %18 = arith.addf %12, %17 : vector<72x8xf32>
    %c2_18 = arith.constant 2 : index
    %c0_19 = arith.constant 0 : index
    %c0_20 = arith.constant 0 : index
    %19 = vector.load %arg2[%c2_18, %c0_19, %c0_20] : memref<4x90x4xbf16, #tpu.memory_space<vmem>>, vector<1x72x4xbf16>
    %20 = vector.shape_cast %19 : vector<1x72x4xbf16> to vector<72x4xbf16>
    %c3 = arith.constant 3 : index
    %c0_21 = arith.constant 0 : index
    %c0_22 = arith.constant 0 : index
    %21 = vector.load %arg3[%c3, %c0_21, %c0_22] : memref<9x4x8xbf16, #tpu.memory_space<vmem>>, vector<1x4x8xbf16>
    %22 = vector.shape_cast %21 : vector<1x4x8xbf16> to vector<4x8xbf16>
    %cst_23 = arith.constant dense<0.000000e+00> : vector<72x8xf32>
    %23 = tpu.matmul %20, %22, %cst_23 {dimension_numbers = #tpu.dot_dimension_numbers<[1], [0], [0], [1], [0, 0, 1, 1], [], []>} : vector<72x4xbf16>, vector<4x8xbf16>, vector<72x8xf32> -> vector<72x8xf32>
    %24 = arith.addf %18, %23 : vector<72x8xf32>
    %c3_24 = arith.constant 3 : index
    %c0_25 = arith.constant 0 : index
    %c0_26 = arith.constant 0 : index
    %25 = vector.load %arg2[%c3_24, %c0_25, %c0_26] : memref<4x90x4xbf16, #tpu.memory_space<vmem>>, vector<1x72x4xbf16>
    %26 = vector.shape_cast %25 : vector<1x72x4xbf16> to vector<72x4xbf16>
    %c4 = arith.constant 4 : index
    %c0_27 = arith.constant 0 : index
    %c0_28 = arith.constant 0 : index
    %27 = vector.load %arg3[%c4, %c0_27, %c0_28] : memref<9x4x8xbf16, #tpu.memory_space<vmem>>, vector<1x4x8xbf16>
    %28 = vector.shape_cast %27 : vector<1x4x8xbf16> to vector<4x8xbf16>
    %cst_29 = arith.constant dense<0.000000e+00> : vector<72x8xf32>
    %29 = tpu.matmul %26, %28, %cst_29 {dimension_numbers = #tpu.dot_dimension_numbers<[1], [0], [0], [1], [0, 0, 1, 1], [], []>} : vector<72x4xbf16>, vector<4x8xbf16>, vector<72x8xf32> -> vector<72x8xf32>
    %30 = arith.addf %24, %29 : vector<72x8xf32>
    %c2_30 = arith.constant 2 : index
    %c1_31 = arith.constant 1 : index
    %c0_32 = arith.constant 0 : index
    %31 = vector.load %arg2[%c2_30, %c1_31, %c0_32] : memref<4x90x4xbf16, #tpu.memory_space<vmem>>, vector<1x72x4xbf16>
    %32 = vector.shape_cast %31 : vector<1x72x4xbf16> to vector<72x4xbf16>
    %c5 = arith.constant 5 : index
    %c0_33 = arith.constant 0 : index
    %c0_34 = arith.constant 0 : index
    %33 = vector.load %arg3[%c5, %c0_33, %c0_34] : memref<9x4x8xbf16, #tpu.memory_space<vmem>>, vector<1x4x8xbf16>
    %34 = vector.shape_cast %33 : vector<1x4x8xbf16> to vector<4x8xbf16>
    %cst_35 = arith.constant dense<0.000000e+00> : vector<72x8xf32>
    %35 = tpu.matmul %32, %34, %cst_35 {dimension_numbers = #tpu.dot_dimension_numbers<[1], [0], [0], [1], [0, 0, 1, 1], [], []>} : vector<72x4xbf16>, vector<4x8xbf16>, vector<72x8xf32> -> vector<72x8xf32>
    %36 = arith.addf %30, %35 : vector<72x8xf32>
    %c0_36 = arith.constant 0 : index
    %c9 = arith.constant 9 : index
    %c0_37 = arith.constant 0 : index
    %37 = vector.load %arg2[%c0_36, %c9, %c0_37] : memref<4x90x4xbf16, #tpu.memory_space<vmem>>, vector<1x72x4xbf16>
    %38 = vector.shape_cast %37 : vector<1x72x4xbf16> to vector<72x4xbf16>
    %c6 = arith.constant 6 : index
    %c0_38 = arith.constant 0 : index
    %c0_39 = arith.constant 0 : index
    %39 = vector.load %arg3[%c6, %c0_38, %c0_39] : memref<9x4x8xbf16, #tpu.memory_space<vmem>>, vector<1x4x8xbf16>
    %40 = vector.shape_cast %39 : vector<1x4x8xbf16> to vector<4x8xbf16>
    %cst_40 = arith.constant dense<0.000000e+00> : vector<72x8xf32>
    %41 = tpu.matmul %38, %40, %cst_40 {dimension_numbers = #tpu.dot_dimension_numbers<[1], [0], [0], [1], [0, 0, 1, 1], [], []>} : vector<72x4xbf16>, vector<4x8xbf16>, vector<72x8xf32> -> vector<72x8xf32>
    %42 = arith.addf %36, %41 : vector<72x8xf32>
    %c1_41 = arith.constant 1 : index
    %c9_42 = arith.constant 9 : index
    %c0_43 = arith.constant 0 : index
    %43 = vector.load %arg2[%c1_41, %c9_42, %c0_43] : memref<4x90x4xbf16, #tpu.memory_space<vmem>>, vector<1x72x4xbf16>
    %44 = vector.shape_cast %43 : vector<1x72x4xbf16> to vector<72x4xbf16>
    %c7 = arith.constant 7 : index
    %c0_44 = arith.constant 0 : index
    %c0_45 = arith.constant 0 : index
    %45 = vector.load %arg3[%c7, %c0_44, %c0_45] : memref<9x4x8xbf16, #tpu.memory_space<vmem>>, vector<1x4x8xbf16>
    %46 = vector.shape_cast %45 : vector<1x4x8xbf16> to vector<4x8xbf16>
    %cst_46 = arith.constant dense<0.000000e+00> : vector<72x8xf32>
    %47 = tpu.matmul %44, %46, %cst_46 {dimension_numbers = #tpu.dot_dimension_numbers<[1], [0], [0], [1], [0, 0, 1, 1], [], []>} : vector<72x4xbf16>, vector<4x8xbf16>, vector<72x8xf32> -> vector<72x8xf32>
    %48 = arith.addf %42, %47 : vector<72x8xf32>
    %c0_47 = arith.constant 0 : index
    %c10 = arith.constant 10 : index
    %c0_48 = arith.constant 0 : index
    %49 = vector.load %arg2[%c0_47, %c10, %c0_48] : memref<4x90x4xbf16, #tpu.memory_space<vmem>>, vector<1x72x4xbf16>
    %50 = vector.shape_cast %49 : vector<1x72x4xbf16> to vector<72x4xbf16>
    %c8 = arith.constant 8 : index
    %c0_49 = arith.constant 0 : index
    %c0_50 = arith.constant 0 : index
    %51 = vector.load %arg3[%c8, %c0_49, %c0_50] : memref<9x4x8xbf16, #tpu.memory_space<vmem>>, vector<1x4x8xbf16>
    %52 = vector.shape_cast %51 : vector<1x4x8xbf16> to vector<4x8xbf16>
    %cst_51 = arith.constant dense<0.000000e+00> : vector<72x8xf32>
    %53 = tpu.matmul %50, %52, %cst_51 {dimension_numbers = #tpu.dot_dimension_numbers<[1], [0], [0], [1], [0, 0, 1, 1], [], []>} : vector<72x4xbf16>, vector<4x8xbf16>, vector<72x8xf32> -> vector<72x8xf32>
    %54 = arith.addf %48, %53 : vector<72x8xf32>
    %c0_52 = arith.constant 0 : index
    %c0_53 = arith.constant 0 : index
    %55 = vector.load %arg4[%c0_52, %c0_53] : memref<1x8xf32, #tpu.memory_space<vmem>>, vector<1x8xf32>
    %56 = vector.broadcast %55 : vector<1x8xf32> to vector<72x8xf32>
    %57 = arith.addf %54, %56 : vector<72x8xf32>
    %cst_54 = arith.constant 0.000000e+00 : f32
    %58 = vector.broadcast %cst_54 : f32 to vector<72x8xf32>
    %59 = arith.maximumf %57, %58 : vector<72x8xf32>
    %60 = arith.truncf %59 : vector<72x8xf32> to vector<72x8xbf16>
    %c0_55 = arith.constant 0 : index
    %c0_56 = arith.constant 0 : index
    %c0_57 = arith.constant 0 : index
    %61 = vector.load %arg5[%c0_55, %c0_56, %c0_57] : memref<1x72x8xbf16, #tpu.memory_space<vmem>>, vector<1x72x8xbf16>
    %62 = vector.shape_cast %61 : vector<1x72x8xbf16> to vector<72x8xbf16>
    %63 = vector.shape_cast %60 : vector<72x8xbf16> to vector<1x72x8xbf16>
    tpu.vector_store %arg5[%c0_55, %c0_56, %c0_57], %63 {strides = array<i32>} : memref<1x72x8xbf16, #tpu.memory_space<vmem>>, vector<1x72x8xbf16>,
    return
  }
  func.func @transform_0(%arg0: i32, %arg1: i32) -> (i32, i32, i32) {
    %c0_i32 = arith.constant 0 : i32
    %c0_i32_0 = arith.constant 0 : i32
    %c0_i32_1 = arith.constant 0 : i32
    return %arg0, %c0_i32, %c0_i32_0 : i32, i32, i32
  }
  func.func @transform_1(%arg0: i32, %arg1: i32) -> (i32, i32, i32) {
    %c0_i32 = arith.constant 0 : i32
    %c0_i32_0 = arith.constant 0 : i32
    %c0_i32_1 = arith.constant 0 : i32
    return %c0_i32, %c0_i32_0, %arg1 : i32, i32, i32
  }
  func.func @transform_2(%arg0: i32, %arg1: i32) -> (i32, i32) {
    %c0_i32 = arith.constant 0 : i32
    %c0_i32_0 = arith.constant 0 : i32
    return %c0_i32, %arg1 : i32, i32
  }
  func.func @transform_3(%arg0: i32, %arg1: i32) -> (i32, i32, i32) {
    %c0_i32 = arith.constant 0 : i32
    %c0_i32_0 = arith.constant 0 : i32
    return %arg0, %c0_i32, %arg1 : i32, i32, i32
  }
}

module attributes {stable_mosaic.version = 11 : i64} {
  func.func @_conv_kernel(%arg0: i32, %arg1: i32, %arg2: memref<1x72x4xbf16, #tpu.memory_space<vmem>>, %arg3: memref<1x4x8xbf16, #tpu.memory_space<vmem>>, %arg4: memref<1x8xf32, #tpu.memory_space<vmem>>, %arg5: memref<1x64x8xbf16, #tpu.memory_space<vmem>>) attributes {dimension_semantics = [#tpu.dimension_semantics<parallel>, #tpu.dimension_semantics<parallel>], iteration_bounds = array<i64: 2, 1>, scalar_prefetch = 0 : i64, scratch_operands = 0 : i64, tpu.core_type = #tpu.core_type<tc>, window_params = [{transform_indices = @transform_0, window_bounds = array<i64: 1, 72, 4>}, {transform_indices = @transform_1, window_bounds = array<i64: 1, 4, 8>}, {transform_indices = @transform_2, window_bounds = array<i64: 1, 8>}, {transform_indices = @transform_3, window_bounds = array<i64: 1, 64, 8>}]} {
    %cst = arith.constant 0.000000e+00 : f32
    %0 = vector.broadcast %cst : f32 to vector<64x8xf32>
    %c0 = arith.constant 0 : index
    %c0_0 = arith.constant 0 : index
    %c0_1 = arith.constant 0 : index
    %1 = vector.load %arg2[%c0, %c0_0, %c0_1] : memref<1x72x4xbf16, #tpu.memory_space<vmem>>, vector<1x64x4xbf16>
    %2 = vector.shape_cast %1 : vector<1x64x4xbf16> to vector<64x4xbf16>
    %c0_2 = arith.constant 0 : index
    %c0_3 = arith.constant 0 : index
    %c0_4 = arith.constant 0 : index
    %3 = vector.load %arg3[%c0_2, %c0_3, %c0_4] : memref<1x4x8xbf16, #tpu.memory_space<vmem>>, vector<1x4x8xbf16>
    %4 = vector.shape_cast %3 : vector<1x4x8xbf16> to vector<4x8xbf16>
    %cst_5 = arith.constant dense<0.000000e+00> : vector<64x8xf32>
    %5 = tpu.matmul %2, %4, %cst_5 {dimension_numbers = #tpu.dot_dimension_numbers<[1], [0], [0], [1], [0, 0, 1, 1], [], []>} : vector<64x4xbf16>, vector<4x8xbf16>, vector<64x8xf32> -> vector<64x8xf32>
    %6 = arith.addf %0, %5 : vector<64x8xf32>
    %c0_6 = arith.constant 0 : index
    %c0_7 = arith.constant 0 : index
    %7 = vector.load %arg4[%c0_6, %c0_7] : memref<1x8xf32, #tpu.memory_space<vmem>>, vector<1x8xf32>
    %8 = vector.broadcast %7 : vector<1x8xf32> to vector<64x8xf32>
    %9 = arith.addf %6, %8 : vector<64x8xf32>
    %10 = arith.truncf %9 : vector<64x8xf32> to vector<64x8xbf16>
    %c0_8 = arith.constant 0 : index
    %c0_9 = arith.constant 0 : index
    %c0_10 = arith.constant 0 : index
    %11 = vector.load %arg5[%c0_8, %c0_9, %c0_10] : memref<1x64x8xbf16, #tpu.memory_space<vmem>>, vector<1x64x8xbf16>
    %12 = vector.shape_cast %11 : vector<1x64x8xbf16> to vector<64x8xbf16>
    %13 = vector.shape_cast %10 : vector<64x8xbf16> to vector<1x64x8xbf16>
    tpu.vector_store %arg5[%c0_8, %c0_9, %c0_10], %13 {strides = array<i32>} : memref<1x64x8xbf16, #tpu.memory_space<vmem>>, vector<1x64x8xbf16>,
    return
  }
  func.func @transform_0(%arg0: i32, %arg1: i32) -> (i32, i32, i32) {
    %c0_i32 = arith.constant 0 : i32
    %c0_i32_0 = arith.constant 0 : i32
    %c0_i32_1 = arith.constant 0 : i32
    return %arg0, %c0_i32, %c0_i32_0 : i32, i32, i32
  }
  func.func @transform_1(%arg0: i32, %arg1: i32) -> (i32, i32, i32) {
    %c0_i32 = arith.constant 0 : i32
    %c0_i32_0 = arith.constant 0 : i32
    %c0_i32_1 = arith.constant 0 : i32
    return %c0_i32, %c0_i32_0, %arg1 : i32, i32, i32
  }
  func.func @transform_2(%arg0: i32, %arg1: i32) -> (i32, i32) {
    %c0_i32 = arith.constant 0 : i32
    %c0_i32_0 = arith.constant 0 : i32
    return %c0_i32, %arg1 : i32, i32
  }
  func.func @transform_3(%arg0: i32, %arg1: i32) -> (i32, i32, i32) {
    %c0_i32 = arith.constant 0 : i32
    %c0_i32_0 = arith.constant 0 : i32
    return %arg0, %c0_i32, %arg1 : i32, i32, i32
  }
}

module attributes {stable_mosaic.version = 11 : i64} {
  func.func @_conv_kernel(%arg0: i32, %arg1: i32, %arg2: memref<1x110x8xbf16, #tpu.memory_space<vmem>>, %arg3: memref<9x8x8xbf16, #tpu.memory_space<vmem>>, %arg4: memref<1x8xf32, #tpu.memory_space<vmem>>, %arg5: memref<1x80x8xbf16, #tpu.memory_space<vmem>>, %arg6: memref<1x80x8xbf16, #tpu.memory_space<vmem>>) attributes {dimension_semantics = [#tpu.dimension_semantics<parallel>, #tpu.dimension_semantics<parallel>], iteration_bounds = array<i64: 2, 1>, scalar_prefetch = 0 : i64, scratch_operands = 0 : i64, tpu.core_type = #tpu.core_type<tc>, window_params = [{transform_indices = @transform_0, window_bounds = array<i64: 1, 110, 8>}, {transform_indices = @transform_1, window_bounds = array<i64: 9, 8, 8>}, {transform_indices = @transform_2, window_bounds = array<i64: 1, 8>}, {transform_indices = @transform_3, window_bounds = array<i64: 1, 80, 8>}, {transform_indices = @transform_4, window_bounds = array<i64: 1, 80, 8>}]} {
    %cst = arith.constant 0.000000e+00 : f32
    %0 = vector.broadcast %cst : f32 to vector<80x8xf32>
    %c0 = arith.constant 0 : index
    %c0_0 = arith.constant 0 : index
    %c0_1 = arith.constant 0 : index
    %1 = vector.load %arg2[%c0, %c0_0, %c0_1] : memref<1x110x8xbf16, #tpu.memory_space<vmem>>, vector<1x80x8xbf16>
    %2 = vector.shape_cast %1 : vector<1x80x8xbf16> to vector<80x8xbf16>
    %c0_2 = arith.constant 0 : index
    %c0_3 = arith.constant 0 : index
    %c0_4 = arith.constant 0 : index
    %3 = vector.load %arg3[%c0_2, %c0_3, %c0_4] : memref<9x8x8xbf16, #tpu.memory_space<vmem>>, vector<1x8x8xbf16>
    %4 = vector.shape_cast %3 : vector<1x8x8xbf16> to vector<8x8xbf16>
    %cst_5 = arith.constant dense<0.000000e+00> : vector<80x8xf32>
    %5 = tpu.matmul %2, %4, %cst_5 {dimension_numbers = #tpu.dot_dimension_numbers<[1], [0], [0], [1], [0, 0, 1, 1], [], []>} : vector<80x8xbf16>, vector<8x8xbf16>, vector<80x8xf32> -> vector<80x8xf32>
    %6 = arith.addf %0, %5 : vector<80x8xf32>
    %c0_6 = arith.constant 0 : index
    %c1 = arith.constant 1 : index
    %c0_7 = arith.constant 0 : index
    %7 = vector.load %arg2[%c0_6, %c1, %c0_7] : memref<1x110x8xbf16, #tpu.memory_space<vmem>>, vector<1x80x8xbf16>
    %8 = vector.shape_cast %7 : vector<1x80x8xbf16> to vector<80x8xbf16>
    %c1_8 = arith.constant 1 : index
    %c0_9 = arith.constant 0 : index
    %c0_10 = arith.constant 0 : index
    %9 = vector.load %arg3[%c1_8, %c0_9, %c0_10] : memref<9x8x8xbf16, #tpu.memory_space<vmem>>, vector<1x8x8xbf16>
    %10 = vector.shape_cast %9 : vector<1x8x8xbf16> to vector<8x8xbf16>
    %cst_11 = arith.constant dense<0.000000e+00> : vector<80x8xf32>
    %11 = tpu.matmul %8, %10, %cst_11 {dimension_numbers = #tpu.dot_dimension_numbers<[1], [0], [0], [1], [0, 0, 1, 1], [], []>} : vector<80x8xbf16>, vector<8x8xbf16>, vector<80x8xf32> -> vector<80x8xf32>
    %12 = arith.addf %6, %11 : vector<80x8xf32>
    %c0_12 = arith.constant 0 : index
    %c2 = arith.constant 2 : index
    %c0_13 = arith.constant 0 : index
    %13 = vector.load %arg2[%c0_12, %c2, %c0_13] : memref<1x110x8xbf16, #tpu.memory_space<vmem>>, vector<1x80x8xbf16>
    %14 = vector.shape_cast %13 : vector<1x80x8xbf16> to vector<80x8xbf16>
    %c2_14 = arith.constant 2 : index
    %c0_15 = arith.constant 0 : index
    %c0_16 = arith.constant 0 : index
    %15 = vector.load %arg3[%c2_14, %c0_15, %c0_16] : memref<9x8x8xbf16, #tpu.memory_space<vmem>>, vector<1x8x8xbf16>
    %16 = vector.shape_cast %15 : vector<1x8x8xbf16> to vector<8x8xbf16>
    %cst_17 = arith.constant dense<0.000000e+00> : vector<80x8xf32>
    %17 = tpu.matmul %14, %16, %cst_17 {dimension_numbers = #tpu.dot_dimension_numbers<[1], [0], [0], [1], [0, 0, 1, 1], [], []>} : vector<80x8xbf16>, vector<8x8xbf16>, vector<80x8xf32> -> vector<80x8xf32>
    %18 = arith.addf %12, %17 : vector<80x8xf32>
    %c0_18 = arith.constant 0 : index
    %c10 = arith.constant 10 : index
    %c0_19 = arith.constant 0 : index
    %19 = vector.load %arg2[%c0_18, %c10, %c0_19] : memref<1x110x8xbf16, #tpu.memory_space<vmem>>, vector<1x80x8xbf16>
    %20 = vector.shape_cast %19 : vector<1x80x8xbf16> to vector<80x8xbf16>
    %c3 = arith.constant 3 : index
    %c0_20 = arith.constant 0 : index
    %c0_21 = arith.constant 0 : index
    %21 = vector.load %arg3[%c3, %c0_20, %c0_21] : memref<9x8x8xbf16, #tpu.memory_space<vmem>>, vector<1x8x8xbf16>
    %22 = vector.shape_cast %21 : vector<1x8x8xbf16> to vector<8x8xbf16>
    %cst_22 = arith.constant dense<0.000000e+00> : vector<80x8xf32>
    %23 = tpu.matmul %20, %22, %cst_22 {dimension_numbers = #tpu.dot_dimension_numbers<[1], [0], [0], [1], [0, 0, 1, 1], [], []>} : vector<80x8xbf16>, vector<8x8xbf16>, vector<80x8xf32> -> vector<80x8xf32>
    %24 = arith.addf %18, %23 : vector<80x8xf32>
    %c0_23 = arith.constant 0 : index
    %c11 = arith.constant 11 : index
    %c0_24 = arith.constant 0 : index
    %25 = vector.load %arg2[%c0_23, %c11, %c0_24] : memref<1x110x8xbf16, #tpu.memory_space<vmem>>, vector<1x80x8xbf16>
    %26 = vector.shape_cast %25 : vector<1x80x8xbf16> to vector<80x8xbf16>
    %c4 = arith.constant 4 : index
    %c0_25 = arith.constant 0 : index
    %c0_26 = arith.constant 0 : index
    %27 = vector.load %arg3[%c4, %c0_25, %c0_26] : memref<9x8x8xbf16, #tpu.memory_space<vmem>>, vector<1x8x8xbf16>
    %28 = vector.shape_cast %27 : vector<1x8x8xbf16> to vector<8x8xbf16>
    %cst_27 = arith.constant dense<0.000000e+00> : vector<80x8xf32>
    %29 = tpu.matmul %26, %28, %cst_27 {dimension_numbers = #tpu.dot_dimension_numbers<[1], [0], [0], [1], [0, 0, 1, 1], [], []>} : vector<80x8xbf16>, vector<8x8xbf16>, vector<80x8xf32> -> vector<80x8xf32>
    %30 = arith.addf %24, %29 : vector<80x8xf32>
    %c0_28 = arith.constant 0 : index
    %c12 = arith.constant 12 : index
    %c0_29 = arith.constant 0 : index
    %31 = vector.load %arg2[%c0_28, %c12, %c0_29] : memref<1x110x8xbf16, #tpu.memory_space<vmem>>, vector<1x80x8xbf16>
    %32 = vector.shape_cast %31 : vector<1x80x8xbf16> to vector<80x8xbf16>
    %c5 = arith.constant 5 : index
    %c0_30 = arith.constant 0 : index
    %c0_31 = arith.constant 0 : index
    %33 = vector.load %arg3[%c5, %c0_30, %c0_31] : memref<9x8x8xbf16, #tpu.memory_space<vmem>>, vector<1x8x8xbf16>
    %34 = vector.shape_cast %33 : vector<1x8x8xbf16> to vector<8x8xbf16>
    %cst_32 = arith.constant dense<0.000000e+00> : vector<80x8xf32>
    %35 = tpu.matmul %32, %34, %cst_32 {dimension_numbers = #tpu.dot_dimension_numbers<[1], [0], [0], [1], [0, 0, 1, 1], [], []>} : vector<80x8xbf16>, vector<8x8xbf16>, vector<80x8xf32> -> vector<80x8xf32>
    %36 = arith.addf %30, %35 : vector<80x8xf32>
    %c0_33 = arith.constant 0 : index
    %c20 = arith.constant 20 : index
    %c0_34 = arith.constant 0 : index
    %37 = vector.load %arg2[%c0_33, %c20, %c0_34] : memref<1x110x8xbf16, #tpu.memory_space<vmem>>, vector<1x80x8xbf16>
    %38 = vector.shape_cast %37 : vector<1x80x8xbf16> to vector<80x8xbf16>
    %c6 = arith.constant 6 : index
    %c0_35 = arith.constant 0 : index
    %c0_36 = arith.constant 0 : index
    %39 = vector.load %arg3[%c6, %c0_35, %c0_36] : memref<9x8x8xbf16, #tpu.memory_space<vmem>>, vector<1x8x8xbf16>
    %40 = vector.shape_cast %39 : vector<1x8x8xbf16> to vector<8x8xbf16>
    %cst_37 = arith.constant dense<0.000000e+00> : vector<80x8xf32>
    %41 = tpu.matmul %38, %40, %cst_37 {dimension_numbers = #tpu.dot_dimension_numbers<[1], [0], [0], [1], [0, 0, 1, 1], [], []>} : vector<80x8xbf16>, vector<8x8xbf16>, vector<80x8xf32> -> vector<80x8xf32>
    %42 = arith.addf %36, %41 : vector<80x8xf32>
    %c0_38 = arith.constant 0 : index
    %c21 = arith.constant 21 : index
    %c0_39 = arith.constant 0 : index
    %43 = vector.load %arg2[%c0_38, %c21, %c0_39] : memref<1x110x8xbf16, #tpu.memory_space<vmem>>, vector<1x80x8xbf16>
    %44 = vector.shape_cast %43 : vector<1x80x8xbf16> to vector<80x8xbf16>
    %c7 = arith.constant 7 : index
    %c0_40 = arith.constant 0 : index
    %c0_41 = arith.constant 0 : index
    %45 = vector.load %arg3[%c7, %c0_40, %c0_41] : memref<9x8x8xbf16, #tpu.memory_space<vmem>>, vector<1x8x8xbf16>
    %46 = vector.shape_cast %45 : vector<1x8x8xbf16> to vector<8x8xbf16>
    %cst_42 = arith.constant dense<0.000000e+00> : vector<80x8xf32>
    %47 = tpu.matmul %44, %46, %cst_42 {dimension_numbers = #tpu.dot_dimension_numbers<[1], [0], [0], [1], [0, 0, 1, 1], [], []>} : vector<80x8xbf16>, vector<8x8xbf16>, vector<80x8xf32> -> vector<80x8xf32>
    %48 = arith.addf %42, %47 : vector<80x8xf32>
    %c0_43 = arith.constant 0 : index
    %c22 = arith.constant 22 : index
    %c0_44 = arith.constant 0 : index
    %49 = vector.load %arg2[%c0_43, %c22, %c0_44] : memref<1x110x8xbf16, #tpu.memory_space<vmem>>, vector<1x80x8xbf16>
    %50 = vector.shape_cast %49 : vector<1x80x8xbf16> to vector<80x8xbf16>
    %c8 = arith.constant 8 : index
    %c0_45 = arith.constant 0 : index
    %c0_46 = arith.constant 0 : index
    %51 = vector.load %arg3[%c8, %c0_45, %c0_46] : memref<9x8x8xbf16, #tpu.memory_space<vmem>>, vector<1x8x8xbf16>
    %52 = vector.shape_cast %51 : vector<1x8x8xbf16> to vector<8x8xbf16>
    %cst_47 = arith.constant dense<0.000000e+00> : vector<80x8xf32>
    %53 = tpu.matmul %50, %52, %cst_47 {dimension_numbers = #tpu.dot_dimension_numbers<[1], [0], [0], [1], [0, 0, 1, 1], [], []>} : vector<80x8xbf16>, vector<8x8xbf16>, vector<80x8xf32> -> vector<80x8xf32>
    %54 = arith.addf %48, %53 : vector<80x8xf32>
    %c0_48 = arith.constant 0 : index
    %c0_49 = arith.constant 0 : index
    %55 = vector.load %arg4[%c0_48, %c0_49] : memref<1x8xf32, #tpu.memory_space<vmem>>, vector<1x8xf32>
    %56 = vector.broadcast %55 : vector<1x8xf32> to vector<80x8xf32>
    %57 = arith.addf %54, %56 : vector<80x8xf32>
    %c0_50 = arith.constant 0 : index
    %c0_51 = arith.constant 0 : index
    %c0_52 = arith.constant 0 : index
    %58 = vector.load %arg5[%c0_50, %c0_51, %c0_52] : memref<1x80x8xbf16, #tpu.memory_space<vmem>>, vector<1x80x8xbf16>
    %59 = vector.shape_cast %58 : vector<1x80x8xbf16> to vector<80x8xbf16>
    %60 = arith.extf %59 : vector<80x8xbf16> to vector<80x8xf32>
    %61 = arith.addf %57, %60 : vector<80x8xf32>
    %cst_53 = arith.constant 0.000000e+00 : f32
    %62 = vector.broadcast %cst_53 : f32 to vector<80x8xf32>
    %63 = arith.maximumf %61, %62 : vector<80x8xf32>
    %64 = arith.truncf %63 : vector<80x8xf32> to vector<80x8xbf16>
    %c0_54 = arith.constant 0 : index
    %c0_55 = arith.constant 0 : index
    %c0_56 = arith.constant 0 : index
    %65 = vector.load %arg6[%c0_54, %c0_55, %c0_56] : memref<1x80x8xbf16, #tpu.memory_space<vmem>>, vector<1x80x8xbf16>
    %66 = vector.shape_cast %65 : vector<1x80x8xbf16> to vector<80x8xbf16>
    %67 = vector.shape_cast %64 : vector<80x8xbf16> to vector<1x80x8xbf16>
    tpu.vector_store %arg6[%c0_54, %c0_55, %c0_56], %67 {strides = array<i32>} : memref<1x80x8xbf16, #tpu.memory_space<vmem>>, vector<1x80x8xbf16>,
    return
  }
  func.func @transform_0(%arg0: i32, %arg1: i32) -> (i32, i32, i32) {
    %c0_i32 = arith.constant 0 : i32
    %c0_i32_0 = arith.constant 0 : i32
    %c0_i32_1 = arith.constant 0 : i32
    return %arg0, %c0_i32, %c0_i32_0 : i32, i32, i32
  }
  func.func @transform_1(%arg0: i32, %arg1: i32) -> (i32, i32, i32) {
    %c0_i32 = arith.constant 0 : i32
    %c0_i32_0 = arith.constant 0 : i32
    %c0_i32_1 = arith.constant 0 : i32
    return %c0_i32, %c0_i32_0, %arg1 : i32, i32, i32
  }
  func.func @transform_2(%arg0: i32, %arg1: i32) -> (i32, i32) {
    %c0_i32 = arith.constant 0 : i32
    %c0_i32_0 = arith.constant 0 : i32
    return %c0_i32, %arg1 : i32, i32
  }
  func.func @transform_3(%arg0: i32, %arg1: i32) -> (i32, i32, i32) {
    %c0_i32 = arith.constant 0 : i32
    %c0_i32_0 = arith.constant 0 : i32
    return %arg0, %c0_i32, %arg1 : i32, i32, i32
  }
  func.func @transform_4(%arg0: i32, %arg1: i32) -> (i32, i32, i32) {
    %c0_i32 = arith.constant 0 : i32
    %c0_i32_0 = arith.constant 0 : i32
    return %arg0, %c0_i32, %arg1 : i32, i32, i32
  }
}

module attributes {stable_mosaic.version = 11 : i64} {
  func.func @_conv_kernel(%arg0: i32, %arg1: i32, %arg2: memref<1x110x8xbf16, #tpu.memory_space<vmem>>, %arg3: memref<9x8x8xbf16, #tpu.memory_space<vmem>>, %arg4: memref<1x8xf32, #tpu.memory_space<vmem>>, %arg5: memref<1x80x8xbf16, #tpu.memory_space<vmem>>) attributes {dimension_semantics = [#tpu.dimension_semantics<parallel>, #tpu.dimension_semantics<parallel>], iteration_bounds = array<i64: 2, 1>, scalar_prefetch = 0 : i64, scratch_operands = 0 : i64, tpu.core_type = #tpu.core_type<tc>, window_params = [{transform_indices = @transform_0, window_bounds = array<i64: 1, 110, 8>}, {transform_indices = @transform_1, window_bounds = array<i64: 9, 8, 8>}, {transform_indices = @transform_2, window_bounds = array<i64: 1, 8>}, {transform_indices = @transform_3, window_bounds = array<i64: 1, 80, 8>}]} {
    %cst = arith.constant 0.000000e+00 : f32
    %0 = vector.broadcast %cst : f32 to vector<80x8xf32>
    %c0 = arith.constant 0 : index
    %c0_0 = arith.constant 0 : index
    %c0_1 = arith.constant 0 : index
    %1 = vector.load %arg2[%c0, %c0_0, %c0_1] : memref<1x110x8xbf16, #tpu.memory_space<vmem>>, vector<1x80x8xbf16>
    %2 = vector.shape_cast %1 : vector<1x80x8xbf16> to vector<80x8xbf16>
    %c0_2 = arith.constant 0 : index
    %c0_3 = arith.constant 0 : index
    %c0_4 = arith.constant 0 : index
    %3 = vector.load %arg3[%c0_2, %c0_3, %c0_4] : memref<9x8x8xbf16, #tpu.memory_space<vmem>>, vector<1x8x8xbf16>
    %4 = vector.shape_cast %3 : vector<1x8x8xbf16> to vector<8x8xbf16>
    %cst_5 = arith.constant dense<0.000000e+00> : vector<80x8xf32>
    %5 = tpu.matmul %2, %4, %cst_5 {dimension_numbers = #tpu.dot_dimension_numbers<[1], [0], [0], [1], [0, 0, 1, 1], [], []>} : vector<80x8xbf16>, vector<8x8xbf16>, vector<80x8xf32> -> vector<80x8xf32>
    %6 = arith.addf %0, %5 : vector<80x8xf32>
    %c0_6 = arith.constant 0 : index
    %c1 = arith.constant 1 : index
    %c0_7 = arith.constant 0 : index
    %7 = vector.load %arg2[%c0_6, %c1, %c0_7] : memref<1x110x8xbf16, #tpu.memory_space<vmem>>, vector<1x80x8xbf16>
    %8 = vector.shape_cast %7 : vector<1x80x8xbf16> to vector<80x8xbf16>
    %c1_8 = arith.constant 1 : index
    %c0_9 = arith.constant 0 : index
    %c0_10 = arith.constant 0 : index
    %9 = vector.load %arg3[%c1_8, %c0_9, %c0_10] : memref<9x8x8xbf16, #tpu.memory_space<vmem>>, vector<1x8x8xbf16>
    %10 = vector.shape_cast %9 : vector<1x8x8xbf16> to vector<8x8xbf16>
    %cst_11 = arith.constant dense<0.000000e+00> : vector<80x8xf32>
    %11 = tpu.matmul %8, %10, %cst_11 {dimension_numbers = #tpu.dot_dimension_numbers<[1], [0], [0], [1], [0, 0, 1, 1], [], []>} : vector<80x8xbf16>, vector<8x8xbf16>, vector<80x8xf32> -> vector<80x8xf32>
    %12 = arith.addf %6, %11 : vector<80x8xf32>
    %c0_12 = arith.constant 0 : index
    %c2 = arith.constant 2 : index
    %c0_13 = arith.constant 0 : index
    %13 = vector.load %arg2[%c0_12, %c2, %c0_13] : memref<1x110x8xbf16, #tpu.memory_space<vmem>>, vector<1x80x8xbf16>
    %14 = vector.shape_cast %13 : vector<1x80x8xbf16> to vector<80x8xbf16>
    %c2_14 = arith.constant 2 : index
    %c0_15 = arith.constant 0 : index
    %c0_16 = arith.constant 0 : index
    %15 = vector.load %arg3[%c2_14, %c0_15, %c0_16] : memref<9x8x8xbf16, #tpu.memory_space<vmem>>, vector<1x8x8xbf16>
    %16 = vector.shape_cast %15 : vector<1x8x8xbf16> to vector<8x8xbf16>
    %cst_17 = arith.constant dense<0.000000e+00> : vector<80x8xf32>
    %17 = tpu.matmul %14, %16, %cst_17 {dimension_numbers = #tpu.dot_dimension_numbers<[1], [0], [0], [1], [0, 0, 1, 1], [], []>} : vector<80x8xbf16>, vector<8x8xbf16>, vector<80x8xf32> -> vector<80x8xf32>
    %18 = arith.addf %12, %17 : vector<80x8xf32>
    %c0_18 = arith.constant 0 : index
    %c10 = arith.constant 10 : index
    %c0_19 = arith.constant 0 : index
    %19 = vector.load %arg2[%c0_18, %c10, %c0_19] : memref<1x110x8xbf16, #tpu.memory_space<vmem>>, vector<1x80x8xbf16>
    %20 = vector.shape_cast %19 : vector<1x80x8xbf16> to vector<80x8xbf16>
    %c3 = arith.constant 3 : index
    %c0_20 = arith.constant 0 : index
    %c0_21 = arith.constant 0 : index
    %21 = vector.load %arg3[%c3, %c0_20, %c0_21] : memref<9x8x8xbf16, #tpu.memory_space<vmem>>, vector<1x8x8xbf16>
    %22 = vector.shape_cast %21 : vector<1x8x8xbf16> to vector<8x8xbf16>
    %cst_22 = arith.constant dense<0.000000e+00> : vector<80x8xf32>
    %23 = tpu.matmul %20, %22, %cst_22 {dimension_numbers = #tpu.dot_dimension_numbers<[1], [0], [0], [1], [0, 0, 1, 1], [], []>} : vector<80x8xbf16>, vector<8x8xbf16>, vector<80x8xf32> -> vector<80x8xf32>
    %24 = arith.addf %18, %23 : vector<80x8xf32>
    %c0_23 = arith.constant 0 : index
    %c11 = arith.constant 11 : index
    %c0_24 = arith.constant 0 : index
    %25 = vector.load %arg2[%c0_23, %c11, %c0_24] : memref<1x110x8xbf16, #tpu.memory_space<vmem>>, vector<1x80x8xbf16>
    %26 = vector.shape_cast %25 : vector<1x80x8xbf16> to vector<80x8xbf16>
    %c4 = arith.constant 4 : index
    %c0_25 = arith.constant 0 : index
    %c0_26 = arith.constant 0 : index
    %27 = vector.load %arg3[%c4, %c0_25, %c0_26] : memref<9x8x8xbf16, #tpu.memory_space<vmem>>, vector<1x8x8xbf16>
    %28 = vector.shape_cast %27 : vector<1x8x8xbf16> to vector<8x8xbf16>
    %cst_27 = arith.constant dense<0.000000e+00> : vector<80x8xf32>
    %29 = tpu.matmul %26, %28, %cst_27 {dimension_numbers = #tpu.dot_dimension_numbers<[1], [0], [0], [1], [0, 0, 1, 1], [], []>} : vector<80x8xbf16>, vector<8x8xbf16>, vector<80x8xf32> -> vector<80x8xf32>
    %30 = arith.addf %24, %29 : vector<80x8xf32>
    %c0_28 = arith.constant 0 : index
    %c12 = arith.constant 12 : index
    %c0_29 = arith.constant 0 : index
    %31 = vector.load %arg2[%c0_28, %c12, %c0_29] : memref<1x110x8xbf16, #tpu.memory_space<vmem>>, vector<1x80x8xbf16>
    %32 = vector.shape_cast %31 : vector<1x80x8xbf16> to vector<80x8xbf16>
    %c5 = arith.constant 5 : index
    %c0_30 = arith.constant 0 : index
    %c0_31 = arith.constant 0 : index
    %33 = vector.load %arg3[%c5, %c0_30, %c0_31] : memref<9x8x8xbf16, #tpu.memory_space<vmem>>, vector<1x8x8xbf16>
    %34 = vector.shape_cast %33 : vector<1x8x8xbf16> to vector<8x8xbf16>
    %cst_32 = arith.constant dense<0.000000e+00> : vector<80x8xf32>
    %35 = tpu.matmul %32, %34, %cst_32 {dimension_numbers = #tpu.dot_dimension_numbers<[1], [0], [0], [1], [0, 0, 1, 1], [], []>} : vector<80x8xbf16>, vector<8x8xbf16>, vector<80x8xf32> -> vector<80x8xf32>
    %36 = arith.addf %30, %35 : vector<80x8xf32>
    %c0_33 = arith.constant 0 : index
    %c20 = arith.constant 20 : index
    %c0_34 = arith.constant 0 : index
    %37 = vector.load %arg2[%c0_33, %c20, %c0_34] : memref<1x110x8xbf16, #tpu.memory_space<vmem>>, vector<1x80x8xbf16>
    %38 = vector.shape_cast %37 : vector<1x80x8xbf16> to vector<80x8xbf16>
    %c6 = arith.constant 6 : index
    %c0_35 = arith.constant 0 : index
    %c0_36 = arith.constant 0 : index
    %39 = vector.load %arg3[%c6, %c0_35, %c0_36] : memref<9x8x8xbf16, #tpu.memory_space<vmem>>, vector<1x8x8xbf16>
    %40 = vector.shape_cast %39 : vector<1x8x8xbf16> to vector<8x8xbf16>
    %cst_37 = arith.constant dense<0.000000e+00> : vector<80x8xf32>
    %41 = tpu.matmul %38, %40, %cst_37 {dimension_numbers = #tpu.dot_dimension_numbers<[1], [0], [0], [1], [0, 0, 1, 1], [], []>} : vector<80x8xbf16>, vector<8x8xbf16>, vector<80x8xf32> -> vector<80x8xf32>
    %42 = arith.addf %36, %41 : vector<80x8xf32>
    %c0_38 = arith.constant 0 : index
    %c21 = arith.constant 21 : index
    %c0_39 = arith.constant 0 : index
    %43 = vector.load %arg2[%c0_38, %c21, %c0_39] : memref<1x110x8xbf16, #tpu.memory_space<vmem>>, vector<1x80x8xbf16>
    %44 = vector.shape_cast %43 : vector<1x80x8xbf16> to vector<80x8xbf16>
    %c7 = arith.constant 7 : index
    %c0_40 = arith.constant 0 : index
    %c0_41 = arith.constant 0 : index
    %45 = vector.load %arg3[%c7, %c0_40, %c0_41] : memref<9x8x8xbf16, #tpu.memory_space<vmem>>, vector<1x8x8xbf16>
    %46 = vector.shape_cast %45 : vector<1x8x8xbf16> to vector<8x8xbf16>
    %cst_42 = arith.constant dense<0.000000e+00> : vector<80x8xf32>
    %47 = tpu.matmul %44, %46, %cst_42 {dimension_numbers = #tpu.dot_dimension_numbers<[1], [0], [0], [1], [0, 0, 1, 1], [], []>} : vector<80x8xbf16>, vector<8x8xbf16>, vector<80x8xf32> -> vector<80x8xf32>
    %48 = arith.addf %42, %47 : vector<80x8xf32>
    %c0_43 = arith.constant 0 : index
    %c22 = arith.constant 22 : index
    %c0_44 = arith.constant 0 : index
    %49 = vector.load %arg2[%c0_43, %c22, %c0_44] : memref<1x110x8xbf16, #tpu.memory_space<vmem>>, vector<1x80x8xbf16>
    %50 = vector.shape_cast %49 : vector<1x80x8xbf16> to vector<80x8xbf16>
    %c8 = arith.constant 8 : index
    %c0_45 = arith.constant 0 : index
    %c0_46 = arith.constant 0 : index
    %51 = vector.load %arg3[%c8, %c0_45, %c0_46] : memref<9x8x8xbf16, #tpu.memory_space<vmem>>, vector<1x8x8xbf16>
    %52 = vector.shape_cast %51 : vector<1x8x8xbf16> to vector<8x8xbf16>
    %cst_47 = arith.constant dense<0.000000e+00> : vector<80x8xf32>
    %53 = tpu.matmul %50, %52, %cst_47 {dimension_numbers = #tpu.dot_dimension_numbers<[1], [0], [0], [1], [0, 0, 1, 1], [], []>} : vector<80x8xbf16>, vector<8x8xbf16>, vector<80x8xf32> -> vector<80x8xf32>
    %54 = arith.addf %48, %53 : vector<80x8xf32>
    %c0_48 = arith.constant 0 : index
    %c0_49 = arith.constant 0 : index
    %55 = vector.load %arg4[%c0_48, %c0_49] : memref<1x8xf32, #tpu.memory_space<vmem>>, vector<1x8xf32>
    %56 = vector.broadcast %55 : vector<1x8xf32> to vector<80x8xf32>
    %57 = arith.addf %54, %56 : vector<80x8xf32>
    %cst_50 = arith.constant 0.000000e+00 : f32
    %58 = vector.broadcast %cst_50 : f32 to vector<80x8xf32>
    %59 = arith.maximumf %57, %58 : vector<80x8xf32>
    %60 = arith.truncf %59 : vector<80x8xf32> to vector<80x8xbf16>
    %c0_51 = arith.constant 0 : index
    %c0_52 = arith.constant 0 : index
    %c0_53 = arith.constant 0 : index
    %61 = vector.load %arg5[%c0_51, %c0_52, %c0_53] : memref<1x80x8xbf16, #tpu.memory_space<vmem>>, vector<1x80x8xbf16>
    %62 = vector.shape_cast %61 : vector<1x80x8xbf16> to vector<80x8xbf16>
    %63 = vector.shape_cast %60 : vector<80x8xbf16> to vector<1x80x8xbf16>
    tpu.vector_store %arg5[%c0_51, %c0_52, %c0_53], %63 {strides = array<i32>} : memref<1x80x8xbf16, #tpu.memory_space<vmem>>, vector<1x80x8xbf16>,
    return
  }
  func.func @transform_0(%arg0: i32, %arg1: i32) -> (i32, i32, i32) {
    %c0_i32 = arith.constant 0 : i32
    %c0_i32_0 = arith.constant 0 : i32
    %c0_i32_1 = arith.constant 0 : i32
    return %arg0, %c0_i32, %c0_i32_0 : i32, i32, i32
  }
  func.func @transform_1(%arg0: i32, %arg1: i32) -> (i32, i32, i32) {
    %c0_i32 = arith.constant 0 : i32
    %c0_i32_0 = arith.constant 0 : i32
    %c0_i32_1 = arith.constant 0 : i32
    return %c0_i32, %c0_i32_0, %arg1 : i32, i32, i32
  }
  func.func @transform_2(%arg0: i32, %arg1: i32) -> (i32, i32) {
    %c0_i32 = arith.constant 0 : i32
    %c0_i32_0 = arith.constant 0 : i32
    return %c0_i32, %arg1 : i32, i32
  }
  func.func @transform_3(%arg0: i32, %arg1: i32) -> (i32, i32, i32) {
    %c0_i32 = arith.constant 0 : i32
    %c0_i32_0 = arith.constant 0 : i32
    return %arg0, %c0_i32, %arg1 : i32, i32, i32
  }
}

</mosaic_0001>

<llo_original>
// kernel: forward.5
$region0: #{forward.5}
  #allocation0 [shape = 'u32[]', space=smem, size = 0x4, offset = 0x4, fixed_abs, tag = 'smem constant byte address 0x4 - core index']
  #allocation1 [shape = 'u32[144,128]{1,0:T(1,128)}', space=vmem, size = 0x12000, scoped, tag = 'internal scratch']
  %s0 = inlined_call_operand.vmem [shape: bf16[2,72,4], index: 0, kind: input, shape index: {}]
  %s1 = inlined_call_operand.vmem [shape: bf16[1,4,8], index: 1, kind: input, shape index: {}]
  %s2 = inlined_call_operand.vmem [shape: f32[1,8], index: 2, kind: input, shape index: {}]
  %s3 = inlined_call_operand.vmem [shape: bf16[2,64,8], index: 3, kind: output, shape index: {}]
  %s4 = sld [smem:[#allocation0]]
  $region45: #{forward.5} parent=0
    _
  %s6 = ssub.s32 1, %s4
  %s7 = scalar_select 0, %s6, %s4
  loop: start=0, step=1, limit=4
  $region2: #{forward.5} parent=0 // loop_pre_header
    _
  $region3: #{forward.5} parent=0 // loop_header
    %s9 = sphi 0, %s13
    %p10 = scmp.ge.s32.totalorder %s9, 4
    %s16 = sphi 0, %s28
    %s17 = sphi 0, %s24
    %s18 = sphi 0, %s16
    %s19 = sphi 0, %s17
    %s20 = sphi 0, %s18
    %s21 = sphi 0, %s19
    %s31 = sphi 0, %s33
    %s34 = sphi 0, %s31
    %s35 = sphi 0, %s34
    %s51 = sphi 0, %s35
    %s57 = sphi 0, %s59
    %s60 = sphi 0, %s57
    %s61 = sphi 0, %s60
    %s77 = sphi 0, %s61
    %s83 = sphi 0, %s85
    %s86 = sphi 0, %s83
    %s87 = sphi 0, %s86
    %s103 = sphi 0, %s87
    %s111 = sphi 0, %s113
    %s114 = sphi 0, %s111
    %s115 = sphi 0, %s114
    %s131 = sphi 0, %s115
  $region4: #{forward.5} parent=0 // loop_header_branch
    %12 = sbr.rel (%p10) target = $region8
  $region5: #{forward.5} parent=0 // loop_body
    %s14 = ssub.s32 %s9, 1
    %s15 = ssub.s32 %s9, 2
    %s22 = sadd.s32 1, %s17
    %p23 = scmp.ge.s32.totalorder %s22, 1
    %s24 = scalar_select %p23, 0, %s22
    %s25 = sadd.s32 1, %s16
    %s26 = scalar_select %p23, %s25, %s16
    %p27 = scmp.ge.s32.totalorder %s26, 2
    %s28 = scalar_select %p27, 0, %s26
    %s29 = ssub.s32 %s16, %s28
    %p30 = scmp.eq.s32.totalorder %s29, 0
    %s32 = sadd.s32 %s31, 1
    %s33 = scalar_select %p30, %s31, %s32
    %p36 = pneg %p30
    %p37 = scmp.eq.s32.totalorder %s9, 1
    %p38 = por %p36, %p37
    %p39 = scmp.ne.s32.totalorder %s31, %s34
    %p40 = scmp.eq.s32.totalorder %s9, 0
    %p41 = por %p39, %p40
    %p42 = scmp.ne.s32.totalorder %s31, %s34
    %p43 = scmp.eq.s32.totalorder %s14, 1
    %p44 = por %p42, %p43
    %p45 = scmp.ne.s32.totalorder %s34, %s35
    %p46 = scmp.eq.s32.totalorder %s14, 0
    %p47 = por %p45, %p46
    %p48 = scmp.ne.s32.totalorder %s34, %s35
    %p49 = scmp.eq.s32.totalorder %s15, 1
    %p50 = por %p48, %p49
    %p52 = scmp.ne.s32.totalorder %s35, %s51
    %p53 = scmp.eq.s32.totalorder %s15, 0
    %p54 = por %p52, %p53
    %s55 = ssub.s32 %s17, %s24
    %p56 = scmp.eq.s32.totalorder %s55, 0
    %s58 = sadd.s32 %s57, 1
    %s59 = scalar_select %p56, %s57, %s58
    %p62 = pneg %p56
    %p63 = scmp.eq.s32.totalorder %s9, 1
    %p64 = por %p62, %p63
    %p65 = scmp.ne.s32.totalorder %s57, %s60
    %p66 = scmp.eq.s32.totalorder %s9, 0
    %p67 = por %p65, %p66
    %p68 = scmp.ne.s32.totalorder %s57, %s60
    %p69 = scmp.eq.s32.totalorder %s14, 1
    %p70 = por %p68, %p69
    %p71 = scmp.ne.s32.totalorder %s60, %s61
    %p72 = scmp.eq.s32.totalorder %s14, 0
    %p73 = por %p71, %p72
    %p74 = scmp.ne.s32.totalorder %s60, %s61
    %p75 = scmp.eq.s32.totalorder %s15, 1
    %p76 = por %p74, %p75
    %p78 = scmp.ne.s32.totalorder %s61, %s77
    %p79 = scmp.eq.s32.totalorder %s15, 0
    %p80 = por %p78, %p79
    %s81 = ssub.s32 %s17, %s24
    %p82 = scmp.eq.s32.totalorder %s81, 0
    %s84 = sadd.s32 %s83, 1
    %s85 = scalar_select %p82, %s83, %s84
    %p88 = pneg %p82
    %p89 = scmp.eq.s32.totalorder %s9, 1
    %p90 = por %p88, %p89
    %p91 = scmp.ne.s32.totalorder %s83, %s86
    %p92 = scmp.eq.s32.totalorder %s9, 0
    %p93 = por %p91, %p92
    %p94 = scmp.ne.s32.totalorder %s83, %s86
    %p95 = scmp.eq.s32.totalorder %s14, 1
    %p96 = por %p94, %p95
    %p97 = scmp.ne.s32.totalorder %s86, %s87
    %p98 = scmp.eq.s32.totalorder %s14, 0
    %p99 = por %p97, %p98
    %p100 = scmp.ne.s32.totalorder %s86, %s87
    %p101 = scmp.eq.s32.totalorder %s15, 1
    %p102 = por %p100, %p101
    %p104 = scmp.ne.s32.totalorder %s87, %s103
    %p105 = scmp.eq.s32.totalorder %s15, 0
    %p106 = por %p104, %p105
    %s107 = ssub.s32 %s16, %s28
    %s108 = ssub.s32 %s17, %s24
    %s109 = sor.u32 %s107, %s108
    %p110 = scmp.eq.s32.totalorder %s109, 0
    %s112 = sadd.s32 %s111, 1
    %s113 = scalar_select %p110, %s111, %s112
    %p116 = pneg %p110
    %p117 = scmp.eq.s32.totalorder %s9, 1
    %p118 = por %p116, %p117
    %p119 = scmp.ne.s32.totalorder %s111, %s114
    %p120 = scmp.eq.s32.totalorder %s9, 0
    %p121 = por %p119, %p120
    %p122 = scmp.ne.s32.totalorder %s111, %s114
    %p123 = scmp.eq.s32.totalorder %s14, 1
    %p124 = por %p122, %p123
    %p125 = scmp.ne.s32.totalorder %s114, %s115
    %p126 = scmp.eq.s32.totalorder %s14, 0
    %p127 = por %p125, %p126
    %p128 = scmp.ne.s32.totalorder %s114, %s115
    %p129 = scmp.eq.s32.totalorder %s15, 1
    %p130 = por %p128, %p129
    %p132 = scmp.ne.s32.totalorder %s115, %s131
    %p133 = scmp.eq.s32.totalorder %s15, 0
    %p134 = por %p132, %p133
    %p135 = scmp.le.s32.totalorder 1, %s9
    %p136 = scmp.lt.s32.totalorder %s9, 3
    %p137 = pnand %p135, %p136
    %p138 = pneg %p137
    // Predicated region
    $region9: #{forward.5} parent=5 // pred_check
      _
    $region10: #{forward.5} parent=5 // pred_check_branch
      %140 = sbr.rel (%p137) target = $region12
    $region11: #{forward.5} parent=5 // pred_region
      %s141 = ssub.s32 %s9, 1
      // Predicated region
      $region13: #{forward.5} parent=11 // pred_check
        %p142 = pneg %p73
      $region14: #{forward.5} parent=11 // pred_check_branch
        %144 = sbr.rel (%p142) target = $region16
      $region15: #{forward.5} parent=11 // pred_region
        %p145 = scmp.lt.s32.totalorder %s19, 0
        %s146 = scalar_select %p145, %s19, 0
        %s147 = smul.addr %s146, 2
        %s148 = scalar_lea.vmem %s1, %s147
      $region16: #{forward.5} parent=11 // pred_fallthru
        _
      // Predicated region
      $region17: #{forward.5} parent=11 // pred_check
        %p149 = pneg %p99
      $region18: #{forward.5} parent=11 // pred_check_branch
        %151 = sbr.rel (%p149) target = $region20
      $region19: #{forward.5} parent=11 // pred_region
        %p152 = scmp.lt.s32.totalorder %s19, 0
        %s153 = scalar_select %p152, %s19, 0
        %s154 = scalar_lea.vmem %s2, %s153
      $region20: #{forward.5} parent=11 // pred_fallthru
        _
    $region12: #{forward.5} parent=5 // pred_fallthru
      _
    %p155 = scmp.lt.s32.totalorder %s9, 2
    // Predicated region
    $region21: #{forward.5} parent=5 // pred_check
      %p156 = pneg %p155
    $region22: #{forward.5} parent=5 // pred_check_branch
      %158 = sbr.rel (%p156) target = $region24
    $region23: #{forward.5} parent=5 // pred_region
      // Predicated region
      $region25: #{forward.5} parent=23 // pred_check
        %p159 = pneg %p41
      $region26: #{forward.5} parent=23 // pred_check_branch
        %161 = sbr.rel (%p159) target = $region28
      $region27: #{forward.5} parent=23 // pred_region
        %p162 = scmp.lt.s32.totalorder %s16, 1
        %s163 = scalar_select %p162, %s16, 1
        %s164 = smul.addr %s163, 9
        %s165 = smul.addr %s164, 4
        %s166 = scalar_lea.vmem %s0, %s165
      $region28: #{forward.5} parent=23 // pred_fallthru
        _
    $region24: #{forward.5} parent=5 // pred_fallthru
      _
    %p167 = scmp.le.s32.totalorder 1, %s9
    %p168 = scmp.lt.s32.totalorder %s9, 3
    %p169 = pnand %p167, %p168
    %p170 = pneg %p169
    // Predicated region
    $region29: #{forward.5} parent=5 // pred_check
      _
    $region30: #{forward.5} parent=5 // pred_check_branch
      %172 = sbr.rel (%p169) target = $region32
    $region31: #{forward.5} parent=5 // pred_region
      %s173 = ssub.s32 %s9, 1
      %p174 = scmp.lt.s32.totalorder %s18, 1
      %s175 = scalar_select %p174, %s18, 1
      %s176 = smul.addr %s175, 9
      %s177 = smul.addr %s176, 4
      %s178 = scalar_lea.vmem %s0, %s177
      %p179 = pneg %p47
      %p180 = pneg %p44
      %p181 = scmp.lt.s32.totalorder %s19, 0
      %s182 = scalar_select %p181, %s19, 0
      %s183 = smul.addr %s182, 2
      %s184 = scalar_lea.vmem %s1, %s183
      %p185 = pneg %p73
      %p186 = pneg %p70
      %p187 = scmp.lt.s32.totalorder %s19, 0
      %s188 = scalar_select %p187, %s19, 0
      %s189 = scalar_lea.vmem %s2, %s188
      %p190 = pneg %p99
      %p191 = pneg %p96
      %p192 = pneg %p127
      %p193 = pneg %p124
      %p194 = scmp.lt.s32.totalorder %s18, 1
      %s195 = scalar_select %p194, %s18, 1
      %p196 = scmp.lt.s32.totalorder %s19, 0
      %s197 = scalar_select %p196, %s19, 0
      %s198 = smul.addr %s195, 8
      %s199 = sadd.s32 %s197, %s198
      %s200 = smul.addr %s199, 4
      %s201 = scalar_lea.vmem %s3, %s200
      %p202 = scmp.lt.s32.totalorder %s18, 1
      %s203 = scalar_select %p202, %s18, 1
      %s204 = smul.addr %s203, 9
      %s205 = smul.addr %s204, 4
      %s206 = scalar_lea.vmem %s0, %s205
      %p207 = scmp.lt.s32.totalorder %s19, 0
      %s208 = scalar_select %p207, %s19, 0
      %s209 = smul.addr %s208, 2
      %s210 = scalar_lea.vmem %s1, %s209
      %p211 = scmp.lt.s32.totalorder %s19, 0
      %s212 = scalar_select %p211, %s19, 0
      %s213 = scalar_lea.vmem %s2, %s212
      %p214 = scmp.lt.s32.totalorder %s18, 1
      %s215 = scalar_select %p214, %s18, 1
      %p216 = scmp.lt.s32.totalorder %s19, 0
      %s217 = scalar_select %p216, %s19, 0
      %s218 = smul.addr %s215, 8
      %s219 = sadd.s32 %s217, %s218
      %s220 = smul.addr %s219, 4
      %s221 = scalar_lea.vmem %s3, %s220
      %v223 = vld [vmem:[%s206] sm:$0xf]
      %v224 = vld [vmem:[%s206 + $0x4] sm:$0xf]
      %v225 = vld [vmem:[%s206 + $0x8] sm:$0xf]
      %v226 = vld [vmem:[%s206 + $0xc] sm:$0xf]
      %v227 = vld [vmem:[%s206 + $0x10] sm:$0xf]
      %v228 = vld [vmem:[%s206 + $0x14] sm:$0xf]
      %v229 = vld [vmem:[%s206 + $0x18] sm:$0xf]
      %v230 = vld [vmem:[%s206 + $0x1c] sm:$0xf]
      %v231 = vld [vmem:[%s210] sm:$0x3]
      %v232 = vld [vmem:[%s213] sm:$0x1]
      %v234 = vlaneseq
      %v235 = vshrl.u32 %v234, 7
      %v236 = vsub.s32 0, %v235
      %v237 = vrot.slane %v232, %v236
      %v247 = vunpack.c.l.b16 %v223
      %v248 = vunpack.c.l.b16 %v224
      %v249 = vunpack.c.l.b16 %v225
      %v250 = vunpack.c.l.b16 %v226
      %v251 = vunpack.c.l.b16 %v227
      %v252 = vunpack.c.l.b16 %v228
      %v253 = vunpack.c.l.b16 %v229
      %v254 = vunpack.c.l.b16 %v230
      %v255 = vpack.c.b16 %v248, %v247
      %v256 = vpack.c.b16 %v250, %v249
      %v257 = vpack.c.b16 %v252, %v251
      %v258 = vpack.c.b16 %v254, %v253
      %vm259 = vcmask 31744
      %v261 = vsel %vm259, %v255, 0
      %v264 = vsel %vm259, %v256, 0
      %v267 = vsel %vm259, %v257, 0
      %v270 = vsel %vm259, %v258, 0
      %vm272 = vcmask 1041408
      %v274 = vsel %vm272, %v231, 0
      %276 = vmatprep.subr.bf16.mxu0 0
      %277 = vmatpush1.bf16.msra.mxu0 0
      %278 = vmatprep.subr.bf16.mxu0 0
      %279 = vmatpush1.bf16.msra.mxu0 0
      %280 = vmatprep.subr.bf16.mxu0 0
      %281 = vmatpush1.bf16.msra.mxu0 0
      %282 = vmatprep.subr.bf16.mxu0 0
      %283 = vmatpush1.bf16.msra.mxu0 0
      %284 = vmatprep.subr.bf16.mxu0 0
      %285 = vmatpush1.bf16.msra.mxu0 0
      %286 = vmatprep.subr.bf16.mxu0 0
      %287 = vmatpush1.bf16.msra.mxu0 0
      %288 = vmatprep.subr.bf16.mxu0 0
      %289 = vmatpush1.bf16.msra.mxu0 0
      %290 = vmatprep.subr.bf16.mxu0 0
      %291 = vmatpush1.bf16.msra.mxu0 %v274
      %292 = vmatprep.subr.bf16.mxu0 0
      %293 = vmatpush2.bf16.msra.mxu0 0
      %294 = vmatprep.subr.bf16.mxu0 0
      %295 = vmatpush2.bf16.msra.mxu0 0
      %296 = vmatprep.subr.bf16.mxu0 0
      %297 = vmatpush2.bf16.msra.mxu0 0
      %298 = vmatprep.subr.bf16.mxu0 0
      %299 = vmatpush2.bf16.msra.mxu0 0
      %300 = vmatprep.subr.bf16.mxu0 0
      %301 = vmatpush2.bf16.msra.mxu0 0
      %302 = vmatprep.subr.bf16.mxu0 0
      %303 = vmatpush2.bf16.msra.mxu0 0
      %304 = vmatprep.subr.bf16.mxu0 0
      %305 = vmatpush2.bf16.msra.mxu0 0
      %306 = vmatprep.subr.bf16.mxu0 0
      %307 = vmatpush2.bf16.msra.mxu0 0
      %308 = vmatprep.mubr.bf16.mxu0 0
      %309 = vmatmul.mubr.bf16.gmra.mxu0 %v261
      %v310 = vpop.f32.mrf.mxu0
      %v311 = vadd.f32 %v237, %v310
      %v312 = vpop.f32.mrf.mxu0
      %v313 = vpop.f32.mrf.mxu0
      %v314 = vadd.f32 %v237, %v313
      %v315 = vpop.f32.mrf.mxu0
      %316 = vmatprep.mubr.bf16.mxu0 0
      %317 = vmatmul.mubr.bf16.gmra.mxu0 %v264
      %v318 = vpop.f32.mrf.mxu0
      %v319 = vadd.f32 %v237, %v318
      %v320 = vpop.f32.mrf.mxu0
      %v321 = vpop.f32.mrf.mxu0
      %v322 = vadd.f32 %v237, %v321
      %v323 = vpop.f32.mrf.mxu0
      %324 = vmatprep.mubr.bf16.mxu0 0
      %325 = vmatmul.mubr.bf16.gmra.mxu0 %v267
      %v326 = vpop.f32.mrf.mxu0
      %v327 = vadd.f32 %v237, %v326
      %v328 = vpop.f32.mrf.mxu0
      %v329 = vpop.f32.mrf.mxu0
      %v330 = vadd.f32 %v237, %v329
      %v331 = vpop.f32.mrf.mxu0
      %332 = vmatprep.mubr.bf16.mxu0 0
      %333 = vmatmul.mubr.bf16.gmra.mxu0 %v270
      %v334 = vpop.f32.mrf.mxu0
      %v335 = vadd.f32 %v237, %v334
      %v336 = vpop.f32.mrf.mxu0
      %v337 = vpop.f32.mrf.mxu0
      %v338 = vadd.f32 %v237, %v337
      %v339 = vpop.f32.mrf.mxu0
      %340 = vdwg.mxu0
      %v341 = vpack.c.bf16 %v314, %v311
      %v342 = vpack.c.bf16 %v322, %v319
      %v343 = vpack.c.bf16 %v330, %v327
      %v344 = vpack.c.bf16 %v338, %v335
      %v349 = vunpack.c.l.b16 %v341
      %v350 = vunpack.c.h.b16 %v341
      %v351 = vunpack.c.l.b16 %v342
      %v352 = vunpack.c.h.b16 %v342
      %v353 = vunpack.c.l.b16 %v343
      %v354 = vunpack.c.h.b16 %v343
      %v355 = vunpack.c.l.b16 %v344
      %v356 = vunpack.c.h.b16 %v344
      %v357 = vpack.c.b16 %v349, %v349
      %v358 = vpack.c.b16 %v350, %v350
      %v359 = vpack.c.b16 %v351, %v351
      %v360 = vpack.c.b16 %v352, %v352
      %v361 = vpack.c.b16 %v353, %v353
      %v362 = vpack.c.b16 %v354, %v354
      %v363 = vpack.c.b16 %v355, %v355
      %v364 = vpack.c.b16 %v356, %v356
      %vm373 = vcmask 60416
      %374 = vst.msk [vmem:[%s221] sm:$0xf] %vm373, %v357
      %375 = vst.msk [vmem:[%s221 + $0x4] sm:$0xf] %vm373, %v358
      %376 = vst.msk [vmem:[%s221 + $0x8] sm:$0xf] %vm373, %v359
      %377 = vst.msk [vmem:[%s221 + $0xc] sm:$0xf] %vm373, %v360
      %378 = vst.msk [vmem:[%s221 + $0x10] sm:$0xf] %vm373, %v361
      %379 = vst.msk [vmem:[%s221 + $0x14] sm:$0xf] %vm373, %v362
      %380 = vst.msk [vmem:[%s221 + $0x18] sm:$0xf] %vm373, %v363
      %381 = vst.msk [vmem:[%s221 + $0x1c] sm:$0xf] %vm373, %v364
      %p382 = scmp.lt.s32.totalorder %s18, 1
      %s383 = scalar_select %p382, %s18, 1
      %p384 = scmp.lt.s32.totalorder %s19, 0
      %s385 = scalar_select %p384, %s19, 0
      %s386 = smul.addr %s383, 8
      %s387 = sadd.s32 %s385, %s386
      %s388 = smul.addr %s387, 4
      %s389 = scalar_lea.vmem %s3, %s388
      // Predicated region
      $region33: #{forward.5} parent=31 // pred_check
        %p390 = pneg %p124
      $region34: #{forward.5} parent=31 // pred_check_branch
        %392 = sbr.rel (%p390) target = $region36
      $region35: #{forward.5} parent=31 // pred_region
        _
      $region36: #{forward.5} parent=31 // pred_fallthru
        _
    $region32: #{forward.5} parent=5 // pred_fallthru
      _
    %p393 = scmp.le.s32.totalorder 2, %s9
    // Predicated region
    $region37: #{forward.5} parent=5 // pred_check
      %p394 = pneg %p393
    $region38: #{forward.5} parent=5 // pred_check_branch
      %396 = sbr.rel (%p394) target = $region40
    $region39: #{forward.5} parent=5 // pred_region
      %s397 = ssub.s32 %s9, 2
      // Predicated region
      $region41: #{forward.5} parent=39 // pred_check
        %p398 = pneg %p130
      $region42: #{forward.5} parent=39 // pred_check_branch
        %400 = sbr.rel (%p398) target = $region44
      $region43: #{forward.5} parent=39 // pred_region
        %p401 = scmp.lt.s32.totalorder %s20, 1
        %s402 = scalar_select %p401, %s20, 1
        %p403 = scmp.lt.s32.totalorder %s21, 0
        %s404 = scalar_select %p403, %s21, 0
        %s405 = smul.addr %s402, 8
        %s406 = sadd.s32 %s404, %s405
        %s407 = smul.addr %s406, 4
        %s408 = scalar_lea.vmem %s3, %s407
      $region44: #{forward.5} parent=39 // pred_fallthru
        _
    $region40: #{forward.5} parent=5 // pred_fallthru
      _
  $region6: #{forward.5} parent=0 // loop_footer
    %s13 = sadd.s32 1, %s9
  $region7: #{forward.5} parent=0 // loop_footer_branch
    %8 = sbr.rel target = $region3
  $region8: #{forward.5} parent=0 // loop_exit
    _

// kernel: forward.6
$region0: #{forward.6}
  #allocation0 [shape = 'u32[]', space=smem, size = 0x4, offset = 0x4, fixed_abs, tag = 'smem constant byte address 0x4 - core index']
  #allocation1 [shape = 'u32[144,128]{1,0:T(1,128)}', space=vmem, size = 0x12000, scoped, tag = 'internal scratch']
  %s0 = inlined_call_operand.vmem [shape: bf16[8,90,4], index: 0, kind: input, shape index: {}]
  %s1 = inlined_call_operand.vmem [shape: bf16[9,4,8], index: 1, kind: input, shape index: {}]
  %s2 = inlined_call_operand.vmem [shape: f32[1,8], index: 2, kind: input, shape index: {}]
  %s3 = inlined_call_operand.vmem [shape: bf16[2,72,8], index: 3, kind: output, shape index: {}]
  %s4 = sld [smem:[#allocation0]]
  $region45: #{forward.6} parent=0
    _
  %s6 = ssub.s32 1, %s4
  %s7 = scalar_select 0, %s6, %s4
  loop: start=0, step=1, limit=4
  $region2: #{forward.6} parent=0 // loop_pre_header
    _
  $region3: #{forward.6} parent=0 // loop_header
    %s9 = sphi 0, %s13
    %p10 = scmp.ge.s32.totalorder %s9, 4
    %s16 = sphi 0, %s28
    %s17 = sphi 0, %s24
    %s18 = sphi 0, %s16
    %s19 = sphi 0, %s17
    %s20 = sphi 0, %s18
    %s21 = sphi 0, %s19
    %s31 = sphi 0, %s33
    %s34 = sphi 0, %s31
    %s35 = sphi 0, %s34
    %s51 = sphi 0, %s35
    %s57 = sphi 0, %s59
    %s60 = sphi 0, %s57
    %s61 = sphi 0, %s60
    %s77 = sphi 0, %s61
    %s83 = sphi 0, %s85
    %s86 = sphi 0, %s83
    %s87 = sphi 0, %s86
    %s103 = sphi 0, %s87
    %s111 = sphi 0, %s113
    %s114 = sphi 0, %s111
    %s115 = sphi 0, %s114
    %s131 = sphi 0, %s115
  $region4: #{forward.6} parent=0 // loop_header_branch
    %12 = sbr.rel (%p10) target = $region8
  $region5: #{forward.6} parent=0 // loop_body
    %s14 = ssub.s32 %s9, 1
    %s15 = ssub.s32 %s9, 2
    %s22 = sadd.s32 1, %s17
    %p23 = scmp.ge.s32.totalorder %s22, 1
    %s24 = scalar_select %p23, 0, %s22
    %s25 = sadd.s32 1, %s16
    %s26 = scalar_select %p23, %s25, %s16
    %p27 = scmp.ge.s32.totalorder %s26, 2
    %s28 = scalar_select %p27, 0, %s26
    %s29 = ssub.s32 %s16, %s28
    %p30 = scmp.eq.s32.totalorder %s29, 0
    %s32 = sadd.s32 %s31, 1
    %s33 = scalar_select %p30, %s31, %s32
    %p36 = pneg %p30
    %p37 = scmp.eq.s32.totalorder %s9, 1
    %p38 = por %p36, %p37
    %p39 = scmp.ne.s32.totalorder %s31, %s34
    %p40 = scmp.eq.s32.totalorder %s9, 0
    %p41 = por %p39, %p40
    %p42 = scmp.ne.s32.totalorder %s31, %s34
    %p43 = scmp.eq.s32.totalorder %s14, 1
    %p44 = por %p42, %p43
    %p45 = scmp.ne.s32.totalorder %s34, %s35
    %p46 = scmp.eq.s32.totalorder %s14, 0
    %p47 = por %p45, %p46
    %p48 = scmp.ne.s32.totalorder %s34, %s35
    %p49 = scmp.eq.s32.totalorder %s15, 1
    %p50 = por %p48, %p49
    %p52 = scmp.ne.s32.totalorder %s35, %s51
    %p53 = scmp.eq.s32.totalorder %s15, 0
    %p54 = por %p52, %p53
    %s55 = ssub.s32 %s17, %s24
    %p56 = scmp.eq.s32.totalorder %s55, 0
    %s58 = sadd.s32 %s57, 1
    %s59 = scalar_select %p56, %s57, %s58
    %p62 = pneg %p56
    %p63 = scmp.eq.s32.totalorder %s9, 1
    %p64 = por %p62, %p63
    %p65 = scmp.ne.s32.totalorder %s57, %s60
    %p66 = scmp.eq.s32.totalorder %s9, 0
    %p67 = por %p65, %p66
    %p68 = scmp.ne.s32.totalorder %s57, %s60
    %p69 = scmp.eq.s32.totalorder %s14, 1
    %p70 = por %p68, %p69
    %p71 = scmp.ne.s32.totalorder %s60, %s61
    %p72 = scmp.eq.s32.totalorder %s14, 0
    %p73 = por %p71, %p72
    %p74 = scmp.ne.s32.totalorder %s60, %s61
    %p75 = scmp.eq.s32.totalorder %s15, 1
    %p76 = por %p74, %p75
    %p78 = scmp.ne.s32.totalorder %s61, %s77
    %p79 = scmp.eq.s32.totalorder %s15, 0
    %p80 = por %p78, %p79
    %s81 = ssub.s32 %s17, %s24
    %p82 = scmp.eq.s32.totalorder %s81, 0
    %s84 = sadd.s32 %s83, 1
    %s85 = scalar_select %p82, %s83, %s84
    %p88 = pneg %p82
    %p89 = scmp.eq.s32.totalorder %s9, 1
    %p90 = por %p88, %p89
    %p91 = scmp.ne.s32.totalorder %s83, %s86
    %p92 = scmp.eq.s32.totalorder %s9, 0
    %p93 = por %p91, %p92
    %p94 = scmp.ne.s32.totalorder %s83, %s86
    %p95 = scmp.eq.s32.totalorder %s14, 1
    %p96 = por %p94, %p95
    %p97 = scmp.ne.s32.totalorder %s86, %s87
    %p98 = scmp.eq.s32.totalorder %s14, 0
    %p99 = por %p97, %p98
    %p100 = scmp.ne.s32.totalorder %s86, %s87
    %p101 = scmp.eq.s32.totalorder %s15, 1
    %p102 = por %p100, %p101
    %p104 = scmp.ne.s32.totalorder %s87, %s103
    %p105 = scmp.eq.s32.totalorder %s15, 0
    %p106 = por %p104, %p105
    %s107 = ssub.s32 %s16, %s28
    %s108 = ssub.s32 %s17, %s24
    %s109 = sor.u32 %s107, %s108
    %p110 = scmp.eq.s32.totalorder %s109, 0
    %s112 = sadd.s32 %s111, 1
    %s113 = scalar_select %p110, %s111, %s112
    %p116 = pneg %p110
    %p117 = scmp.eq.s32.totalorder %s9, 1
    %p118 = por %p116, %p117
    %p119 = scmp.ne.s32.totalorder %s111, %s114
    %p120 = scmp.eq.s32.totalorder %s9, 0
    %p121 = por %p119, %p120
    %p122 = scmp.ne.s32.totalorder %s111, %s114
    %p123 = scmp.eq.s32.totalorder %s14, 1
    %p124 = por %p122, %p123
    %p125 = scmp.ne.s32.totalorder %s114, %s115
    %p126 = scmp.eq.s32.totalorder %s14, 0
    %p127 = por %p125, %p126
    %p128 = scmp.ne.s32.totalorder %s114, %s115
    %p129 = scmp.eq.s32.totalorder %s15, 1
    %p130 = por %p128, %p129
    %p132 = scmp.ne.s32.totalorder %s115, %s131
    %p133 = scmp.eq.s32.totalorder %s15, 0
    %p134 = por %p132, %p133
    %p135 = scmp.le.s32.totalorder 1, %s9
    %p136 = scmp.lt.s32.totalorder %s9, 3
    %p137 = pnand %p135, %p136
    %p138 = pneg %p137
    // Predicated region
    $region9: #{forward.6} parent=5 // pred_check
      _
    $region10: #{forward.6} parent=5 // pred_check_branch
      %140 = sbr.rel (%p137) target = $region12
    $region11: #{forward.6} parent=5 // pred_region
      %s141 = ssub.s32 %s9, 1
      // Predicated region
      $region13: #{forward.6} parent=11 // pred_check
        %p142 = pneg %p73
      $region14: #{forward.6} parent=11 // pred_check_branch
        %144 = sbr.rel (%p142) target = $region16
      $region15: #{forward.6} parent=11 // pred_region
        %p145 = scmp.lt.s32.totalorder %s19, 0
        %s146 = scalar_select %p145, %s19, 0
        %s147 = smul.addr %s146, 2
        %s148 = scalar_lea.vmem %s1, %s147
      $region16: #{forward.6} parent=11 // pred_fallthru
        _
      // Predicated region
      $region17: #{forward.6} parent=11 // pred_check
        %p149 = pneg %p99
      $region18: #{forward.6} parent=11 // pred_check_branch
        %151 = sbr.rel (%p149) target = $region20
      $region19: #{forward.6} parent=11 // pred_region
        %p152 = scmp.lt.s32.totalorder %s19, 0
        %s153 = scalar_select %p152, %s19, 0
        %s154 = scalar_lea.vmem %s2, %s153
      $region20: #{forward.6} parent=11 // pred_fallthru
        _
    $region12: #{forward.6} parent=5 // pred_fallthru
      _
    %p155 = scmp.lt.s32.totalorder %s9, 2
    // Predicated region
    $region21: #{forward.6} parent=5 // pred_check
      %p156 = pneg %p155
    $region22: #{forward.6} parent=5 // pred_check_branch
      %158 = sbr.rel (%p156) target = $region24
    $region23: #{forward.6} parent=5 // pred_region
      // Predicated region
      $region25: #{forward.6} parent=23 // pred_check
        %p159 = pneg %p41
      $region26: #{forward.6} parent=23 // pred_check_branch
        %161 = sbr.rel (%p159) target = $region28
      $region27: #{forward.6} parent=23 // pred_region
        %s162 = smul.u32 4, %s16
        %p163 = scmp.lt.s32.totalorder %s162, 7
        %s164 = scalar_select %p163, %s162, 7
        %s165 = smul.addr %s164, 12
        %s166 = smul.addr %s165, 4
        %s167 = scalar_lea.vmem %s0, %s166
        %s168 = smul.u32 4, %s16
      $region28: #{forward.6} parent=23 // pred_fallthru
        _
    $region24: #{forward.6} parent=5 // pred_fallthru
      _
    %p169 = scmp.le.s32.totalorder 1, %s9
    %p170 = scmp.lt.s32.totalorder %s9, 3
    %p171 = pnand %p169, %p170
    %p172 = pneg %p171
    // Predicated region
    $region29: #{forward.6} parent=5 // pred_check
      _
    $region30: #{forward.6} parent=5 // pred_check_branch
      %174 = sbr.rel (%p171) target = $region32
    $region31: #{forward.6} parent=5 // pred_region
      %s175 = ssub.s32 %s9, 1
      %s176 = smul.u32 4, %s18
      %p177 = scmp.lt.s32.totalorder %s176, 7
      %s178 = scalar_select %p177, %s176, 7
      %s179 = smul.addr %s178, 12
      %s180 = smul.addr %s179, 4
      %s181 = scalar_lea.vmem %s0, %s180
      %p182 = pneg %p47
      %p183 = pneg %p44
      %p184 = scmp.lt.s32.totalorder %s19, 0
      %s185 = scalar_select %p184, %s19, 0
      %s186 = smul.addr %s185, 2
      %s187 = scalar_lea.vmem %s1, %s186
      %p188 = pneg %p73
      %p189 = pneg %p70
      %p190 = scmp.lt.s32.totalorder %s19, 0
      %s191 = scalar_select %p190, %s19, 0
      %s192 = scalar_lea.vmem %s2, %s191
      %p193 = pneg %p99
      %p194 = pneg %p96
      %p195 = pneg %p127
      %p196 = pneg %p124
      %p197 = scmp.lt.s32.totalorder %s18, 1
      %s198 = scalar_select %p197, %s18, 1
      %p199 = scmp.lt.s32.totalorder %s19, 0
      %s200 = scalar_select %p199, %s19, 0
      %s201 = smul.addr %s198, 9
      %s202 = sadd.s32 %s200, %s201
      %s203 = smul.addr %s202, 4
      %s204 = scalar_lea.vmem %s3, %s203
      %s205 = smul.u32 4, %s18
      %p206 = scmp.lt.s32.totalorder %s205, 7
      %s207 = scalar_select %p206, %s205, 7
      %s208 = smul.addr %s207, 12
      %s209 = smul.addr %s208, 4
      %s210 = scalar_lea.vmem %s0, %s209
      %s211 = smul.u32 4, %s18
      %p212 = scmp.lt.s32.totalorder %s19, 0
      %s213 = scalar_select %p212, %s19, 0
      %s214 = smul.addr %s213, 2
      %s215 = scalar_lea.vmem %s1, %s214
      %p216 = scmp.lt.s32.totalorder %s19, 0
      %s217 = scalar_select %p216, %s19, 0
      %s218 = scalar_lea.vmem %s2, %s217
      %p219 = scmp.lt.s32.totalorder %s18, 1
      %s220 = scalar_select %p219, %s18, 1
      %p221 = scmp.lt.s32.totalorder %s19, 0
      %s222 = scalar_select %p221, %s19, 0
      %s223 = smul.addr %s220, 9
      %s224 = sadd.s32 %s222, %s223
      %s225 = smul.addr %s224, 4
      %s226 = scalar_lea.vmem %s3, %s225
      %v228 = vld [vmem:[%s210] sm:$0xf]
      %v229 = vld [vmem:[%s210 + $0x4] sm:$0xf]
      %v230 = vld [vmem:[%s210 + $0x8] sm:$0xf]
      %v231 = vld [vmem:[%s210 + $0xc] sm:$0xf]
      %v232 = vld [vmem:[%s210 + $0x10] sm:$0xf]
      %v233 = vld [vmem:[%s210 + $0x14] sm:$0xf]
      %v234 = vld [vmem:[%s210 + $0x18] sm:$0xf]
      %v235 = vld [vmem:[%s210 + $0x1c] sm:$0xf]
      %v236 = vld [vmem:[%s210 + $0x20] sm:$0xf]
      %v237 = vld [vmem:[%s215] sm:$0x3]
      %s238 = scalar_lea.vmem %s210, 48
      %v239 = vld [vmem:[%s238] sm:$0xf]
      %v240 = vld [vmem:[%s238 + $0x4] sm:$0xf]
      %v241 = vld [vmem:[%s238 + $0x8] sm:$0xf]
      %v242 = vld [vmem:[%s238 + $0xc] sm:$0xf]
      %v243 = vld [vmem:[%s238 + $0x10] sm:$0xf]
      %v244 = vld [vmem:[%s238 + $0x14] sm:$0xf]
      %v245 = vld [vmem:[%s238 + $0x18] sm:$0xf]
      %v246 = vld [vmem:[%s238 + $0x1c] sm:$0xf]
      %v247 = vld [vmem:[%s238 + $0x20] sm:$0xf]
      %s248 = scalar_lea.vmem %s215, 2
      %v249 = vld [vmem:[%s248] sm:$0x3]
      %v259 = vunpack.c.l.b16 %v239
      %v260 = vunpack.c.l.b16 %v240
      %v261 = vunpack.c.l.b16 %v241
      %v262 = vunpack.c.l.b16 %v242
      %v263 = vunpack.c.l.b16 %v243
      %v264 = vunpack.c.l.b16 %v244
      %v265 = vunpack.c.l.b16 %v245
      %v266 = vunpack.c.l.b16 %v246
      %v267 = vunpack.c.l.b16 %v247
      %v268 = vpack.c.b16 %v260, %v259
      %v269 = vpack.c.b16 %v262, %v261
      %v270 = vpack.c.b16 %v264, %v263
      %v271 = vpack.c.b16 %v266, %v265
      %v272 = vpack.c.b16 %v267, %v267
      %vm273 = vcmask 31744
      %v275 = vsel %vm273, %v268, 0
      %v278 = vsel %vm273, %v269, 0
      %v281 = vsel %vm273, %v270, 0
      %v284 = vsel %vm273, %v271, 0
      %v287 = vsel %vm273, %v272, 0
      %vm289 = vcmask 1041408
      %v291 = vsel %vm289, %v249, 0
      %293 = vmatprep.subr.bf16.mxu0 0
      %294 = vmatpush1.bf16.msra.mxu0 0
      %295 = vmatprep.subr.bf16.mxu0 0
      %296 = vmatpush1.bf16.msra.mxu0 0
      %297 = vmatprep.subr.bf16.mxu0 0
      %298 = vmatpush1.bf16.msra.mxu0 0
      %299 = vmatprep.subr.bf16.mxu0 0
      %300 = vmatpush1.bf16.msra.mxu0 0
      %301 = vmatprep.subr.bf16.mxu0 0
      %302 = vmatpush1.bf16.msra.mxu0 0
      %303 = vmatprep.subr.bf16.mxu0 0
      %304 = vmatpush1.bf16.msra.mxu0 0
      %305 = vmatprep.subr.bf16.mxu0 0
      %306 = vmatpush1.bf16.msra.mxu0 0
      %307 = vmatprep.subr.bf16.mxu0 0
      %308 = vmatpush1.bf16.msra.mxu0 %v291
      %309 = vmatprep.subr.bf16.mxu0 0
      %310 = vmatpush2.bf16.msra.mxu0 0
      %311 = vmatprep.subr.bf16.mxu0 0
      %312 = vmatpush2.bf16.msra.mxu0 0
      %313 = vmatprep.subr.bf16.mxu0 0
      %314 = vmatpush2.bf16.msra.mxu0 0
      %315 = vmatprep.subr.bf16.mxu0 0
      %316 = vmatpush2.bf16.msra.mxu0 0
      %317 = vmatprep.subr.bf16.mxu0 0
      %318 = vmatpush2.bf16.msra.mxu0 0
      %319 = vmatprep.subr.bf16.mxu0 0
      %320 = vmatpush2.bf16.msra.mxu0 0
      %321 = vmatprep.subr.bf16.mxu0 0
      %322 = vmatpush2.bf16.msra.mxu0 0
      %323 = vmatprep.subr.bf16.mxu0 0
      %324 = vmatpush2.bf16.msra.mxu0 0
      %325 = vmatprep.mubr.bf16.mxu0 0
      %326 = vmatmul.mubr.bf16.gmra.mxu0 %v275
      %v327 = vpop.f32.mrf.mxu0
      %v328 = vadd.f32 0.0, %v327
      %v329 = vpop.f32.mrf.mxu0
      %v330 = vpop.f32.mrf.mxu0
      %v331 = vadd.f32 0.0, %v330
      %v332 = vpop.f32.mrf.mxu0
      %333 = vmatprep.mubr.bf16.mxu0 0
      %334 = vmatmul.mubr.bf16.gmra.mxu0 %v278
      %v335 = vpop.f32.mrf.mxu0
      %v336 = vadd.f32 0.0, %v335
      %v337 = vpop.f32.mrf.mxu0
      %v338 = vpop.f32.mrf.mxu0
      %v339 = vadd.f32 0.0, %v338
      %v340 = vpop.f32.mrf.mxu0
      %341 = vmatprep.mubr.bf16.mxu0 0
      %342 = vmatmul.mubr.bf16.gmra.mxu0 %v281
      %v343 = vpop.f32.mrf.mxu0
      %v344 = vadd.f32 0.0, %v343
      %v345 = vpop.f32.mrf.mxu0
      %v346 = vpop.f32.mrf.mxu0
      %v347 = vadd.f32 0.0, %v346
      %v348 = vpop.f32.mrf.mxu0
      %349 = vmatprep.mubr.bf16.mxu0 0
      %350 = vmatmul.mubr.bf16.gmra.mxu0 %v284
      %v351 = vpop.f32.mrf.mxu0
      %v352 = vadd.f32 0.0, %v351
      %v353 = vpop.f32.mrf.mxu0
      %v354 = vpop.f32.mrf.mxu0
      %v355 = vadd.f32 0.0, %v354
      %v356 = vpop.f32.mrf.mxu0
      %357 = vmatprep.mubr.bf16.mxu0 0
      %358 = vmatmul.mubr.bf16.gmra.mxu0 %v287
      %v359 = vpop.f32.mrf.mxu0
      %v360 = vadd.f32 0.0, %v359
      %v361 = vpop.f32.mrf.mxu0
      %v362 = vpop.f32.mrf.mxu0
      %v363 = vpop.f32.mrf.mxu0
      %364 = vdwg.mxu0
      %v374 = vunpack.c.l.b16 %v228
      %v375 = vunpack.c.l.b16 %v229
      %v376 = vunpack.c.l.b16 %v230
      %v377 = vunpack.c.l.b16 %v231
      %v378 = vunpack.c.l.b16 %v232
      %v379 = vunpack.c.l.b16 %v233
      %v380 = vunpack.c.l.b16 %v234
      %v381 = vunpack.c.l.b16 %v235
      %v382 = vunpack.c.l.b16 %v236
      %v383 = vpack.c.b16 %v375, %v374
      %v384 = vpack.c.b16 %v377, %v376
      %v385 = vpack.c.b16 %v379, %v378
      %v386 = vpack.c.b16 %v381, %v380
      %v387 = vpack.c.b16 %v382, %v382
      %v389 = vsel %vm273, %v383, 0
      %v392 = vsel %vm273, %v384, 0
      %v395 = vsel %vm273, %v385, 0
      %v398 = vsel %vm273, %v386, 0
      %v401 = vsel %vm273, %v387, 0
      %v404 = vsel %vm289, %v237, 0
      %406 = vmatprep.subr.bf16.mxu0 0
      %407 = vmatpush1.bf16.msra.mxu0 0
      %408 = vmatprep.subr.bf16.mxu0 0
      %409 = vmatpush1.bf16.msra.mxu0 0
      %410 = vmatprep.subr.bf16.mxu0 0
      %411 = vmatpush1.bf16.msra.mxu0 0
      %412 = vmatprep.subr.bf16.mxu0 0
      %413 = vmatpush1.bf16.msra.mxu0 0
      %414 = vmatprep.subr.bf16.mxu0 0
      %415 = vmatpush1.bf16.msra.mxu0 0
      %416 = vmatprep.subr.bf16.mxu0 0
      %417 = vmatpush1.bf16.msra.mxu0 0
      %418 = vmatprep.subr.bf16.mxu0 0
      %419 = vmatpush1.bf16.msra.mxu0 0
      %420 = vmatprep.subr.bf16.mxu0 0
      %421 = vmatpush1.bf16.msra.mxu0 %v404
      %422 = vmatprep.subr.bf16.mxu0 0
      %423 = vmatpush2.bf16.msra.mxu0 0
      %424 = vmatprep.subr.bf16.mxu0 0
      %425 = vmatpush2.bf16.msra.mxu0 0
      %426 = vmatprep.subr.bf16.mxu0 0
      %427 = vmatpush2.bf16.msra.mxu0 0
      %428 = vmatprep.subr.bf16.mxu0 0
      %429 = vmatpush2.bf16.msra.mxu0 0
      %430 = vmatprep.subr.bf16.mxu0 0
      %431 = vmatpush2.bf16.msra.mxu0 0
      %432 = vmatprep.subr.bf16.mxu0 0
      %433 = vmatpush2.bf16.msra.mxu0 0
      %434 = vmatprep.subr.bf16.mxu0 0
      %435 = vmatpush2.bf16.msra.mxu0 0
      %436 = vmatprep.subr.bf16.mxu0 0
      %437 = vmatpush2.bf16.msra.mxu0 0
      %438 = vmatprep.mubr.bf16.mxu0 0
      %439 = vmatmul.mubr.bf16.gmra.mxu0 %v389
      %v440 = vpop.f32.mrf.mxu0
      %v441 = vadd.f32 %v328, %v440
      %v442 = vpop.f32.mrf.mxu0
      %v443 = vpop.f32.mrf.mxu0
      %v444 = vadd.f32 %v331, %v443
      %v445 = vpop.f32.mrf.mxu0
      %446 = vmatprep.mubr.bf16.mxu0 0
      %447 = vmatmul.mubr.bf16.gmra.mxu0 %v392
      %v448 = vpop.f32.mrf.mxu0
      %v449 = vadd.f32 %v336, %v448
      %v450 = vpop.f32.mrf.mxu0
      %v451 = vpop.f32.mrf.mxu0
      %v452 = vadd.f32 %v339, %v451
      %v453 = vpop.f32.mrf.mxu0
      %454 = vmatprep.mubr.bf16.mxu0 0
      %455 = vmatmul.mubr.bf16.gmra.mxu0 %v395
      %v456 = vpop.f32.mrf.mxu0
      %v457 = vadd.f32 %v344, %v456
      %v458 = vpop.f32.mrf.mxu0
      %v459 = vpop.f32.mrf.mxu0
      %v460 = vadd.f32 %v347, %v459
      %v461 = vpop.f32.mrf.mxu0
      %462 = vmatprep.mubr.bf16.mxu0 0
      %463 = vmatmul.mubr.bf16.gmra.mxu0 %v398
      %v464 = vpop.f32.mrf.mxu0
      %v465 = vadd.f32 %v352, %v464
      %v466 = vpop.f32.mrf.mxu0
      %v467 = vpop.f32.mrf.mxu0
      %v468 = vadd.f32 %v355, %v467
      %v469 = vpop.f32.mrf.mxu0
      %470 = vmatprep.mubr.bf16.mxu0 0
      %471 = vmatmul.mubr.bf16.gmra.mxu0 %v401
      %v472 = vpop.f32.mrf.mxu0
      %v473 = vadd.f32 %v360, %v472
      %v474 = vpop.f32.mrf.mxu0
      %v475 = vpop.f32.mrf.mxu0
      %v476 = vpop.f32.mrf.mxu0
      %477 = vdwg.mxu0
      %v478 = vld [vmem:[%s210] sm:$0xf]
      %v479 = vld [vmem:[%s210 + $0x4] sm:$0xf]
      %v480 = vld [vmem:[%s210 + $0x8] sm:$0xf]
      %v481 = vld [vmem:[%s210 + $0xc] sm:$0xf]
      %v482 = vld [vmem:[%s210 + $0x10] sm:$0xf]
      %v483 = vld [vmem:[%s210 + $0x14] sm:$0xf]
      %v484 = vld [vmem:[%s210 + $0x18] sm:$0xf]
      %v485 = vld [vmem:[%s210 + $0x1c] sm:$0xf]
      %v486 = vld [vmem:[%s210 + $0x20] sm:$0xf]
      %v487 = vld [vmem:[%s210 + $0x24] sm:$0x1]
      %s488 = scalar_lea.vmem %s215, 4
      %v489 = vld [vmem:[%s488] sm:$0x3]
      %v500 = vunpack.c.l.b16 %v478
      %v501 = vunpack.c.l.b16 %v479
      %v502 = vunpack.c.l.b16 %v480
      %v503 = vunpack.c.l.b16 %v481
      %v504 = vunpack.c.l.b16 %v482
      %v505 = vunpack.c.l.b16 %v483
      %v506 = vunpack.c.l.b16 %v484
      %v507 = vunpack.c.l.b16 %v485
      %v508 = vunpack.c.l.b16 %v486
      %v509 = vunpack.c.l.b16 %v487
      %v510 = vpack.c.b16 %v501, %v500
      %v511 = vpack.c.b16 %v503, %v502
      %v512 = vpack.c.b16 %v505, %v504
      %v513 = vpack.c.b16 %v507, %v506
      %v514 = vpack.c.b16 %v509, %v508
      %vm515 = vsmask.f32 7424
      %v517 = vshrl.u32 %v510, 16
      %v519 = vshll.u32 %v510, 16
      %v521 = vrot.slane %v519, 1
      %v522 = vor.u32 %v517, %v521
      %v524 = vshll.u32 %v511, 16
      %v526 = vrot.slane %v524, 1
      %v527 = vsel %vm515, %v522, %v526
      %v528 = vshrl.u32 %v511, 16
      %v530 = vor.u32 %v528, %v526
      %v532 = vshll.u32 %v512, 16
      %v534 = vrot.slane %v532, 1
      %v535 = vsel %vm515, %v530, %v534
      %v536 = vshrl.u32 %v512, 16
      %v538 = vor.u32 %v536, %v534
      %v540 = vshll.u32 %v513, 16
      %v542 = vrot.slane %v540, 1
      %v543 = vsel %vm515, %v538, %v542
      %v544 = vshrl.u32 %v513, 16
      %v546 = vor.u32 %v544, %v542
      %v548 = vshll.u32 %v514, 16
      %v550 = vrot.slane %v548, 1
      %v551 = vsel %vm515, %v546, %v550
      %v552 = vshrl.u32 %v514, 16
      %v554 = vor.u32 %v552, %v550
      %v556 = vsel %vm273, %v527, 0
      %v559 = vsel %vm273, %v535, 0
      %v562 = vsel %vm273, %v543, 0
      %v565 = vsel %vm273, %v551, 0
      %v568 = vsel %vm273, %v554, 0
      %v571 = vsel %vm289, %v489, 0
      %573 = vmatprep.subr.bf16.mxu0 0
      %574 = vmatpush1.bf16.msra.mxu0 0
      %575 = vmatprep.subr.bf16.mxu0 0
      %576 = vmatpush1.bf16.msra.mxu0 0
      %577 = vmatprep.subr.bf16.mxu0 0
      %578 = vmatpush1.bf16.msra.mxu0 0
      %579 = vmatprep.subr.bf16.mxu0 0
      %580 = vmatpush1.bf16.msra.mxu0 0
      %581 = vmatprep.subr.bf16.mxu0 0
      %582 = vmatpush1.bf16.msra.mxu0 0
      %583 = vmatprep.subr.bf16.mxu0 0
      %584 = vmatpush1.bf16.msra.mxu0 0
      %585 = vmatprep.subr.bf16.mxu0 0
      %586 = vmatpush1.bf16.msra.mxu0 0
      %587 = vmatprep.subr.bf16.mxu0 0
      %588 = vmatpush1.bf16.msra.mxu0 %v571
      %589 = vmatprep.subr.bf16.mxu0 0
      %590 = vmatpush2.bf16.msra.mxu0 0
      %591 = vmatprep.subr.bf16.mxu0 0
      %592 = vmatpush2.bf16.msra.mxu0 0
      %593 = vmatprep.subr.bf16.mxu0 0
      %594 = vmatpush2.bf16.msra.mxu0 0
      %595 = vmatprep.subr.bf16.mxu0 0
      %596 = vmatpush2.bf16.msra.mxu0 0
      %597 = vmatprep.subr.bf16.mxu0 0
      %598 = vmatpush2.bf16.msra.mxu0 0
      %599 = vmatprep.subr.bf16.mxu0 0
      %600 = vmatpush2.bf16.msra.mxu0 0
      %601 = vmatprep.subr.bf16.mxu0 0
      %602 = vmatpush2.bf16.msra.mxu0 0
      %603 = vmatprep.subr.bf16.mxu0 0
      %604 = vmatpush2.bf16.msra.mxu0 0
      %605 = vmatprep.mubr.bf16.mxu0 0
      %606 = vmatmul.mubr.bf16.gmra.mxu0 %v556
      %v607 = vpop.f32.mrf.mxu0
      %v608 = vadd.f32 0.0, %v607
      %v609 = vpop.f32.mrf.mxu0
      %v610 = vpop.f32.mrf.mxu0
      %v611 = vadd.f32 0.0, %v610
      %v612 = vpop.f32.mrf.mxu0
      %613 = vmatprep.mubr.bf16.mxu0 0
      %614 = vmatmul.mubr.bf16.gmra.mxu0 %v559
      %v615 = vpop.f32.mrf.mxu0
      %v616 = vadd.f32 0.0, %v615
      %v617 = vpop.f32.mrf.mxu0
      %v618 = vpop.f32.mrf.mxu0
      %v619 = vadd.f32 0.0, %v618
      %v620 = vpop.f32.mrf.mxu0
      %621 = vmatprep.mubr.bf16.mxu0 0
      %622 = vmatmul.mubr.bf16.gmra.mxu0 %v562
      %v623 = vpop.f32.mrf.mxu0
      %v624 = vadd.f32 0.0, %v623
      %v625 = vpop.f32.mrf.mxu0
      %v626 = vpop.f32.mrf.mxu0
      %v627 = vadd.f32 0.0, %v626
      %v628 = vpop.f32.mrf.mxu0
      %629 = vmatprep.mubr.bf16.mxu0 0
      %630 = vmatmul.mubr.bf16.gmra.mxu0 %v565
      %v631 = vpop.f32.mrf.mxu0
      %v632 = vadd.f32 0.0, %v631
      %v633 = vpop.f32.mrf.mxu0
      %v634 = vpop.f32.mrf.mxu0
      %v635 = vadd.f32 0.0, %v634
      %v636 = vpop.f32.mrf.mxu0
      %637 = vmatprep.mubr.bf16.mxu0 0
      %638 = vmatmul.mubr.bf16.gmra.mxu0 %v568
      %v639 = vpop.f32.mrf.mxu0
      %v640 = vadd.f32 0.0, %v639
      %v641 = vpop.f32.mrf.mxu0
      %v642 = vpop.f32.mrf.mxu0
      %v643 = vpop.f32.mrf.mxu0
      %644 = vdwg.mxu0
      %v645 = vadd.f32 %v441, %v608
      %v646 = vadd.f32 %v444, %v611
      %v647 = vadd.f32 %v449, %v616
      %v648 = vadd.f32 %v452, %v619
      %v649 = vadd.f32 %v457, %v624
      %v650 = vadd.f32 %v460, %v627
      %v651 = vadd.f32 %v465, %v632
      %v652 = vadd.f32 %v468, %v635
      %v653 = vadd.f32 %v473, %v640
      %s654 = scalar_lea.vmem %s210, 96
      %v655 = vld [vmem:[%s654] sm:$0xf]
      %v656 = vld [vmem:[%s654 + $0x4] sm:$0xf]
      %v657 = vld [vmem:[%s654 + $0x8] sm:$0xf]
      %v658 = vld [vmem:[%s654 + $0xc] sm:$0xf]
      %v659 = vld [vmem:[%s654 + $0x10] sm:$0xf]
      %v660 = vld [vmem:[%s654 + $0x14] sm:$0xf]
      %v661 = vld [vmem:[%s654 + $0x18] sm:$0xf]
      %v662 = vld [vmem:[%s654 + $0x1c] sm:$0xf]
      %v663 = vld [vmem:[%s654 + $0x20] sm:$0xf]
      %s664 = scalar_lea.vmem %s215, 6
      %v665 = vld [vmem:[%s664] sm:$0x3]
      %v675 = vunpack.c.l.b16 %v655
      %v676 = vunpack.c.l.b16 %v656
      %v677 = vunpack.c.l.b16 %v657
      %v678 = vunpack.c.l.b16 %v658
      %v679 = vunpack.c.l.b16 %v659
      %v680 = vunpack.c.l.b16 %v660
      %v681 = vunpack.c.l.b16 %v661
      %v682 = vunpack.c.l.b16 %v662
      %v683 = vunpack.c.l.b16 %v663
      %v684 = vpack.c.b16 %v676, %v675
      %v685 = vpack.c.b16 %v678, %v677
      %v686 = vpack.c.b16 %v680, %v679
      %v687 = vpack.c.b16 %v682, %v681
      %v688 = vpack.c.b16 %v683, %v683
      %v690 = vsel %vm273, %v684, 0
      %v693 = vsel %vm273, %v685, 0
      %v696 = vsel %vm273, %v686, 0
      %v699 = vsel %vm273, %v687, 0
      %v702 = vsel %vm273, %v688, 0
      %v705 = vsel %vm289, %v665, 0
      %707 = vmatprep.subr.bf16.mxu0 0
      %708 = vmatpush1.bf16.msra.mxu0 0
      %709 = vmatprep.subr.bf16.mxu0 0
      %710 = vmatpush1.bf16.msra.mxu0 0
      %711 = vmatprep.subr.bf16.mxu0 0
      %712 = vmatpush1.bf16.msra.mxu0 0
      %713 = vmatprep.subr.bf16.mxu0 0
      %714 = vmatpush1.bf16.msra.mxu0 0
      %715 = vmatprep.subr.bf16.mxu0 0
      %716 = vmatpush1.bf16.msra.mxu0 0
      %717 = vmatprep.subr.bf16.mxu0 0
      %718 = vmatpush1.bf16.msra.mxu0 0
      %719 = vmatprep.subr.bf16.mxu0 0
      %720 = vmatpush1.bf16.msra.mxu0 0
      %721 = vmatprep.subr.bf16.mxu0 0
      %722 = vmatpush1.bf16.msra.mxu0 %v705
      %723 = vmatprep.subr.bf16.mxu0 0
      %724 = vmatpush2.bf16.msra.mxu0 0
      %725 = vmatprep.subr.bf16.mxu0 0
      %726 = vmatpush2.bf16.msra.mxu0 0
      %727 = vmatprep.subr.bf16.mxu0 0
      %728 = vmatpush2.bf16.msra.mxu0 0
      %729 = vmatprep.subr.bf16.mxu0 0
      %730 = vmatpush2.bf16.msra.mxu0 0
      %731 = vmatprep.subr.bf16.mxu0 0
      %732 = vmatpush2.bf16.msra.mxu0 0
      %733 = vmatprep.subr.bf16.mxu0 0
      %734 = vmatpush2.bf16.msra.mxu0 0
      %735 = vmatprep.subr.bf16.mxu0 0
      %736 = vmatpush2.bf16.msra.mxu0 0
      %737 = vmatprep.subr.bf16.mxu0 0
      %738 = vmatpush2.bf16.msra.mxu0 0
      %739 = vmatprep.mubr.bf16.mxu0 0
      %740 = vmatmul.mubr.bf16.gmra.mxu0 %v690
      %v741 = vpop.f32.mrf.mxu0
      %v742 = vadd.f32 0.0, %v741
      %v743 = vpop.f32.mrf.mxu0
      %v744 = vpop.f32.mrf.mxu0
      %v745 = vadd.f32 0.0, %v744
      %v746 = vpop.f32.mrf.mxu0
      %747 = vmatprep.mubr.bf16.mxu0 0
      %748 = vmatmul.mubr.bf16.gmra.mxu0 %v693
      %v749 = vpop.f32.mrf.mxu0
      %v750 = vadd.f32 0.0, %v749
      %v751 = vpop.f32.mrf.mxu0
      %v752 = vpop.f32.mrf.mxu0
      %v753 = vadd.f32 0.0, %v752
      %v754 = vpop.f32.mrf.mxu0
      %755 = vmatprep.mubr.bf16.mxu0 0
      %756 = vmatmul.mubr.bf16.gmra.mxu0 %v696
      %v757 = vpop.f32.mrf.mxu0
      %v758 = vadd.f32 0.0, %v757
      %v759 = vpop.f32.mrf.mxu0
      %v760 = vpop.f32.mrf.mxu0
      %v761 = vadd.f32 0.0, %v760
      %v762 = vpop.f32.mrf.mxu0
      %763 = vmatprep.mubr.bf16.mxu0 0
      %764 = vmatmul.mubr.bf16.gmra.mxu0 %v699
      %v765 = vpop.f32.mrf.mxu0
      %v766 = vadd.f32 0.0, %v765
      %v767 = vpop.f32.mrf.mxu0
      %v768 = vpop.f32.mrf.mxu0
      %v769 = vadd.f32 0.0, %v768
      %v770 = vpop.f32.mrf.mxu0
      %771 = vmatprep.mubr.bf16.mxu0 0
      %772 = vmatmul.mubr.bf16.gmra.mxu0 %v702
      %v773 = vpop.f32.mrf.mxu0
      %v774 = vadd.f32 0.0, %v773
      %v775 = vpop.f32.mrf.mxu0
      %v776 = vpop.f32.mrf.mxu0
      %v777 = vpop.f32.mrf.mxu0
      %778 = vdwg.mxu0
      %v779 = vadd.f32 %v645, %v742
      %v780 = vadd.f32 %v646, %v745
      %v781 = vadd.f32 %v647, %v750
      %v782 = vadd.f32 %v648, %v753
      %v783 = vadd.f32 %v649, %v758
      %v784 = vadd.f32 %v650, %v761
      %v785 = vadd.f32 %v651, %v766
      %v786 = vadd.f32 %v652, %v769
      %v787 = vadd.f32 %v653, %v774
      %s788 = scalar_lea.vmem %s210, 144
      %v789 = vld [vmem:[%s788] sm:$0xf]
      %v790 = vld [vmem:[%s788 + $0x4] sm:$0xf]
      %v791 = vld [vmem:[%s788 + $0x8] sm:$0xf]
      %v792 = vld [vmem:[%s788 + $0xc] sm:$0xf]
      %v793 = vld [vmem:[%s788 + $0x10] sm:$0xf]
      %v794 = vld [vmem:[%s788 + $0x14] sm:$0xf]
      %v795 = vld [vmem:[%s788 + $0x18] sm:$0xf]
      %v796 = vld [vmem:[%s788 + $0x1c] sm:$0xf]
      %v797 = vld [vmem:[%s788 + $0x20] sm:$0xf]
      %s798 = scalar_lea.vmem %s215, 8
      %v799 = vld [vmem:[%s798] sm:$0x3]
      %v809 = vunpack.c.l.b16 %v789
      %v810 = vunpack.c.l.b16 %v790
      %v811 = vunpack.c.l.b16 %v791
      %v812 = vunpack.c.l.b16 %v792
      %v813 = vunpack.c.l.b16 %v793
      %v814 = vunpack.c.l.b16 %v794
      %v815 = vunpack.c.l.b16 %v795
      %v816 = vunpack.c.l.b16 %v796
      %v817 = vunpack.c.l.b16 %v797
      %v818 = vpack.c.b16 %v810, %v809
      %v819 = vpack.c.b16 %v812, %v811
      %v820 = vpack.c.b16 %v814, %v813
      %v821 = vpack.c.b16 %v816, %v815
      %v822 = vpack.c.b16 %v817, %v817
      %v824 = vsel %vm273, %v818, 0
      %v827 = vsel %vm273, %v819, 0
      %v830 = vsel %vm273, %v820, 0
      %v833 = vsel %vm273, %v821, 0
      %v836 = vsel %vm273, %v822, 0
      %v839 = vsel %vm289, %v799, 0
      %841 = vmatprep.subr.bf16.mxu0 0
      %842 = vmatpush1.bf16.msra.mxu0 0
      %843 = vmatprep.subr.bf16.mxu0 0
      %844 = vmatpush1.bf16.msra.mxu0 0
      %845 = vmatprep.subr.bf16.mxu0 0
      %846 = vmatpush1.bf16.msra.mxu0 0
      %847 = vmatprep.subr.bf16.mxu0 0
      %848 = vmatpush1.bf16.msra.mxu0 0
      %849 = vmatprep.subr.bf16.mxu0 0
      %850 = vmatpush1.bf16.msra.mxu0 0
      %851 = vmatprep.subr.bf16.mxu0 0
      %852 = vmatpush1.bf16.msra.mxu0 0
      %853 = vmatprep.subr.bf16.mxu0 0
      %854 = vmatpush1.bf16.msra.mxu0 0
      %855 = vmatprep.subr.bf16.mxu0 0
      %856 = vmatpush1.bf16.msra.mxu0 %v839
      %857 = vmatprep.subr.bf16.mxu0 0
      %858 = vmatpush2.bf16.msra.mxu0 0
      %859 = vmatprep.subr.bf16.mxu0 0
      %860 = vmatpush2.bf16.msra.mxu0 0
      %861 = vmatprep.subr.bf16.mxu0 0
      %862 = vmatpush2.bf16.msra.mxu0 0
      %863 = vmatprep.subr.bf16.mxu0 0
      %864 = vmatpush2.bf16.msra.mxu0 0
      %865 = vmatprep.subr.bf16.mxu0 0
      %866 = vmatpush2.bf16.msra.mxu0 0
      %867 = vmatprep.subr.bf16.mxu0 0
      %868 = vmatpush2.bf16.msra.mxu0 0
      %869 = vmatprep.subr.bf16.mxu0 0
      %870 = vmatpush2.bf16.msra.mxu0 0
      %871 = vmatprep.subr.bf16.mxu0 0
      %872 = vmatpush2.bf16.msra.mxu0 0
      %873 = vmatprep.mubr.bf16.mxu0 0
      %874 = vmatmul.mubr.bf16.gmra.mxu0 %v824
      %v875 = vpop.f32.mrf.mxu0
      %v876 = vadd.f32 0.0, %v875
      %v877 = vpop.f32.mrf.mxu0
      %v878 = vpop.f32.mrf.mxu0
      %v879 = vadd.f32 0.0, %v878
      %v880 = vpop.f32.mrf.mxu0
      %881 = vmatprep.mubr.bf16.mxu0 0
      %882 = vmatmul.mubr.bf16.gmra.mxu0 %v827
      %v883 = vpop.f32.mrf.mxu0
      %v884 = vadd.f32 0.0, %v883
      %v885 = vpop.f32.mrf.mxu0
      %v886 = vpop.f32.mrf.mxu0
      %v887 = vadd.f32 0.0, %v886
      %v888 = vpop.f32.mrf.mxu0
      %889 = vmatprep.mubr.bf16.mxu0 0
      %890 = vmatmul.mubr.bf16.gmra.mxu0 %v830
      %v891 = vpop.f32.mrf.mxu0
      %v892 = vadd.f32 0.0, %v891
      %v893 = vpop.f32.mrf.mxu0
      %v894 = vpop.f32.mrf.mxu0
      %v895 = vadd.f32 0.0, %v894
      %v896 = vpop.f32.mrf.mxu0
      %897 = vmatprep.mubr.bf16.mxu0 0
      %898 = vmatmul.mubr.bf16.gmra.mxu0 %v833
      %v899 = vpop.f32.mrf.mxu0
      %v900 = vadd.f32 0.0, %v899
      %v901 = vpop.f32.mrf.mxu0
      %v902 = vpop.f32.mrf.mxu0
      %v903 = vadd.f32 0.0, %v902
      %v904 = vpop.f32.mrf.mxu0
      %905 = vmatprep.mubr.bf16.mxu0 0
      %906 = vmatmul.mubr.bf16.gmra.mxu0 %v836
      %v907 = vpop.f32.mrf.mxu0
      %v908 = vadd.f32 0.0, %v907
      %v909 = vpop.f32.mrf.mxu0
      %v910 = vpop.f32.mrf.mxu0
      %v911 = vpop.f32.mrf.mxu0
      %912 = vdwg.mxu0
      %v913 = vadd.f32 %v779, %v876
      %v914 = vadd.f32 %v780, %v879
      %v915 = vadd.f32 %v781, %v884
      %v916 = vadd.f32 %v782, %v887
      %v917 = vadd.f32 %v783, %v892
      %v918 = vadd.f32 %v784, %v895
      %v919 = vadd.f32 %v785, %v900
      %v920 = vadd.f32 %v786, %v903
      %v921 = vadd.f32 %v787, %v908
      %v922 = vld [vmem:[%s654] sm:$0xf]
      %v923 = vld [vmem:[%s654 + $0x4] sm:$0xf]
      %v924 = vld [vmem:[%s654 + $0x8] sm:$0xf]
      %v925 = vld [vmem:[%s654 + $0xc] sm:$0xf]
      %v926 = vld [vmem:[%s654 + $0x10] sm:$0xf]
      %v927 = vld [vmem:[%s654 + $0x14] sm:$0xf]
      %v928 = vld [vmem:[%s654 + $0x18] sm:$0xf]
      %v929 = vld [vmem:[%s654 + $0x1c] sm:$0xf]
      %v930 = vld [vmem:[%s654 + $0x20] sm:$0xf]
      %v931 = vld [vmem:[%s654 + $0x24] sm:$0x1]
      %s932 = scalar_lea.vmem %s215, 10
      %v933 = vld [vmem:[%s932] sm:$0x3]
      %v944 = vunpack.c.l.b16 %v922
      %v945 = vunpack.c.l.b16 %v923
      %v946 = vunpack.c.l.b16 %v924
      %v947 = vunpack.c.l.b16 %v925
      %v948 = vunpack.c.l.b16 %v926
      %v949 = vunpack.c.l.b16 %v927
      %v950 = vunpack.c.l.b16 %v928
      %v951 = vunpack.c.l.b16 %v929
      %v952 = vunpack.c.l.b16 %v930
      %v953 = vunpack.c.l.b16 %v931
      %v954 = vpack.c.b16 %v945, %v944
      %v955 = vpack.c.b16 %v947, %v946
      %v956 = vpack.c.b16 %v949, %v948
      %v957 = vpack.c.b16 %v951, %v950
      %v958 = vpack.c.b16 %v953, %v952
      %v960 = vshrl.u32 %v954, 16
      %v962 = vshll.u32 %v954, 16
      %v964 = vrot.slane %v962, 1
      %v965 = vor.u32 %v960, %v964
      %v967 = vshll.u32 %v955, 16
      %v969 = vrot.slane %v967, 1
      %v970 = vsel %vm515, %v965, %v969
      %v971 = vshrl.u32 %v955, 16
      %v973 = vor.u32 %v971, %v969
      %v975 = vshll.u32 %v956, 16
      %v977 = vrot.slane %v975, 1
      %v978 = vsel %vm515, %v973, %v977
      %v979 = vshrl.u32 %v956, 16
      %v981 = vor.u32 %v979, %v977
      %v983 = vshll.u32 %v957, 16
      %v985 = vrot.slane %v983, 1
      %v986 = vsel %vm515, %v981, %v985
      %v987 = vshrl.u32 %v957, 16
      %v989 = vor.u32 %v987, %v985
      %v991 = vshll.u32 %v958, 16
      %v993 = vrot.slane %v991, 1
      %v994 = vsel %vm515, %v989, %v993
      %v995 = vshrl.u32 %v958, 16
      %v997 = vor.u32 %v995, %v993
      %v999 = vsel %vm273, %v970, 0
      %v1002 = vsel %vm273, %v978, 0
      %v1005 = vsel %vm273, %v986, 0
      %v1008 = vsel %vm273, %v994, 0
      %v1011 = vsel %vm273, %v997, 0
      %v1014 = vsel %vm289, %v933, 0
      %1016 = vmatprep.subr.bf16.mxu0 0
      %1017 = vmatpush1.bf16.msra.mxu0 0
      %1018 = vmatprep.subr.bf16.mxu0 0
      %1019 = vmatpush1.bf16.msra.mxu0 0
      %1020 = vmatprep.subr.bf16.mxu0 0
      %1021 = vmatpush1.bf16.msra.mxu0 0
      %1022 = vmatprep.subr.bf16.mxu0 0
      %1023 = vmatpush1.bf16.msra.mxu0 0
      %1024 = vmatprep.subr.bf16.mxu0 0
      %1025 = vmatpush1.bf16.msra.mxu0 0
      %1026 = vmatprep.subr.bf16.mxu0 0
      %1027 = vmatpush1.bf16.msra.mxu0 0
      %1028 = vmatprep.subr.bf16.mxu0 0
      %1029 = vmatpush1.bf16.msra.mxu0 0
      %1030 = vmatprep.subr.bf16.mxu0 0
      %1031 = vmatpush1.bf16.msra.mxu0 %v1014
      %1032 = vmatprep.subr.bf16.mxu0 0
      %1033 = vmatpush2.bf16.msra.mxu0 0
      %1034 = vmatprep.subr.bf16.mxu0 0
      %1035 = vmatpush2.bf16.msra.mxu0 0
      %1036 = vmatprep.subr.bf16.mxu0 0
      %1037 = vmatpush2.bf16.msra.mxu0 0
      %1038 = vmatprep.subr.bf16.mxu0 0
      %1039 = vmatpush2.bf16.msra.mxu0 0
      %1040 = vmatprep.subr.bf16.mxu0 0
      %1041 = vmatpush2.bf16.msra.mxu0 0
      %1042 = vmatprep.subr.bf16.mxu0 0
      %1043 = vmatpush2.bf16.msra.mxu0 0
      %1044 = vmatprep.subr.bf16.mxu0 0
      %1045 = vmatpush2.bf16.msra.mxu0 0
      %1046 = vmatprep.subr.bf16.mxu0 0
      %1047 = vmatpush2.bf16.msra.mxu0 0
      %1048 = vmatprep.mubr.bf16.mxu0 0
      %1049 = vmatmul.mubr.bf16.gmra.mxu0 %v999
      %v1050 = vpop.f32.mrf.mxu0
      %v1051 = vadd.f32 0.0, %v1050
      %v1052 = vpop.f32.mrf.mxu0
      %v1053 = vpop.f32.mrf.mxu0
      %v1054 = vadd.f32 0.0, %v1053
      %v1055 = vpop.f32.mrf.mxu0
      %1056 = vmatprep.mubr.bf16.mxu0 0
      %1057 = vmatmul.mubr.bf16.gmra.mxu0 %v1002
      %v1058 = vpop.f32.mrf.mxu0
      %v1059 = vadd.f32 0.0, %v1058
      %v1060 = vpop.f32.mrf.mxu0
      %v1061 = vpop.f32.mrf.mxu0
      %v1062 = vadd.f32 0.0, %v1061
      %v1063 = vpop.f32.mrf.mxu0
      %1064 = vmatprep.mubr.bf16.mxu0 0
      %1065 = vmatmul.mubr.bf16.gmra.mxu0 %v1005
      %v1066 = vpop.f32.mrf.mxu0
      %v1067 = vadd.f32 0.0, %v1066
      %v1068 = vpop.f32.mrf.mxu0
      %v1069 = vpop.f32.mrf.mxu0
      %v1070 = vadd.f32 0.0, %v1069
      %v1071 = vpop.f32.mrf.mxu0
      %1072 = vmatprep.mubr.bf16.mxu0 0
      %1073 = vmatmul.mubr.bf16.gmra.mxu0 %v1008
      %v1074 = vpop.f32.mrf.mxu0
      %v1075 = vadd.f32 0.0, %v1074
      %v1076 = vpop.f32.mrf.mxu0
      %v1077 = vpop.f32.mrf.mxu0
      %v1078 = vadd.f32 0.0, %v1077
      %v1079 = vpop.f32.mrf.mxu0
      %1080 = vmatprep.mubr.bf16.mxu0 0
      %1081 = vmatmul.mubr.bf16.gmra.mxu0 %v1011
      %v1082 = vpop.f32.mrf.mxu0
      %v1083 = vadd.f32 0.0, %v1082
      %v1084 = vpop.f32.mrf.mxu0
      %v1085 = vpop.f32.mrf.mxu0
      %v1086 = vpop.f32.mrf.mxu0
      %1087 = vdwg.mxu0
      %v1088 = vadd.f32 %v913, %v1051
      %v1089 = vadd.f32 %v914, %v1054
      %v1090 = vadd.f32 %v915, %v1059
      %v1091 = vadd.f32 %v916, %v1062
      %v1092 = vadd.f32 %v917, %v1067
      %v1093 = vadd.f32 %v918, %v1070
      %v1094 = vadd.f32 %v919, %v1075
      %v1095 = vadd.f32 %v920, %v1078
      %v1096 = vadd.f32 %v921, %v1083
      %v1097 = vld [vmem:[%s210 + $0x4] sm:$0xf]
      %v1098 = vld [vmem:[%s210 + $0x8] sm:$0xf]
      %v1099 = vld [vmem:[%s210 + $0xc] sm:$0xf]
      %v1100 = vld [vmem:[%s210 + $0x10] sm:$0xf]
      %v1101 = vld [vmem:[%s210 + $0x14] sm:$0xf]
      %v1102 = vld [vmem:[%s210 + $0x18] sm:$0xf]
      %v1103 = vld [vmem:[%s210 + $0x1c] sm:$0xf]
      %v1104 = vld [vmem:[%s210 + $0x20] sm:$0xf]
      %v1105 = vld [vmem:[%s210 + $0x24] sm:$0xf]
      %v1106 = vld [vmem:[%s210 + $0x28] sm:$0x1]
      %s1107 = scalar_lea.vmem %s215, 12
      %v1108 = vld [vmem:[%s1107] sm:$0x3]
      %v1119 = vunpack.c.l.b16 %v1097
      %v1120 = vunpack.c.l.b16 %v1098
      %v1121 = vunpack.c.l.b16 %v1099
      %v1122 = vunpack.c.l.b16 %v1100
      %v1123 = vunpack.c.l.b16 %v1101
      %v1124 = vunpack.c.l.b16 %v1102
      %v1125 = vunpack.c.l.b16 %v1103
      %v1126 = vunpack.c.l.b16 %v1104
      %v1127 = vunpack.c.l.b16 %v1105
      %v1128 = vunpack.c.l.b16 %v1106
      %v1129 = vpack.c.b16 %v1120, %v1119
      %v1130 = vpack.c.b16 %v1122, %v1121
      %v1131 = vpack.c.b16 %v1124, %v1123
      %v1132 = vpack.c.b16 %v1126, %v1125
      %v1133 = vpack.c.b16 %v1128, %v1127
      %v1135 = vshrl.u32 %v1129, 16
      %v1137 = vshll.u32 %v1129, 16
      %v1139 = vrot.slane %v1137, 1
      %v1140 = vor.u32 %v1135, %v1139
      %v1142 = vshll.u32 %v1130, 16
      %v1144 = vrot.slane %v1142, 1
      %v1145 = vsel %vm515, %v1140, %v1144
      %v1146 = vshrl.u32 %v1130, 16
      %v1148 = vor.u32 %v1146, %v1144
      %v1150 = vshll.u32 %v1131, 16
      %v1152 = vrot.slane %v1150, 1
      %v1153 = vsel %vm515, %v1148, %v1152
      %v1154 = vshrl.u32 %v1131, 16
      %v1156 = vor.u32 %v1154, %v1152
      %v1158 = vshll.u32 %v1132, 16
      %v1160 = vrot.slane %v1158, 1
      %v1161 = vsel %vm515, %v1156, %v1160
      %v1162 = vshrl.u32 %v1132, 16
      %v1164 = vor.u32 %v1162, %v1160
      %v1166 = vshll.u32 %v1133, 16
      %v1168 = vrot.slane %v1166, 1
      %v1169 = vsel %vm515, %v1164, %v1168
      %v1170 = vshrl.u32 %v1133, 16
      %v1172 = vor.u32 %v1170, %v1168
      %v1174 = vsel %vm273, %v1145, 0
      %v1177 = vsel %vm273, %v1153, 0
      %v1180 = vsel %vm273, %v1161, 0
      %v1183 = vsel %vm273, %v1169, 0
      %v1186 = vsel %vm273, %v1172, 0
      %v1189 = vsel %vm289, %v1108, 0
      %1191 = vmatprep.subr.bf16.mxu0 0
      %1192 = vmatpush1.bf16.msra.mxu0 0
      %1193 = vmatprep.subr.bf16.mxu0 0
      %1194 = vmatpush1.bf16.msra.mxu0 0
      %1195 = vmatprep.subr.bf16.mxu0 0
      %1196 = vmatpush1.bf16.msra.mxu0 0
      %1197 = vmatprep.subr.bf16.mxu0 0
      %1198 = vmatpush1.bf16.msra.mxu0 0
      %1199 = vmatprep.subr.bf16.mxu0 0
      %1200 = vmatpush1.bf16.msra.mxu0 0
      %1201 = vmatprep.subr.bf16.mxu0 0
      %1202 = vmatpush1.bf16.msra.mxu0 0
      %1203 = vmatprep.subr.bf16.mxu0 0
      %1204 = vmatpush1.bf16.msra.mxu0 0
      %1205 = vmatprep.subr.bf16.mxu0 0
      %1206 = vmatpush1.bf16.msra.mxu0 %v1189
      %1207 = vmatprep.subr.bf16.mxu0 0
      %1208 = vmatpush2.bf16.msra.mxu0 0
      %1209 = vmatprep.subr.bf16.mxu0 0
      %1210 = vmatpush2.bf16.msra.mxu0 0
      %1211 = vmatprep.subr.bf16.mxu0 0
      %1212 = vmatpush2.bf16.msra.mxu0 0
      %1213 = vmatprep.subr.bf16.mxu0 0
      %1214 = vmatpush2.bf16.msra.mxu0 0
      %1215 = vmatprep.subr.bf16.mxu0 0
      %1216 = vmatpush2.bf16.msra.mxu0 0
      %1217 = vmatprep.subr.bf16.mxu0 0
      %1218 = vmatpush2.bf16.msra.mxu0 0
      %1219 = vmatprep.subr.bf16.mxu0 0
      %1220 = vmatpush2.bf16.msra.mxu0 0
      %1221 = vmatprep.subr.bf16.mxu0 0
      %1222 = vmatpush2.bf16.msra.mxu0 0
      %1223 = vmatprep.mubr.bf16.mxu0 0
      %1224 = vmatmul.mubr.bf16.gmra.mxu0 %v1174
      %v1225 = vpop.f32.mrf.mxu0
      %v1226 = vadd.f32 0.0, %v1225
      %v1227 = vpop.f32.mrf.mxu0
      %v1228 = vpop.f32.mrf.mxu0
      %v1229 = vadd.f32 0.0, %v1228
      %v1230 = vpop.f32.mrf.mxu0
      %1231 = vmatprep.mubr.bf16.mxu0 0
      %1232 = vmatmul.mubr.bf16.gmra.mxu0 %v1177
      %v1233 = vpop.f32.mrf.mxu0
      %v1234 = vadd.f32 0.0, %v1233
      %v1235 = vpop.f32.mrf.mxu0
      %v1236 = vpop.f32.mrf.mxu0
      %v1237 = vadd.f32 0.0, %v1236
      %v1238 = vpop.f32.mrf.mxu0
      %1239 = vmatprep.mubr.bf16.mxu0 0
      %1240 = vmatmul.mubr.bf16.gmra.mxu0 %v1180
      %v1241 = vpop.f32.mrf.mxu0
      %v1242 = vadd.f32 0.0, %v1241
      %v1243 = vpop.f32.mrf.mxu0
      %v1244 = vpop.f32.mrf.mxu0
      %v1245 = vadd.f32 0.0, %v1244
      %v1246 = vpop.f32.mrf.mxu0
      %1247 = vmatprep.mubr.bf16.mxu0 0
      %1248 = vmatmul.mubr.bf16.gmra.mxu0 %v1183
      %v1249 = vpop.f32.mrf.mxu0
      %v1250 = vadd.f32 0.0, %v1249
      %v1251 = vpop.f32.mrf.mxu0
      %v1252 = vpop.f32.mrf.mxu0
      %v1253 = vadd.f32 0.0, %v1252
      %v1254 = vpop.f32.mrf.mxu0
      %1255 = vmatprep.mubr.bf16.mxu0 0
      %1256 = vmatmul.mubr.bf16.gmra.mxu0 %v1186
      %v1257 = vpop.f32.mrf.mxu0
      %v1258 = vadd.f32 0.0, %v1257
      %v1259 = vpop.f32.mrf.mxu0
      %v1260 = vpop.f32.mrf.mxu0
      %v1261 = vpop.f32.mrf.mxu0
      %1262 = vdwg.mxu0
      %v1263 = vadd.f32 %v1088, %v1226
      %v1264 = vadd.f32 %v1089, %v1229
      %v1265 = vadd.f32 %v1090, %v1234
      %v1266 = vadd.f32 %v1091, %v1237
      %v1267 = vadd.f32 %v1092, %v1242
      %v1268 = vadd.f32 %v1093, %v1245
      %v1269 = vadd.f32 %v1094, %v1250
      %v1270 = vadd.f32 %v1095, %v1253
      %v1271 = vadd.f32 %v1096, %v1258
      %v1272 = vld [vmem:[%s238 + $0x4] sm:$0xf]
      %v1273 = vld [vmem:[%s238 + $0x8] sm:$0xf]
      %v1274 = vld [vmem:[%s238 + $0xc] sm:$0xf]
      %v1275 = vld [vmem:[%s238 + $0x10] sm:$0xf]
      %v1276 = vld [vmem:[%s238 + $0x14] sm:$0xf]
      %v1277 = vld [vmem:[%s238 + $0x18] sm:$0xf]
      %v1278 = vld [vmem:[%s238 + $0x1c] sm:$0xf]
      %v1279 = vld [vmem:[%s238 + $0x20] sm:$0xf]
      %v1280 = vld [vmem:[%s238 + $0x24] sm:$0xf]
      %v1281 = vld [vmem:[%s238 + $0x28] sm:$0x1]
      %s1282 = scalar_lea.vmem %s215, 14
      %v1283 = vld [vmem:[%s1282] sm:$0x3]
      %v1294 = vunpack.c.l.b16 %v1272
      %v1295 = vunpack.c.l.b16 %v1273
      %v1296 = vunpack.c.l.b16 %v1274
      %v1297 = vunpack.c.l.b16 %v1275
      %v1298 = vunpack.c.l.b16 %v1276
      %v1299 = vunpack.c.l.b16 %v1277
      %v1300 = vunpack.c.l.b16 %v1278
      %v1301 = vunpack.c.l.b16 %v1279
      %v1302 = vunpack.c.l.b16 %v1280
      %v1303 = vunpack.c.l.b16 %v1281
      %v1304 = vpack.c.b16 %v1295, %v1294
      %v1305 = vpack.c.b16 %v1297, %v1296
      %v1306 = vpack.c.b16 %v1299, %v1298
      %v1307 = vpack.c.b16 %v1301, %v1300
      %v1308 = vpack.c.b16 %v1303, %v1302
      %v1310 = vshrl.u32 %v1304, 16
      %v1312 = vshll.u32 %v1304, 16
      %v1314 = vrot.slane %v1312, 1
      %v1315 = vor.u32 %v1310, %v1314
      %v1317 = vshll.u32 %v1305, 16
      %v1319 = vrot.slane %v1317, 1
      %v1320 = vsel %vm515, %v1315, %v1319
      %v1321 = vshrl.u32 %v1305, 16
      %v1323 = vor.u32 %v1321, %v1319
      %v1325 = vshll.u32 %v1306, 16
      %v1327 = vrot.slane %v1325, 1
      %v1328 = vsel %vm515, %v1323, %v1327
      %v1329 = vshrl.u32 %v1306, 16
      %v1331 = vor.u32 %v1329, %v1327
      %v1333 = vshll.u32 %v1307, 16
      %v1335 = vrot.slane %v1333, 1
      %v1336 = vsel %vm515, %v1331, %v1335
      %v1337 = vshrl.u32 %v1307, 16
      %v1339 = vor.u32 %v1337, %v1335
      %v1341 = vshll.u32 %v1308, 16
      %v1343 = vrot.slane %v1341, 1
      %v1344 = vsel %vm515, %v1339, %v1343
      %v1345 = vshrl.u32 %v1308, 16
      %v1347 = vor.u32 %v1345, %v1343
      %v1349 = vsel %vm273, %v1320, 0
      %v1352 = vsel %vm273, %v1328, 0
      %v1355 = vsel %vm273, %v1336, 0
      %v1358 = vsel %vm273, %v1344, 0
      %v1361 = vsel %vm273, %v1347, 0
      %v1364 = vsel %vm289, %v1283, 0
      %1366 = vmatprep.subr.bf16.mxu0 0
      %1367 = vmatpush1.bf16.msra.mxu0 0
      %1368 = vmatprep.subr.bf16.mxu0 0
      %1369 = vmatpush1.bf16.msra.mxu0 0
      %1370 = vmatprep.subr.bf16.mxu0 0
      %1371 = vmatpush1.bf16.msra.mxu0 0
      %1372 = vmatprep.subr.bf16.mxu0 0
      %1373 = vmatpush1.bf16.msra.mxu0 0
      %1374 = vmatprep.subr.bf16.mxu0 0
      %1375 = vmatpush1.bf16.msra.mxu0 0
      %1376 = vmatprep.subr.bf16.mxu0 0
      %1377 = vmatpush1.bf16.msra.mxu0 0
      %1378 = vmatprep.subr.bf16.mxu0 0
      %1379 = vmatpush1.bf16.msra.mxu0 0
      %1380 = vmatprep.subr.bf16.mxu0 0
      %1381 = vmatpush1.bf16.msra.mxu0 %v1364
      %1382 = vmatprep.subr.bf16.mxu0 0
      %1383 = vmatpush2.bf16.msra.mxu0 0
      %1384 = vmatprep.subr.bf16.mxu0 0
      %1385 = vmatpush2.bf16.msra.mxu0 0
      %1386 = vmatprep.subr.bf16.mxu0 0
      %1387 = vmatpush2.bf16.msra.mxu0 0
      %1388 = vmatprep.subr.bf16.mxu0 0
      %1389 = vmatpush2.bf16.msra.mxu0 0
      %1390 = vmatprep.subr.bf16.mxu0 0
      %1391 = vmatpush2.bf16.msra.mxu0 0
      %1392 = vmatprep.subr.bf16.mxu0 0
      %1393 = vmatpush2.bf16.msra.mxu0 0
      %1394 = vmatprep.subr.bf16.mxu0 0
      %1395 = vmatpush2.bf16.msra.mxu0 0
      %1396 = vmatprep.subr.bf16.mxu0 0
      %1397 = vmatpush2.bf16.msra.mxu0 0
      %1398 = vmatprep.mubr.bf16.mxu0 0
      %1399 = vmatmul.mubr.bf16.gmra.mxu0 %v1349
      %v1400 = vpop.f32.mrf.mxu0
      %v1401 = vadd.f32 0.0, %v1400
      %v1402 = vpop.f32.mrf.mxu0
      %v1403 = vpop.f32.mrf.mxu0
      %v1404 = vadd.f32 0.0, %v1403
      %v1405 = vpop.f32.mrf.mxu0
      %1406 = vmatprep.mubr.bf16.mxu0 0
      %1407 = vmatmul.mubr.bf16.gmra.mxu0 %v1352
      %v1408 = vpop.f32.mrf.mxu0
      %v1409 = vadd.f32 0.0, %v1408
      %v1410 = vpop.f32.mrf.mxu0
      %v1411 = vpop.f32.mrf.mxu0
      %v1412 = vadd.f32 0.0, %v1411
      %v1413 = vpop.f32.mrf.mxu0
      %1414 = vmatprep.mubr.bf16.mxu0 0
      %1415 = vmatmul.mubr.bf16.gmra.mxu0 %v1355
      %v1416 = vpop.f32.mrf.mxu0
      %v1417 = vadd.f32 0.0, %v1416
      %v1418 = vpop.f32.mrf.mxu0
      %v1419 = vpop.f32.mrf.mxu0
      %v1420 = vadd.f32 0.0, %v1419
      %v1421 = vpop.f32.mrf.mxu0
      %1422 = vmatprep.mubr.bf16.mxu0 0
      %1423 = vmatmul.mubr.bf16.gmra.mxu0 %v1358
      %v1424 = vpop.f32.mrf.mxu0
      %v1425 = vadd.f32 0.0, %v1424
      %v1426 = vpop.f32.mrf.mxu0
      %v1427 = vpop.f32.mrf.mxu0
      %v1428 = vadd.f32 0.0, %v1427
      %v1429 = vpop.f32.mrf.mxu0
      %1430 = vmatprep.mubr.bf16.mxu0 0
      %1431 = vmatmul.mubr.bf16.gmra.mxu0 %v1361
      %v1432 = vpop.f32.mrf.mxu0
      %v1433 = vadd.f32 0.0, %v1432
      %v1434 = vpop.f32.mrf.mxu0
      %v1435 = vpop.f32.mrf.mxu0
      %v1436 = vpop.f32.mrf.mxu0
      %1437 = vdwg.mxu0
      %v1438 = vadd.f32 %v1263, %v1401
      %v1439 = vadd.f32 %v1264, %v1404
      %v1440 = vadd.f32 %v1265, %v1409
      %v1441 = vadd.f32 %v1266, %v1412
      %v1442 = vadd.f32 %v1267, %v1417
      %v1443 = vadd.f32 %v1268, %v1420
      %v1444 = vadd.f32 %v1269, %v1425
      %v1445 = vadd.f32 %v1270, %v1428
      %v1446 = vadd.f32 %v1271, %v1433
      %v1447 = vld [vmem:[%s210 + $0x4] sm:$0xe]
      %s1448 = scalar_lea.vmem %s215, 16
      %v1449 = vld [vmem:[%s1448] sm:$0x3]
      %v1451 = vunpack.c.l.b16 %v1447
      %v1452 = vpack.c.b16 %v1120, %v1451
      %vm1453 = vcmask 1046528
      %v1454 = vrot.slane %v1452, 1
      %v1455 = vrot.slane %v1130, 1
      %v1456 = vsel %vm1453, %v1454, %v1455
      %v1457 = vrot.slane %v1131, 1
      %v1458 = vsel %vm1453, %v1455, %v1457
      %v1459 = vrot.slane %v1132, 1
      %v1460 = vsel %vm1453, %v1457, %v1459
      %v1461 = vrot.slane %v1133, 1
      %v1462 = vsel %vm1453, %v1459, %v1461
      %v1464 = vsel %vm273, %v1456, 0
      %v1467 = vsel %vm273, %v1458, 0
      %v1470 = vsel %vm273, %v1460, 0
      %v1473 = vsel %vm273, %v1462, 0
      %v1476 = vsel %vm273, %v1461, 0
      %v1479 = vsel %vm289, %v1449, 0
      %1481 = vmatprep.subr.bf16.mxu0 0
      %1482 = vmatpush1.bf16.msra.mxu0 0
      %1483 = vmatprep.subr.bf16.mxu0 0
      %1484 = vmatpush1.bf16.msra.mxu0 0
      %1485 = vmatprep.subr.bf16.mxu0 0
      %1486 = vmatpush1.bf16.msra.mxu0 0
      %1487 = vmatprep.subr.bf16.mxu0 0
      %1488 = vmatpush1.bf16.msra.mxu0 0
      %1489 = vmatprep.subr.bf16.mxu0 0
      %1490 = vmatpush1.bf16.msra.mxu0 0
      %1491 = vmatprep.subr.bf16.mxu0 0
      %1492 = vmatpush1.bf16.msra.mxu0 0
      %1493 = vmatprep.subr.bf16.mxu0 0
      %1494 = vmatpush1.bf16.msra.mxu0 0
      %1495 = vmatprep.subr.bf16.mxu0 0
      %1496 = vmatpush1.bf16.msra.mxu0 %v1479
      %1497 = vmatprep.subr.bf16.mxu0 0
      %1498 = vmatpush2.bf16.msra.mxu0 0
      %1499 = vmatprep.subr.bf16.mxu0 0
      %1500 = vmatpush2.bf16.msra.mxu0 0
      %1501 = vmatprep.subr.bf16.mxu0 0
      %1502 = vmatpush2.bf16.msra.mxu0 0
      %1503 = vmatprep.subr.bf16.mxu0 0
      %1504 = vmatpush2.bf16.msra.mxu0 0
      %1505 = vmatprep.subr.bf16.mxu0 0
      %1506 = vmatpush2.bf16.msra.mxu0 0
      %1507 = vmatprep.subr.bf16.mxu0 0
      %1508 = vmatpush2.bf16.msra.mxu0 0
      %1509 = vmatprep.subr.bf16.mxu0 0
      %1510 = vmatpush2.bf16.msra.mxu0 0
      %1511 = vmatprep.subr.bf16.mxu0 0
      %1512 = vmatpush2.bf16.msra.mxu0 0
      %1513 = vmatprep.mubr.bf16.mxu0 0
      %1514 = vmatmul.mubr.bf16.gmra.mxu0 %v1464
      %v1515 = vpop.f32.mrf.mxu0
      %v1516 = vadd.f32 0.0, %v1515
      %v1517 = vpop.f32.mrf.mxu0
      %v1518 = vpop.f32.mrf.mxu0
      %v1519 = vadd.f32 0.0, %v1518
      %v1520 = vpop.f32.mrf.mxu0
      %1521 = vmatprep.mubr.bf16.mxu0 0
      %1522 = vmatmul.mubr.bf16.gmra.mxu0 %v1467
      %v1523 = vpop.f32.mrf.mxu0
      %v1524 = vadd.f32 0.0, %v1523
      %v1525 = vpop.f32.mrf.mxu0
      %v1526 = vpop.f32.mrf.mxu0
      %v1527 = vadd.f32 0.0, %v1526
      %v1528 = vpop.f32.mrf.mxu0
      %1529 = vmatprep.mubr.bf16.mxu0 0
      %1530 = vmatmul.mubr.bf16.gmra.mxu0 %v1470
      %v1531 = vpop.f32.mrf.mxu0
      %v1532 = vadd.f32 0.0, %v1531
      %v1533 = vpop.f32.mrf.mxu0
      %v1534 = vpop.f32.mrf.mxu0
      %v1535 = vadd.f32 0.0, %v1534
      %v1536 = vpop.f32.mrf.mxu0
      %1537 = vmatprep.mubr.bf16.mxu0 0
      %1538 = vmatmul.mubr.bf16.gmra.mxu0 %v1473
      %v1539 = vpop.f32.mrf.mxu0
      %v1540 = vadd.f32 0.0, %v1539
      %v1541 = vpop.f32.mrf.mxu0
      %v1542 = vpop.f32.mrf.mxu0
      %v1543 = vadd.f32 0.0, %v1542
      %v1544 = vpop.f32.mrf.mxu0
      %1545 = vmatprep.mubr.bf16.mxu0 0
      %1546 = vmatmul.mubr.bf16.gmra.mxu0 %v1476
      %v1547 = vpop.f32.mrf.mxu0
      %v1548 = vadd.f32 0.0, %v1547
      %v1549 = vpop.f32.mrf.mxu0
      %v1550 = vpop.f32.mrf.mxu0
      %v1551 = vpop.f32.mrf.mxu0
      %1552 = vdwg.mxu0
      %v1553 = vadd.f32 %v1438, %v1516
      %v1554 = vadd.f32 %v1439, %v1519
      %v1555 = vadd.f32 %v1440, %v1524
      %v1556 = vadd.f32 %v1441, %v1527
      %v1557 = vadd.f32 %v1442, %v1532
      %v1558 = vadd.f32 %v1443, %v1535
      %v1559 = vadd.f32 %v1444, %v1540
      %v1560 = vadd.f32 %v1445, %v1543
      %v1561 = vadd.f32 %v1446, %v1548
      %v1562 = vld [vmem:[%s218] sm:$0x1]
      %v1564 = vlaneseq
      %v1565 = vshrl.u32 %v1564, 7
      %v1566 = vsub.s32 0, %v1565
      %v1567 = vrot.slane %v1562, %v1566
      %v1569 = vadd.f32 %v1553, %v1567
      %v1570 = vadd.f32 %v1554, %v1567
      %v1571 = vadd.f32 %v1555, %v1567
      %v1572 = vadd.f32 %v1556, %v1567
      %v1573 = vadd.f32 %v1557, %v1567
      %v1574 = vadd.f32 %v1558, %v1567
      %v1575 = vadd.f32 %v1559, %v1567
      %v1576 = vadd.f32 %v1560, %v1567
      %v1577 = vadd.f32 %v1561, %v1567
      %v1578 = vmax.f32 %v1569, 0.0
      %v1579 = vmax.f32 %v1570, 0.0
      %v1580 = vmax.f32 %v1571, 0.0
      %v1581 = vmax.f32 %v1572, 0.0
      %v1582 = vmax.f32 %v1573, 0.0
      %v1583 = vmax.f32 %v1574, 0.0
      %v1584 = vmax.f32 %v1575, 0.0
      %v1585 = vmax.f32 %v1576, 0.0
      %v1586 = vmax.f32 %v1577, 0.0
      %v1587 = vpack.c.bf16 %v1579, %v1578
      %v1588 = vpack.c.bf16 %v1581, %v1580
      %v1589 = vpack.c.bf16 %v1583, %v1582
      %v1590 = vpack.c.bf16 %v1585, %v1584
      %v1591 = vpack.c.bf16 %v1586, %v1586
      %v1597 = vunpack.c.l.b16 %v1587
      %v1598 = vunpack.c.h.b16 %v1587
      %v1599 = vunpack.c.l.b16 %v1588
      %v1600 = vunpack.c.h.b16 %v1588
      %v1601 = vunpack.c.l.b16 %v1589
      %v1602 = vunpack.c.h.b16 %v1589
      %v1603 = vunpack.c.l.b16 %v1590
      %v1604 = vunpack.c.h.b16 %v1590
      %v1605 = vunpack.c.l.b16 %v1591
      %v1606 = vpack.c.b16 %v1597, %v1597
      %v1607 = vpack.c.b16 %v1598, %v1598
      %v1608 = vpack.c.b16 %v1599, %v1599
      %v1609 = vpack.c.b16 %v1600, %v1600
      %v1610 = vpack.c.b16 %v1601, %v1601
      %v1611 = vpack.c.b16 %v1602, %v1602
      %v1612 = vpack.c.b16 %v1603, %v1603
      %v1613 = vpack.c.b16 %v1604, %v1604
      %v1614 = vpack.c.b16 %v1605, %v1605
      %vm1624 = vcmask 60416
      %1625 = vst.msk [vmem:[%s226] sm:$0xf] %vm1624, %v1606
      %1626 = vst.msk [vmem:[%s226 + $0x4] sm:$0xf] %vm1624, %v1607
      %1627 = vst.msk [vmem:[%s226 + $0x8] sm:$0xf] %vm1624, %v1608
      %1628 = vst.msk [vmem:[%s226 + $0xc] sm:$0xf] %vm1624, %v1609
      %1629 = vst.msk [vmem:[%s226 + $0x10] sm:$0xf] %vm1624, %v1610
      %1630 = vst.msk [vmem:[%s226 + $0x14] sm:$0xf] %vm1624, %v1611
      %1631 = vst.msk [vmem:[%s226 + $0x18] sm:$0xf] %vm1624, %v1612
      %1632 = vst.msk [vmem:[%s226 + $0x1c] sm:$0xf] %vm1624, %v1613
      %1633 = vst.msk [vmem:[%s226 + $0x20] sm:$0xf] %vm1624, %v1614
      %p1634 = scmp.lt.s32.totalorder %s18, 1
      %s1635 = scalar_select %p1634, %s18, 1
      %p1636 = scmp.lt.s32.totalorder %s19, 0
      %s1637 = scalar_select %p1636, %s19, 0
      %s1638 = smul.addr %s1635, 9
      %s1639 = sadd.s32 %s1637, %s1638
      %s1640 = smul.addr %s1639, 4
      %s1641 = scalar_lea.vmem %s3, %s1640
      // Predicated region
      $region33: #{forward.6} parent=31 // pred_check
        %p1642 = pneg %p124
      $region34: #{forward.6} parent=31 // pred_check_branch
        %1644 = sbr.rel (%p1642) target = $region36
      $region35: #{forward.6} parent=31 // pred_region
        _
      $region36: #{forward.6} parent=31 // pred_fallthru
        _
    $region32: #{forward.6} parent=5 // pred_fallthru
      _
    %p1645 = scmp.le.s32.totalorder 2, %s9
    // Predicated region
    $region37: #{forward.6} parent=5 // pred_check
      %p1646 = pneg %p1645
    $region38: #{forward.6} parent=5 // pred_check_branch
      %1648 = sbr.rel (%p1646) target = $region40
    $region39: #{forward.6} parent=5 // pred_region
      %s1649 = ssub.s32 %s9, 2
      // Predicated region
      $region41: #{forward.6} parent=39 // pred_check
        %p1650 = pneg %p130
      $region42: #{forward.6} parent=39 // pred_check_branch
        %1652 = sbr.rel (%p1650) target = $region44
      $region43: #{forward.6} parent=39 // pred_region
        %p1653 = scmp.lt.s32.totalorder %s20, 1
        %s1654 = scalar_select %p1653, %s20, 1
        %p1655 = scmp.lt.s32.totalorder %s21, 0
        %s1656 = scalar_select %p1655, %s21, 0
        %s1657 = smul.addr %s1654, 9
        %s1658 = sadd.s32 %s1656, %s1657
        %s1659 = smul.addr %s1658, 4
        %s1660 = scalar_lea.vmem %s3, %s1659
      $region44: #{forward.6} parent=39 // pred_fallthru
        _
    $region40: #{forward.6} parent=5 // pred_fallthru
      _
  $region6: #{forward.6} parent=0 // loop_footer
    %s13 = sadd.s32 1, %s9
  $region7: #{forward.6} parent=0 // loop_footer_branch
    %8 = sbr.rel target = $region3
  $region8: #{forward.6} parent=0 // loop_exit
    _

// kernel: forward.7
$region0: #{forward.7}
  #allocation0 [shape = 'u32[]', space=smem, size = 0x4, offset = 0x4, fixed_abs, tag = 'smem constant byte address 0x4 - core index']
  #allocation1 [shape = 'u32[144,128]{1,0:T(1,128)}', space=vmem, size = 0x12000, scoped, tag = 'internal scratch']
  %s0 = inlined_call_operand.vmem [shape: bf16[2,110,8], index: 0, kind: input, shape index: {}]
  %s1 = inlined_call_operand.vmem [shape: bf16[9,8,8], index: 1, kind: input, shape index: {}]
  %s2 = inlined_call_operand.vmem [shape: f32[1,8], index: 2, kind: input, shape index: {}]
  %s3 = inlined_call_operand.vmem [shape: bf16[2,80,8], index: 3, kind: input, shape index: {}]
  %s4 = inlined_call_operand.vmem [shape: bf16[2,80,8], index: 4, kind: output, shape index: {}]
  %s5 = sld [smem:[#allocation0]]
  $region49: #{forward.7} parent=0
    _
  %s7 = ssub.s32 1, %s5
  %s8 = scalar_select 0, %s7, %s5
  loop: start=0, step=1, limit=4
  $region2: #{forward.7} parent=0 // loop_pre_header
    _
  $region3: #{forward.7} parent=0 // loop_header
    %s10 = sphi 0, %s14
    %p11 = scmp.ge.s32.totalorder %s10, 4
    %s17 = sphi 0, %s29
    %s18 = sphi 0, %s25
    %s19 = sphi 0, %s17
    %s20 = sphi 0, %s18
    %s21 = sphi 0, %s19
    %s22 = sphi 0, %s20
    %s32 = sphi 0, %s34
    %s35 = sphi 0, %s32
    %s36 = sphi 0, %s35
    %s52 = sphi 0, %s36
    %s58 = sphi 0, %s60
    %s61 = sphi 0, %s58
    %s62 = sphi 0, %s61
    %s78 = sphi 0, %s62
    %s84 = sphi 0, %s86
    %s87 = sphi 0, %s84
    %s88 = sphi 0, %s87
    %s104 = sphi 0, %s88
    %s112 = sphi 0, %s114
    %s115 = sphi 0, %s112
    %s116 = sphi 0, %s115
    %s132 = sphi 0, %s116
    %s140 = sphi 0, %s142
    %s143 = sphi 0, %s140
    %s144 = sphi 0, %s143
    %s160 = sphi 0, %s144
  $region4: #{forward.7} parent=0 // loop_header_branch
    %13 = sbr.rel (%p11) target = $region8
  $region5: #{forward.7} parent=0 // loop_body
    %s15 = ssub.s32 %s10, 1
    %s16 = ssub.s32 %s10, 2
    %s23 = sadd.s32 1, %s18
    %p24 = scmp.ge.s32.totalorder %s23, 1
    %s25 = scalar_select %p24, 0, %s23
    %s26 = sadd.s32 1, %s17
    %s27 = scalar_select %p24, %s26, %s17
    %p28 = scmp.ge.s32.totalorder %s27, 2
    %s29 = scalar_select %p28, 0, %s27
    %s30 = ssub.s32 %s17, %s29
    %p31 = scmp.eq.s32.totalorder %s30, 0
    %s33 = sadd.s32 %s32, 1
    %s34 = scalar_select %p31, %s32, %s33
    %p37 = pneg %p31
    %p38 = scmp.eq.s32.totalorder %s10, 1
    %p39 = por %p37, %p38
    %p40 = scmp.ne.s32.totalorder %s32, %s35
    %p41 = scmp.eq.s32.totalorder %s10, 0
    %p42 = por %p40, %p41
    %p43 = scmp.ne.s32.totalorder %s32, %s35
    %p44 = scmp.eq.s32.totalorder %s15, 1
    %p45 = por %p43, %p44
    %p46 = scmp.ne.s32.totalorder %s35, %s36
    %p47 = scmp.eq.s32.totalorder %s15, 0
    %p48 = por %p46, %p47
    %p49 = scmp.ne.s32.totalorder %s35, %s36
    %p50 = scmp.eq.s32.totalorder %s16, 1
    %p51 = por %p49, %p50
    %p53 = scmp.ne.s32.totalorder %s36, %s52
    %p54 = scmp.eq.s32.totalorder %s16, 0
    %p55 = por %p53, %p54
    %s56 = ssub.s32 %s18, %s25
    %p57 = scmp.eq.s32.totalorder %s56, 0
    %s59 = sadd.s32 %s58, 1
    %s60 = scalar_select %p57, %s58, %s59
    %p63 = pneg %p57
    %p64 = scmp.eq.s32.totalorder %s10, 1
    %p65 = por %p63, %p64
    %p66 = scmp.ne.s32.totalorder %s58, %s61
    %p67 = scmp.eq.s32.totalorder %s10, 0
    %p68 = por %p66, %p67
    %p69 = scmp.ne.s32.totalorder %s58, %s61
    %p70 = scmp.eq.s32.totalorder %s15, 1
    %p71 = por %p69, %p70
    %p72 = scmp.ne.s32.totalorder %s61, %s62
    %p73 = scmp.eq.s32.totalorder %s15, 0
    %p74 = por %p72, %p73
    %p75 = scmp.ne.s32.totalorder %s61, %s62
    %p76 = scmp.eq.s32.totalorder %s16, 1
    %p77 = por %p75, %p76
    %p79 = scmp.ne.s32.totalorder %s62, %s78
    %p80 = scmp.eq.s32.totalorder %s16, 0
    %p81 = por %p79, %p80
    %s82 = ssub.s32 %s18, %s25
    %p83 = scmp.eq.s32.totalorder %s82, 0
    %s85 = sadd.s32 %s84, 1
    %s86 = scalar_select %p83, %s84, %s85
    %p89 = pneg %p83
    %p90 = scmp.eq.s32.totalorder %s10, 1
    %p91 = por %p89, %p90
    %p92 = scmp.ne.s32.totalorder %s84, %s87
    %p93 = scmp.eq.s32.totalorder %s10, 0
    %p94 = por %p92, %p93
    %p95 = scmp.ne.s32.totalorder %s84, %s87
    %p96 = scmp.eq.s32.totalorder %s15, 1
    %p97 = por %p95, %p96
    %p98 = scmp.ne.s32.totalorder %s87, %s88
    %p99 = scmp.eq.s32.totalorder %s15, 0
    %p100 = por %p98, %p99
    %p101 = scmp.ne.s32.totalorder %s87, %s88
    %p102 = scmp.eq.s32.totalorder %s16, 1
    %p103 = por %p101, %p102
    %p105 = scmp.ne.s32.totalorder %s88, %s104
    %p106 = scmp.eq.s32.totalorder %s16, 0
    %p107 = por %p105, %p106
    %s108 = ssub.s32 %s17, %s29
    %s109 = ssub.s32 %s18, %s25
    %s110 = sor.u32 %s108, %s109
    %p111 = scmp.eq.s32.totalorder %s110, 0
    %s113 = sadd.s32 %s112, 1
    %s114 = scalar_select %p111, %s112, %s113
    %p117 = pneg %p111
    %p118 = scmp.eq.s32.totalorder %s10, 1
    %p119 = por %p117, %p118
    %p120 = scmp.ne.s32.totalorder %s112, %s115
    %p121 = scmp.eq.s32.totalorder %s10, 0
    %p122 = por %p120, %p121
    %p123 = scmp.ne.s32.totalorder %s112, %s115
    %p124 = scmp.eq.s32.totalorder %s15, 1
    %p125 = por %p123, %p124
    %p126 = scmp.ne.s32.totalorder %s115, %s116
    %p127 = scmp.eq.s32.totalorder %s15, 0
    %p128 = por %p126, %p127
    %p129 = scmp.ne.s32.totalorder %s115, %s116
    %p130 = scmp.eq.s32.totalorder %s16, 1
    %p131 = por %p129, %p130
    %p133 = scmp.ne.s32.totalorder %s116, %s132
    %p134 = scmp.eq.s32.totalorder %s16, 0
    %p135 = por %p133, %p134
    %s136 = ssub.s32 %s17, %s29
    %s137 = ssub.s32 %s18, %s25
    %s138 = sor.u32 %s136, %s137
    %p139 = scmp.eq.s32.totalorder %s138, 0
    %s141 = sadd.s32 %s140, 1
    %s142 = scalar_select %p139, %s140, %s141
    %p145 = pneg %p139
    %p146 = scmp.eq.s32.totalorder %s10, 1
    %p147 = por %p145, %p146
    %p148 = scmp.ne.s32.totalorder %s140, %s143
    %p149 = scmp.eq.s32.totalorder %s10, 0
    %p150 = por %p148, %p149
    %p151 = scmp.ne.s32.totalorder %s140, %s143
    %p152 = scmp.eq.s32.totalorder %s15, 1
    %p153 = por %p151, %p152
    %p154 = scmp.ne.s32.totalorder %s143, %s144
    %p155 = scmp.eq.s32.totalorder %s15, 0
    %p156 = por %p154, %p155
    %p157 = scmp.ne.s32.totalorder %s143, %s144
    %p158 = scmp.eq.s32.totalorder %s16, 1
    %p159 = por %p157, %p158
    %p161 = scmp.ne.s32.totalorder %s144, %s160
    %p162 = scmp.eq.s32.totalorder %s16, 0
    %p163 = por %p161, %p162
    %p164 = scmp.le.s32.totalorder 1, %s10
    %p165 = scmp.lt.s32.totalorder %s10, 3
    %p166 = pnand %p164, %p165
    %p167 = pneg %p166
    // Predicated region
    $region9: #{forward.7} parent=5 // pred_check
      _
    $region10: #{forward.7} parent=5 // pred_check_branch
      %169 = sbr.rel (%p166) target = $region12
    $region11: #{forward.7} parent=5 // pred_region
      %s170 = ssub.s32 %s10, 1
      // Predicated region
      $region13: #{forward.7} parent=11 // pred_check
        %p171 = pneg %p74
      $region14: #{forward.7} parent=11 // pred_check_branch
        %173 = sbr.rel (%p171) target = $region16
      $region15: #{forward.7} parent=11 // pred_region
        %p174 = scmp.lt.s32.totalorder %s20, 0
        %s175 = scalar_select %p174, %s20, 0
        %s176 = smul.addr %s175, 4
        %s177 = scalar_lea.vmem %s1, %s176
      $region16: #{forward.7} parent=11 // pred_fallthru
        _
      // Predicated region
      $region17: #{forward.7} parent=11 // pred_check
        %p178 = pneg %p100
      $region18: #{forward.7} parent=11 // pred_check_branch
        %180 = sbr.rel (%p178) target = $region20
      $region19: #{forward.7} parent=11 // pred_region
        %p181 = scmp.lt.s32.totalorder %s20, 0
        %s182 = scalar_select %p181, %s20, 0
        %s183 = scalar_lea.vmem %s2, %s182
      $region20: #{forward.7} parent=11 // pred_fallthru
        _
    $region12: #{forward.7} parent=5 // pred_fallthru
      _
    %p184 = scmp.lt.s32.totalorder %s10, 2
    // Predicated region
    $region21: #{forward.7} parent=5 // pred_check
      %p185 = pneg %p184
    $region22: #{forward.7} parent=5 // pred_check_branch
      %187 = sbr.rel (%p185) target = $region24
    $region23: #{forward.7} parent=5 // pred_region
      // Predicated region
      $region25: #{forward.7} parent=23 // pred_check
        %p188 = pneg %p42
      $region26: #{forward.7} parent=23 // pred_check_branch
        %190 = sbr.rel (%p188) target = $region28
      $region27: #{forward.7} parent=23 // pred_region
        %p191 = scmp.lt.s32.totalorder %s17, 1
        %s192 = scalar_select %p191, %s17, 1
        %s193 = smul.addr %s192, 14
        %s194 = smul.addr %s193, 4
        %s195 = scalar_lea.vmem %s0, %s194
      $region28: #{forward.7} parent=23 // pred_fallthru
        _
      // Predicated region
      $region29: #{forward.7} parent=23 // pred_check
        %p196 = pneg %p122
      $region30: #{forward.7} parent=23 // pred_check_branch
        %198 = sbr.rel (%p196) target = $region32
      $region31: #{forward.7} parent=23 // pred_region
        %p199 = scmp.lt.s32.totalorder %s17, 1
        %s200 = scalar_select %p199, %s17, 1
        %p201 = scmp.lt.s32.totalorder %s18, 0
        %s202 = scalar_select %p201, %s18, 0
        %s203 = smul.addr %s200, 10
        %s204 = sadd.s32 %s202, %s203
        %s205 = smul.addr %s204, 4
        %s206 = scalar_lea.vmem %s3, %s205
      $region32: #{forward.7} parent=23 // pred_fallthru
        _
    $region24: #{forward.7} parent=5 // pred_fallthru
      _
    %p207 = scmp.le.s32.totalorder 1, %s10
    %p208 = scmp.lt.s32.totalorder %s10, 3
    %p209 = pnand %p207, %p208
    %p210 = pneg %p209
    // Predicated region
    $region33: #{forward.7} parent=5 // pred_check
      _
    $region34: #{forward.7} parent=5 // pred_check_branch
      %212 = sbr.rel (%p209) target = $region36
    $region35: #{forward.7} parent=5 // pred_region
      %s213 = ssub.s32 %s10, 1
      %p214 = scmp.lt.s32.totalorder %s19, 1
      %s215 = scalar_select %p214, %s19, 1
      %s216 = smul.addr %s215, 14
      %s217 = smul.addr %s216, 4
      %s218 = scalar_lea.vmem %s0, %s217
      %p219 = pneg %p48
      %p220 = pneg %p45
      %p221 = scmp.lt.s32.totalorder %s20, 0
      %s222 = scalar_select %p221, %s20, 0
      %s223 = smul.addr %s222, 4
      %s224 = scalar_lea.vmem %s1, %s223
      %p225 = pneg %p74
      %p226 = pneg %p71
      %p227 = scmp.lt.s32.totalorder %s20, 0
      %s228 = scalar_select %p227, %s20, 0
      %s229 = scalar_lea.vmem %s2, %s228
      %p230 = pneg %p100
      %p231 = pneg %p97
      %p232 = scmp.lt.s32.totalorder %s19, 1
      %s233 = scalar_select %p232, %s19, 1
      %p234 = scmp.lt.s32.totalorder %s20, 0
      %s235 = scalar_select %p234, %s20, 0
      %s236 = smul.addr %s233, 10
      %s237 = sadd.s32 %s235, %s236
      %s238 = smul.addr %s237, 4
      %s239 = scalar_lea.vmem %s3, %s238
      %p240 = pneg %p128
      %p241 = pneg %p125
      %p242 = pneg %p156
      %p243 = pneg %p153
      %p244 = scmp.lt.s32.totalorder %s19, 1
      %s245 = scalar_select %p244, %s19, 1
      %p246 = scmp.lt.s32.totalorder %s20, 0
      %s247 = scalar_select %p246, %s20, 0
      %s248 = smul.addr %s245, 10
      %s249 = sadd.s32 %s247, %s248
      %s250 = smul.addr %s249, 4
      %s251 = scalar_lea.vmem %s4, %s250
      %p252 = scmp.lt.s32.totalorder %s19, 1
      %s253 = scalar_select %p252, %s19, 1
      %s254 = smul.addr %s253, 14
      %s255 = smul.addr %s254, 4
      %s256 = scalar_lea.vmem %s0, %s255
      %p257 = scmp.lt.s32.totalorder %s20, 0
      %s258 = scalar_select %p257, %s20, 0
      %s259 = smul.addr %s258, 4
      %s260 = scalar_lea.vmem %s1, %s259
      %p261 = scmp.lt.s32.totalorder %s20, 0
      %s262 = scalar_select %p261, %s20, 0
      %s263 = scalar_lea.vmem %s2, %s262
      %p264 = scmp.lt.s32.totalorder %s19, 1
      %s265 = scalar_select %p264, %s19, 1
      %p266 = scmp.lt.s32.totalorder %s20, 0
      %s267 = scalar_select %p266, %s20, 0
      %s268 = smul.addr %s265, 10
      %s269 = sadd.s32 %s267, %s268
      %s270 = smul.addr %s269, 4
      %s271 = scalar_lea.vmem %s3, %s270
      %p272 = scmp.lt.s32.totalorder %s19, 1
      %s273 = scalar_select %p272, %s19, 1
      %p274 = scmp.lt.s32.totalorder %s20, 0
      %s275 = scalar_select %p274, %s20, 0
      %s276 = smul.addr %s273, 10
      %s277 = sadd.s32 %s275, %s276
      %s278 = smul.addr %s277, 4
      %s279 = scalar_lea.vmem %s4, %s278
      %v281 = vld [vmem:[%s256] sm:$0xf]
      %v282 = vld [vmem:[%s256 + $0x4] sm:$0xf]
      %v283 = vld [vmem:[%s256 + $0x8] sm:$0xf]
      %v284 = vld [vmem:[%s256 + $0xc] sm:$0xf]
      %v285 = vld [vmem:[%s256 + $0x10] sm:$0xf]
      %v286 = vld [vmem:[%s256 + $0x14] sm:$0xf]
      %v287 = vld [vmem:[%s256 + $0x18] sm:$0xf]
      %v288 = vld [vmem:[%s256 + $0x1c] sm:$0xf]
      %v289 = vld [vmem:[%s256 + $0x20] sm:$0xf]
      %v290 = vld [vmem:[%s256 + $0x24] sm:$0xf]
      %v291 = vld [vmem:[%s260] sm:$0xf]
      %v292 = vld [vmem:[%s256 + $0x28] sm:$0x1]
      %s293 = scalar_lea.vmem %s260, 4
      %v294 = vld [vmem:[%s293] sm:$0xf]
      %v306 = vunpack.c.l.b16 %v281
      %v307 = vunpack.c.l.b16 %v282
      %v308 = vunpack.c.l.b16 %v283
      %v309 = vunpack.c.l.b16 %v284
      %v310 = vunpack.c.l.b16 %v285
      %v311 = vunpack.c.l.b16 %v286
      %v312 = vunpack.c.l.b16 %v287
      %v313 = vunpack.c.l.b16 %v288
      %v314 = vunpack.c.l.b16 %v289
      %v315 = vunpack.c.l.b16 %v290
      %v316 = vunpack.c.l.b16 %v292
      %v317 = vpack.c.b16 %v307, %v306
      %v318 = vpack.c.b16 %v309, %v308
      %v319 = vpack.c.b16 %v311, %v310
      %v320 = vpack.c.b16 %v313, %v312
      %v321 = vpack.c.b16 %v315, %v314
      %v322 = vpack.c.b16 %v316, %v316
      %vm323 = vsmask.f32 7424
      %v325 = vshrl.u32 %v317, 16
      %v327 = vshll.u32 %v317, 16
      %v329 = vrot.slane %v327, 1
      %v330 = vor.u32 %v325, %v329
      %v332 = vshll.u32 %v318, 16
      %v334 = vrot.slane %v332, 1
      %v335 = vsel %vm323, %v330, %v334
      %v336 = vshrl.u32 %v318, 16
      %v338 = vor.u32 %v336, %v334
      %v340 = vshll.u32 %v319, 16
      %v342 = vrot.slane %v340, 1
      %v343 = vsel %vm323, %v338, %v342
      %v344 = vshrl.u32 %v319, 16
      %v346 = vor.u32 %v344, %v342
      %v348 = vshll.u32 %v320, 16
      %v350 = vrot.slane %v348, 1
      %v351 = vsel %vm323, %v346, %v350
      %v352 = vshrl.u32 %v320, 16
      %v354 = vor.u32 %v352, %v350
      %v356 = vshll.u32 %v321, 16
      %v358 = vrot.slane %v356, 1
      %v359 = vsel %vm323, %v354, %v358
      %v360 = vshrl.u32 %v321, 16
      %v362 = vor.u32 %v360, %v358
      %v364 = vshll.u32 %v322, 16
      %v366 = vrot.slane %v364, 1
      %v367 = vsel %vm323, %v362, %v366
      %vm368 = vcmask 64512
      %v370 = vsel %vm368, %v335, 0
      %v373 = vsel %vm368, %v343, 0
      %v376 = vsel %vm368, %v351, 0
      %v379 = vsel %vm368, %v359, 0
      %v382 = vsel %vm368, %v367, 0
      %vm384 = vcmask 1043456
      %v386 = vsel %vm384, %v294, 0
      %388 = vmatprep.subr.bf16.mxu0 0
      %389 = vmatpush1.bf16.msra.mxu0 0
      %390 = vmatprep.subr.bf16.mxu0 0
      %391 = vmatpush1.bf16.msra.mxu0 0
      %392 = vmatprep.subr.bf16.mxu0 0
      %393 = vmatpush1.bf16.msra.mxu0 0
      %394 = vmatprep.subr.bf16.mxu0 0
      %395 = vmatpush1.bf16.msra.mxu0 0
      %396 = vmatprep.subr.bf16.mxu0 0
      %397 = vmatpush1.bf16.msra.mxu0 0
      %398 = vmatprep.subr.bf16.mxu0 0
      %399 = vmatpush1.bf16.msra.mxu0 0
      %400 = vmatprep.subr.bf16.mxu0 0
      %401 = vmatpush1.bf16.msra.mxu0 0
      %402 = vmatprep.subr.bf16.mxu0 0
      %403 = vmatpush1.bf16.msra.mxu0 %v386
      %404 = vmatprep.subr.bf16.mxu0 0
      %405 = vmatpush2.bf16.msra.mxu0 0
      %406 = vmatprep.subr.bf16.mxu0 0
      %407 = vmatpush2.bf16.msra.mxu0 0
      %408 = vmatprep.subr.bf16.mxu0 0
      %409 = vmatpush2.bf16.msra.mxu0 0
      %410 = vmatprep.subr.bf16.mxu0 0
      %411 = vmatpush2.bf16.msra.mxu0 0
      %412 = vmatprep.subr.bf16.mxu0 0
      %413 = vmatpush2.bf16.msra.mxu0 0
      %414 = vmatprep.subr.bf16.mxu0 0
      %415 = vmatpush2.bf16.msra.mxu0 0
      %416 = vmatprep.subr.bf16.mxu0 0
      %417 = vmatpush2.bf16.msra.mxu0 0
      %418 = vmatprep.subr.bf16.mxu0 0
      %419 = vmatpush2.bf16.msra.mxu0 0
      %420 = vmatprep.mubr.bf16.mxu0 0
      %421 = vmatmul.mubr.bf16.gmra.mxu0 %v370
      %v422 = vpop.f32.mrf.mxu0
      %v423 = vadd.f32 0.0, %v422
      %v424 = vpop.f32.mrf.mxu0
      %v425 = vpop.f32.mrf.mxu0
      %v426 = vadd.f32 0.0, %v425
      %v427 = vpop.f32.mrf.mxu0
      %428 = vmatprep.mubr.bf16.mxu0 0
      %429 = vmatmul.mubr.bf16.gmra.mxu0 %v373
      %v430 = vpop.f32.mrf.mxu0
      %v431 = vadd.f32 0.0, %v430
      %v432 = vpop.f32.mrf.mxu0
      %v433 = vpop.f32.mrf.mxu0
      %v434 = vadd.f32 0.0, %v433
      %v435 = vpop.f32.mrf.mxu0
      %436 = vmatprep.mubr.bf16.mxu0 0
      %437 = vmatmul.mubr.bf16.gmra.mxu0 %v376
      %v438 = vpop.f32.mrf.mxu0
      %v439 = vadd.f32 0.0, %v438
      %v440 = vpop.f32.mrf.mxu0
      %v441 = vpop.f32.mrf.mxu0
      %v442 = vadd.f32 0.0, %v441
      %v443 = vpop.f32.mrf.mxu0
      %444 = vmatprep.mubr.bf16.mxu0 0
      %445 = vmatmul.mubr.bf16.gmra.mxu0 %v379
      %v446 = vpop.f32.mrf.mxu0
      %v447 = vadd.f32 0.0, %v446
      %v448 = vpop.f32.mrf.mxu0
      %v449 = vpop.f32.mrf.mxu0
      %v450 = vadd.f32 0.0, %v449
      %v451 = vpop.f32.mrf.mxu0
      %452 = vmatprep.mubr.bf16.mxu0 0
      %453 = vmatmul.mubr.bf16.gmra.mxu0 %v382
      %v454 = vpop.f32.mrf.mxu0
      %v455 = vadd.f32 0.0, %v454
      %v456 = vpop.f32.mrf.mxu0
      %v457 = vpop.f32.mrf.mxu0
      %v458 = vadd.f32 0.0, %v457
      %v459 = vpop.f32.mrf.mxu0
      %460 = vdwg.mxu0
      %v461 = vsel %vm368, %v317, 0
      %v463 = vsel %vm368, %v318, 0
      %v465 = vsel %vm368, %v319, 0
      %v467 = vsel %vm368, %v320, 0
      %v469 = vsel %vm368, %v321, 0
      %v472 = vsel %vm384, %v291, 0
      %474 = vmatprep.subr.bf16.mxu0 0
      %475 = vmatpush1.bf16.msra.mxu0 0
      %476 = vmatprep.subr.bf16.mxu0 0
      %477 = vmatpush1.bf16.msra.mxu0 0
      %478 = vmatprep.subr.bf16.mxu0 0
      %479 = vmatpush1.bf16.msra.mxu0 0
      %480 = vmatprep.subr.bf16.mxu0 0
      %481 = vmatpush1.bf16.msra.mxu0 0
      %482 = vmatprep.subr.bf16.mxu0 0
      %483 = vmatpush1.bf16.msra.mxu0 0
      %484 = vmatprep.subr.bf16.mxu0 0
      %485 = vmatpush1.bf16.msra.mxu0 0
      %486 = vmatprep.subr.bf16.mxu0 0
      %487 = vmatpush1.bf16.msra.mxu0 0
      %488 = vmatprep.subr.bf16.mxu0 0
      %489 = vmatpush1.bf16.msra.mxu0 %v472
      %490 = vmatprep.subr.bf16.mxu0 0
      %491 = vmatpush2.bf16.msra.mxu0 0
      %492 = vmatprep.subr.bf16.mxu0 0
      %493 = vmatpush2.bf16.msra.mxu0 0
      %494 = vmatprep.subr.bf16.mxu0 0
      %495 = vmatpush2.bf16.msra.mxu0 0
      %496 = vmatprep.subr.bf16.mxu0 0
      %497 = vmatpush2.bf16.msra.mxu0 0
      %498 = vmatprep.subr.bf16.mxu0 0
      %499 = vmatpush2.bf16.msra.mxu0 0
      %500 = vmatprep.subr.bf16.mxu0 0
      %501 = vmatpush2.bf16.msra.mxu0 0
      %502 = vmatprep.subr.bf16.mxu0 0
      %503 = vmatpush2.bf16.msra.mxu0 0
      %504 = vmatprep.subr.bf16.mxu0 0
      %505 = vmatpush2.bf16.msra.mxu0 0
      %506 = vmatprep.mubr.bf16.mxu0 0
      %507 = vmatmul.mubr.bf16.gmra.mxu0 %v461
      %v508 = vpop.f32.mrf.mxu0
      %v509 = vadd.f32 %v423, %v508
      %v510 = vpop.f32.mrf.mxu0
      %v511 = vpop.f32.mrf.mxu0
      %v512 = vadd.f32 %v426, %v511
      %v513 = vpop.f32.mrf.mxu0
      %514 = vmatprep.mubr.bf16.mxu0 0
      %515 = vmatmul.mubr.bf16.gmra.mxu0 %v463
      %v516 = vpop.f32.mrf.mxu0
      %v517 = vadd.f32 %v431, %v516
      %v518 = vpop.f32.mrf.mxu0
      %v519 = vpop.f32.mrf.mxu0
      %v520 = vadd.f32 %v434, %v519
      %v521 = vpop.f32.mrf.mxu0
      %522 = vmatprep.mubr.bf16.mxu0 0
      %523 = vmatmul.mubr.bf16.gmra.mxu0 %v465
      %v524 = vpop.f32.mrf.mxu0
      %v525 = vadd.f32 %v439, %v524
      %v526 = vpop.f32.mrf.mxu0
      %v527 = vpop.f32.mrf.mxu0
      %v528 = vadd.f32 %v442, %v527
      %v529 = vpop.f32.mrf.mxu0
      %530 = vmatprep.mubr.bf16.mxu0 0
      %531 = vmatmul.mubr.bf16.gmra.mxu0 %v467
      %v532 = vpop.f32.mrf.mxu0
      %v533 = vadd.f32 %v447, %v532
      %v534 = vpop.f32.mrf.mxu0
      %v535 = vpop.f32.mrf.mxu0
      %v536 = vadd.f32 %v450, %v535
      %v537 = vpop.f32.mrf.mxu0
      %538 = vmatprep.mubr.bf16.mxu0 0
      %539 = vmatmul.mubr.bf16.gmra.mxu0 %v469
      %v540 = vpop.f32.mrf.mxu0
      %v541 = vadd.f32 %v455, %v540
      %v542 = vpop.f32.mrf.mxu0
      %v543 = vpop.f32.mrf.mxu0
      %v544 = vadd.f32 %v458, %v543
      %v545 = vpop.f32.mrf.mxu0
      %546 = vdwg.mxu0
      %v547 = vld [vmem:[%s256] sm:$0xe]
      %s548 = scalar_lea.vmem %s260, 8
      %v549 = vld [vmem:[%s548] sm:$0xf]
      %v551 = vunpack.c.l.b16 %v547
      %v552 = vpack.c.b16 %v307, %v551
      %vm553 = vcmask 1046528
      %v554 = vrot.slane %v552, 1
      %v555 = vrot.slane %v318, 1
      %v556 = vsel %vm553, %v554, %v555
      %v557 = vrot.slane %v319, 1
      %v558 = vsel %vm553, %v555, %v557
      %v559 = vrot.slane %v320, 1
      %v560 = vsel %vm553, %v557, %v559
      %v561 = vrot.slane %v321, 1
      %v562 = vsel %vm553, %v559, %v561
      %v563 = vrot.slane %v322, 1
      %v564 = vsel %vm553, %v561, %v563
      %v566 = vsel %vm368, %v556, 0
      %v569 = vsel %vm368, %v558, 0
      %v572 = vsel %vm368, %v560, 0
      %v575 = vsel %vm368, %v562, 0
      %v578 = vsel %vm368, %v564, 0
      %v581 = vsel %vm384, %v549, 0
      %583 = vmatprep.subr.bf16.mxu0 0
      %584 = vmatpush1.bf16.msra.mxu0 0
      %585 = vmatprep.subr.bf16.mxu0 0
      %586 = vmatpush1.bf16.msra.mxu0 0
      %587 = vmatprep.subr.bf16.mxu0 0
      %588 = vmatpush1.bf16.msra.mxu0 0
      %589 = vmatprep.subr.bf16.mxu0 0
      %590 = vmatpush1.bf16.msra.mxu0 0
      %591 = vmatprep.subr.bf16.mxu0 0
      %592 = vmatpush1.bf16.msra.mxu0 0
      %593 = vmatprep.subr.bf16.mxu0 0
      %594 = vmatpush1.bf16.msra.mxu0 0
      %595 = vmatprep.subr.bf16.mxu0 0
      %596 = vmatpush1.bf16.msra.mxu0 0
      %597 = vmatprep.subr.bf16.mxu0 0
      %598 = vmatpush1.bf16.msra.mxu0 %v581
      %599 = vmatprep.subr.bf16.mxu0 0
      %600 = vmatpush2.bf16.msra.mxu0 0
      %601 = vmatprep.subr.bf16.mxu0 0
      %602 = vmatpush2.bf16.msra.mxu0 0
      %603 = vmatprep.subr.bf16.mxu0 0
      %604 = vmatpush2.bf16.msra.mxu0 0
      %605 = vmatprep.subr.bf16.mxu0 0
      %606 = vmatpush2.bf16.msra.mxu0 0
      %607 = vmatprep.subr.bf16.mxu0 0
      %608 = vmatpush2.bf16.msra.mxu0 0
      %609 = vmatprep.subr.bf16.mxu0 0
      %610 = vmatpush2.bf16.msra.mxu0 0
      %611 = vmatprep.subr.bf16.mxu0 0
      %612 = vmatpush2.bf16.msra.mxu0 0
      %613 = vmatprep.subr.bf16.mxu0 0
      %614 = vmatpush2.bf16.msra.mxu0 0
      %615 = vmatprep.mubr.bf16.mxu0 0
      %616 = vmatmul.mubr.bf16.gmra.mxu0 %v566
      %v617 = vpop.f32.mrf.mxu0
      %v618 = vadd.f32 0.0, %v617
      %v619 = vpop.f32.mrf.mxu0
      %v620 = vpop.f32.mrf.mxu0
      %v621 = vadd.f32 0.0, %v620
      %v622 = vpop.f32.mrf.mxu0
      %623 = vmatprep.mubr.bf16.mxu0 0
      %624 = vmatmul.mubr.bf16.gmra.mxu0 %v569
      %v625 = vpop.f32.mrf.mxu0
      %v626 = vadd.f32 0.0, %v625
      %v627 = vpop.f32.mrf.mxu0
      %v628 = vpop.f32.mrf.mxu0
      %v629 = vadd.f32 0.0, %v628
      %v630 = vpop.f32.mrf.mxu0
      %631 = vmatprep.mubr.bf16.mxu0 0
      %632 = vmatmul.mubr.bf16.gmra.mxu0 %v572
      %v633 = vpop.f32.mrf.mxu0
      %v634 = vadd.f32 0.0, %v633
      %v635 = vpop.f32.mrf.mxu0
      %v636 = vpop.f32.mrf.mxu0
      %v637 = vadd.f32 0.0, %v636
      %v638 = vpop.f32.mrf.mxu0
      %639 = vmatprep.mubr.bf16.mxu0 0
      %640 = vmatmul.mubr.bf16.gmra.mxu0 %v575
      %v641 = vpop.f32.mrf.mxu0
      %v642 = vadd.f32 0.0, %v641
      %v643 = vpop.f32.mrf.mxu0
      %v644 = vpop.f32.mrf.mxu0
      %v645 = vadd.f32 0.0, %v644
      %v646 = vpop.f32.mrf.mxu0
      %647 = vmatprep.mubr.bf16.mxu0 0
      %648 = vmatmul.mubr.bf16.gmra.mxu0 %v578
      %v649 = vpop.f32.mrf.mxu0
      %v650 = vadd.f32 0.0, %v649
      %v651 = vpop.f32.mrf.mxu0
      %v652 = vpop.f32.mrf.mxu0
      %v653 = vadd.f32 0.0, %v652
      %v654 = vpop.f32.mrf.mxu0
      %655 = vdwg.mxu0
      %v656 = vadd.f32 %v509, %v618
      %v657 = vadd.f32 %v512, %v621
      %v658 = vadd.f32 %v517, %v626
      %v659 = vadd.f32 %v520, %v629
      %v660 = vadd.f32 %v525, %v634
      %v661 = vadd.f32 %v528, %v637
      %v662 = vadd.f32 %v533, %v642
      %v663 = vadd.f32 %v536, %v645
      %v664 = vadd.f32 %v541, %v650
      %v665 = vadd.f32 %v544, %v653
      %v666 = vld [vmem:[%s256 + $0x4] sm:$0xe]
      %v667 = vld [vmem:[%s256 + $0x8] sm:$0xf]
      %v668 = vld [vmem:[%s256 + $0xc] sm:$0xf]
      %v669 = vld [vmem:[%s256 + $0x10] sm:$0xf]
      %v670 = vld [vmem:[%s256 + $0x14] sm:$0xf]
      %v671 = vld [vmem:[%s256 + $0x18] sm:$0xf]
      %v672 = vld [vmem:[%s256 + $0x1c] sm:$0xf]
      %v673 = vld [vmem:[%s256 + $0x20] sm:$0xf]
      %v674 = vld [vmem:[%s256 + $0x24] sm:$0xf]
      %v675 = vld [vmem:[%s256 + $0x28] sm:$0xf]
      %v676 = vld [vmem:[%s256 + $0x2c] sm:$0x1]
      %s677 = scalar_lea.vmem %s260, 12
      %v678 = vld [vmem:[%s677] sm:$0xf]
      %v690 = vunpack.c.l.b16 %v666
      %v691 = vunpack.c.l.b16 %v667
      %v692 = vunpack.c.l.b16 %v668
      %v693 = vunpack.c.l.b16 %v669
      %v694 = vunpack.c.l.b16 %v670
      %v695 = vunpack.c.l.b16 %v671
      %v696 = vunpack.c.l.b16 %v672
      %v697 = vunpack.c.l.b16 %v673
      %v698 = vunpack.c.l.b16 %v674
      %v699 = vunpack.c.l.b16 %v675
      %v700 = vunpack.c.l.b16 %v676
      %v701 = vpack.c.b16 %v691, %v690
      %v702 = vpack.c.b16 %v693, %v692
      %v703 = vpack.c.b16 %v695, %v694
      %v704 = vpack.c.b16 %v697, %v696
      %v705 = vpack.c.b16 %v699, %v698
      %v706 = vpack.c.b16 %v700, %v700
      %v707 = vrot.slane %v701, 1
      %v708 = vrot.slane %v702, 1
      %v709 = vsel %vm553, %v707, %v708
      %v710 = vrot.slane %v703, 1
      %v711 = vsel %vm553, %v708, %v710
      %v712 = vrot.slane %v704, 1
      %v713 = vsel %vm553, %v710, %v712
      %v714 = vrot.slane %v705, 1
      %v715 = vsel %vm553, %v712, %v714
      %v716 = vrot.slane %v706, 1
      %v717 = vsel %vm553, %v714, %v716
      %v719 = vsel %vm368, %v709, 0
      %v722 = vsel %vm368, %v711, 0
      %v725 = vsel %vm368, %v713, 0
      %v728 = vsel %vm368, %v715, 0
      %v731 = vsel %vm368, %v717, 0
      %v734 = vsel %vm384, %v678, 0
      %736 = vmatprep.subr.bf16.mxu0 0
      %737 = vmatpush1.bf16.msra.mxu0 0
      %738 = vmatprep.subr.bf16.mxu0 0
      %739 = vmatpush1.bf16.msra.mxu0 0
      %740 = vmatprep.subr.bf16.mxu0 0
      %741 = vmatpush1.bf16.msra.mxu0 0
      %742 = vmatprep.subr.bf16.mxu0 0
      %743 = vmatpush1.bf16.msra.mxu0 0
      %744 = vmatprep.subr.bf16.mxu0 0
      %745 = vmatpush1.bf16.msra.mxu0 0
      %746 = vmatprep.subr.bf16.mxu0 0
      %747 = vmatpush1.bf16.msra.mxu0 0
      %748 = vmatprep.subr.bf16.mxu0 0
      %749 = vmatpush1.bf16.msra.mxu0 0
      %750 = vmatprep.subr.bf16.mxu0 0
      %751 = vmatpush1.bf16.msra.mxu0 %v734
      %752 = vmatprep.subr.bf16.mxu0 0
      %753 = vmatpush2.bf16.msra.mxu0 0
      %754 = vmatprep.subr.bf16.mxu0 0
      %755 = vmatpush2.bf16.msra.mxu0 0
      %756 = vmatprep.subr.bf16.mxu0 0
      %757 = vmatpush2.bf16.msra.mxu0 0
      %758 = vmatprep.subr.bf16.mxu0 0
      %759 = vmatpush2.bf16.msra.mxu0 0
      %760 = vmatprep.subr.bf16.mxu0 0
      %761 = vmatpush2.bf16.msra.mxu0 0
      %762 = vmatprep.subr.bf16.mxu0 0
      %763 = vmatpush2.bf16.msra.mxu0 0
      %764 = vmatprep.subr.bf16.mxu0 0
      %765 = vmatpush2.bf16.msra.mxu0 0
      %766 = vmatprep.subr.bf16.mxu0 0
      %767 = vmatpush2.bf16.msra.mxu0 0
      %768 = vmatprep.mubr.bf16.mxu0 0
      %769 = vmatmul.mubr.bf16.gmra.mxu0 %v719
      %v770 = vpop.f32.mrf.mxu0
      %v771 = vadd.f32 0.0, %v770
      %v772 = vpop.f32.mrf.mxu0
      %v773 = vpop.f32.mrf.mxu0
      %v774 = vadd.f32 0.0, %v773
      %v775 = vpop.f32.mrf.mxu0
      %776 = vmatprep.mubr.bf16.mxu0 0
      %777 = vmatmul.mubr.bf16.gmra.mxu0 %v722
      %v778 = vpop.f32.mrf.mxu0
      %v779 = vadd.f32 0.0, %v778
      %v780 = vpop.f32.mrf.mxu0
      %v781 = vpop.f32.mrf.mxu0
      %v782 = vadd.f32 0.0, %v781
      %v783 = vpop.f32.mrf.mxu0
      %784 = vmatprep.mubr.bf16.mxu0 0
      %785 = vmatmul.mubr.bf16.gmra.mxu0 %v725
      %v786 = vpop.f32.mrf.mxu0
      %v787 = vadd.f32 0.0, %v786
      %v788 = vpop.f32.mrf.mxu0
      %v789 = vpop.f32.mrf.mxu0
      %v790 = vadd.f32 0.0, %v789
      %v791 = vpop.f32.mrf.mxu0
      %792 = vmatprep.mubr.bf16.mxu0 0
      %793 = vmatmul.mubr.bf16.gmra.mxu0 %v728
      %v794 = vpop.f32.mrf.mxu0
      %v795 = vadd.f32 0.0, %v794
      %v796 = vpop.f32.mrf.mxu0
      %v797 = vpop.f32.mrf.mxu0
      %v798 = vadd.f32 0.0, %v797
      %v799 = vpop.f32.mrf.mxu0
      %800 = vmatprep.mubr.bf16.mxu0 0
      %801 = vmatmul.mubr.bf16.gmra.mxu0 %v731
      %v802 = vpop.f32.mrf.mxu0
      %v803 = vadd.f32 0.0, %v802
      %v804 = vpop.f32.mrf.mxu0
      %v805 = vpop.f32.mrf.mxu0
      %v806 = vadd.f32 0.0, %v805
      %v807 = vpop.f32.mrf.mxu0
      %808 = vdwg.mxu0
      %v809 = vadd.f32 %v656, %v771
      %v810 = vadd.f32 %v657, %v774
      %v811 = vadd.f32 %v658, %v779
      %v812 = vadd.f32 %v659, %v782
      %v813 = vadd.f32 %v660, %v787
      %v814 = vadd.f32 %v661, %v790
      %v815 = vadd.f32 %v662, %v795
      %v816 = vadd.f32 %v663, %v798
      %v817 = vadd.f32 %v664, %v803
      %v818 = vadd.f32 %v665, %v806
      %v819 = vld [vmem:[%s256 + $0x2c] sm:$0x3]
      %s820 = scalar_lea.vmem %s260, 16
      %v821 = vld [vmem:[%s820] sm:$0xf]
      %v823 = vunpack.c.l.b16 %v819
      %v824 = vpack.c.b16 %v823, %v823
      %vm825 = vsmask.f32 6400
      %v827 = vshrl.u32 %v701, 16
      %v829 = vrot.slane %v827, 1
      %v830 = vshll.u32 %v701, 16
      %v832 = vrot.slane %v830, 2
      %v833 = vor.u32 %v829, %v832
      %v835 = vshrl.u32 %v702, 16
      %v837 = vrot.slane %v835, 1
      %v838 = vshll.u32 %v702, 16
      %v840 = vrot.slane %v838, 2
      %v841 = vor.u32 %v837, %v840
      %v842 = vsel %vm825, %v833, %v841
      %v844 = vshrl.u32 %v703, 16
      %v846 = vrot.slane %v844, 1
      %v847 = vshll.u32 %v703, 16
      %v849 = vrot.slane %v847, 2
      %v850 = vor.u32 %v846, %v849
      %v851 = vsel %vm825, %v841, %v850
      %v853 = vshrl.u32 %v704, 16
      %v855 = vrot.slane %v853, 1
      %v856 = vshll.u32 %v704, 16
      %v858 = vrot.slane %v856, 2
      %v859 = vor.u32 %v855, %v858
      %v860 = vsel %vm825, %v850, %v859
      %v862 = vshrl.u32 %v705, 16
      %v864 = vrot.slane %v862, 1
      %v865 = vshll.u32 %v705, 16
      %v867 = vrot.slane %v865, 2
      %v868 = vor.u32 %v864, %v867
      %v869 = vsel %vm825, %v859, %v868
      %v871 = vshrl.u32 %v824, 16
      %v873 = vrot.slane %v871, 1
      %v874 = vshll.u32 %v824, 16
      %v876 = vrot.slane %v874, 2
      %v877 = vor.u32 %v873, %v876
      %v878 = vsel %vm825, %v868, %v877
      %v880 = vsel %vm368, %v842, 0
      %v883 = vsel %vm368, %v851, 0
      %v886 = vsel %vm368, %v860, 0
      %v889 = vsel %vm368, %v869, 0
      %v892 = vsel %vm368, %v878, 0
      %v895 = vsel %vm384, %v821, 0
      %897 = vmatprep.subr.bf16.mxu0 0
      %898 = vmatpush1.bf16.msra.mxu0 0
      %899 = vmatprep.subr.bf16.mxu0 0
      %900 = vmatpush1.bf16.msra.mxu0 0
      %901 = vmatprep.subr.bf16.mxu0 0
      %902 = vmatpush1.bf16.msra.mxu0 0
      %903 = vmatprep.subr.bf16.mxu0 0
      %904 = vmatpush1.bf16.msra.mxu0 0
      %905 = vmatprep.subr.bf16.mxu0 0
      %906 = vmatpush1.bf16.msra.mxu0 0
      %907 = vmatprep.subr.bf16.mxu0 0
      %908 = vmatpush1.bf16.msra.mxu0 0
      %909 = vmatprep.subr.bf16.mxu0 0
      %910 = vmatpush1.bf16.msra.mxu0 0
      %911 = vmatprep.subr.bf16.mxu0 0
      %912 = vmatpush1.bf16.msra.mxu0 %v895
      %913 = vmatprep.subr.bf16.mxu0 0
      %914 = vmatpush2.bf16.msra.mxu0 0
      %915 = vmatprep.subr.bf16.mxu0 0
      %916 = vmatpush2.bf16.msra.mxu0 0
      %917 = vmatprep.subr.bf16.mxu0 0
      %918 = vmatpush2.bf16.msra.mxu0 0
      %919 = vmatprep.subr.bf16.mxu0 0
      %920 = vmatpush2.bf16.msra.mxu0 0
      %921 = vmatprep.subr.bf16.mxu0 0
      %922 = vmatpush2.bf16.msra.mxu0 0
      %923 = vmatprep.subr.bf16.mxu0 0
      %924 = vmatpush2.bf16.msra.mxu0 0
      %925 = vmatprep.subr.bf16.mxu0 0
      %926 = vmatpush2.bf16.msra.mxu0 0
      %927 = vmatprep.subr.bf16.mxu0 0
      %928 = vmatpush2.bf16.msra.mxu0 0
      %929 = vmatprep.mubr.bf16.mxu0 0
      %930 = vmatmul.mubr.bf16.gmra.mxu0 %v880
      %v931 = vpop.f32.mrf.mxu0
      %v932 = vadd.f32 0.0, %v931
      %v933 = vpop.f32.mrf.mxu0
      %v934 = vpop.f32.mrf.mxu0
      %v935 = vadd.f32 0.0, %v934
      %v936 = vpop.f32.mrf.mxu0
      %937 = vmatprep.mubr.bf16.mxu0 0
      %938 = vmatmul.mubr.bf16.gmra.mxu0 %v883
      %v939 = vpop.f32.mrf.mxu0
      %v940 = vadd.f32 0.0, %v939
      %v941 = vpop.f32.mrf.mxu0
      %v942 = vpop.f32.mrf.mxu0
      %v943 = vadd.f32 0.0, %v942
      %v944 = vpop.f32.mrf.mxu0
      %945 = vmatprep.mubr.bf16.mxu0 0
      %946 = vmatmul.mubr.bf16.gmra.mxu0 %v886
      %v947 = vpop.f32.mrf.mxu0
      %v948 = vadd.f32 0.0, %v947
      %v949 = vpop.f32.mrf.mxu0
      %v950 = vpop.f32.mrf.mxu0
      %v951 = vadd.f32 0.0, %v950
      %v952 = vpop.f32.mrf.mxu0
      %953 = vmatprep.mubr.bf16.mxu0 0
      %954 = vmatmul.mubr.bf16.gmra.mxu0 %v889
      %v955 = vpop.f32.mrf.mxu0
      %v956 = vadd.f32 0.0, %v955
      %v957 = vpop.f32.mrf.mxu0
      %v958 = vpop.f32.mrf.mxu0
      %v959 = vadd.f32 0.0, %v958
      %v960 = vpop.f32.mrf.mxu0
      %961 = vmatprep.mubr.bf16.mxu0 0
      %962 = vmatmul.mubr.bf16.gmra.mxu0 %v892
      %v963 = vpop.f32.mrf.mxu0
      %v964 = vadd.f32 0.0, %v963
      %v965 = vpop.f32.mrf.mxu0
      %v966 = vpop.f32.mrf.mxu0
      %v967 = vadd.f32 0.0, %v966
      %v968 = vpop.f32.mrf.mxu0
      %969 = vdwg.mxu0
      %v970 = vadd.f32 %v809, %v932
      %v971 = vadd.f32 %v810, %v935
      %v972 = vadd.f32 %v811, %v940
      %v973 = vadd.f32 %v812, %v943
      %v974 = vadd.f32 %v813, %v948
      %v975 = vadd.f32 %v814, %v951
      %v976 = vadd.f32 %v815, %v956
      %v977 = vadd.f32 %v816, %v959
      %v978 = vadd.f32 %v817, %v964
      %v979 = vadd.f32 %v818, %v967
      %v980 = vld [vmem:[%s256 + $0x4] sm:$0xc]
      %s981 = scalar_lea.vmem %s260, 20
      %v982 = vld [vmem:[%s981] sm:$0xf]
      %v984 = vunpack.c.l.b16 %v980
      %v985 = vpack.c.b16 %v691, %v984
      %vm986 = vcmask 1045504
      %v987 = vrot.slane %v985, 2
      %v988 = vrot.slane %v702, 2
      %v989 = vsel %vm986, %v987, %v988
      %v990 = vrot.slane %v703, 2
      %v991 = vsel %vm986, %v988, %v990
      %v992 = vrot.slane %v704, 2
      %v993 = vsel %vm986, %v990, %v992
      %v994 = vrot.slane %v705, 2
      %v995 = vsel %vm986, %v992, %v994
      %v996 = vrot.slane %v824, 2
      %v997 = vsel %vm986, %v994, %v996
      %v999 = vsel %vm368, %v989, 0
      %v1002 = vsel %vm368, %v991, 0
      %v1005 = vsel %vm368, %v993, 0
      %v1008 = vsel %vm368, %v995, 0
      %v1011 = vsel %vm368, %v997, 0
      %v1014 = vsel %vm384, %v982, 0
      %1016 = vmatprep.subr.bf16.mxu0 0
      %1017 = vmatpush1.bf16.msra.mxu0 0
      %1018 = vmatprep.subr.bf16.mxu0 0
      %1019 = vmatpush1.bf16.msra.mxu0 0
      %1020 = vmatprep.subr.bf16.mxu0 0
      %1021 = vmatpush1.bf16.msra.mxu0 0
      %1022 = vmatprep.subr.bf16.mxu0 0
      %1023 = vmatpush1.bf16.msra.mxu0 0
      %1024 = vmatprep.subr.bf16.mxu0 0
      %1025 = vmatpush1.bf16.msra.mxu0 0
      %1026 = vmatprep.subr.bf16.mxu0 0
      %1027 = vmatpush1.bf16.msra.mxu0 0
      %1028 = vmatprep.subr.bf16.mxu0 0
      %1029 = vmatpush1.bf16.msra.mxu0 0
      %1030 = vmatprep.subr.bf16.mxu0 0
      %1031 = vmatpush1.bf16.msra.mxu0 %v1014
      %1032 = vmatprep.subr.bf16.mxu0 0
      %1033 = vmatpush2.bf16.msra.mxu0 0
      %1034 = vmatprep.subr.bf16.mxu0 0
      %1035 = vmatpush2.bf16.msra.mxu0 0
      %1036 = vmatprep.subr.bf16.mxu0 0
      %1037 = vmatpush2.bf16.msra.mxu0 0
      %1038 = vmatprep.subr.bf16.mxu0 0
      %1039 = vmatpush2.bf16.msra.mxu0 0
      %1040 = vmatprep.subr.bf16.mxu0 0
      %1041 = vmatpush2.bf16.msra.mxu0 0
      %1042 = vmatprep.subr.bf16.mxu0 0
      %1043 = vmatpush2.bf16.msra.mxu0 0
      %1044 = vmatprep.subr.bf16.mxu0 0
      %1045 = vmatpush2.bf16.msra.mxu0 0
      %1046 = vmatprep.subr.bf16.mxu0 0
      %1047 = vmatpush2.bf16.msra.mxu0 0
      %1048 = vmatprep.mubr.bf16.mxu0 0
      %1049 = vmatmul.mubr.bf16.gmra.mxu0 %v999
      %v1050 = vpop.f32.mrf.mxu0
      %v1051 = vadd.f32 0.0, %v1050
      %v1052 = vpop.f32.mrf.mxu0
      %v1053 = vpop.f32.mrf.mxu0
      %v1054 = vadd.f32 0.0, %v1053
      %v1055 = vpop.f32.mrf.mxu0
      %1056 = vmatprep.mubr.bf16.mxu0 0
      %1057 = vmatmul.mubr.bf16.gmra.mxu0 %v1002
      %v1058 = vpop.f32.mrf.mxu0
      %v1059 = vadd.f32 0.0, %v1058
      %v1060 = vpop.f32.mrf.mxu0
      %v1061 = vpop.f32.mrf.mxu0
      %v1062 = vadd.f32 0.0, %v1061
      %v1063 = vpop.f32.mrf.mxu0
      %1064 = vmatprep.mubr.bf16.mxu0 0
      %1065 = vmatmul.mubr.bf16.gmra.mxu0 %v1005
      %v1066 = vpop.f32.mrf.mxu0
      %v1067 = vadd.f32 0.0, %v1066
      %v1068 = vpop.f32.mrf.mxu0
      %v1069 = vpop.f32.mrf.mxu0
      %v1070 = vadd.f32 0.0, %v1069
      %v1071 = vpop.f32.mrf.mxu0
      %1072 = vmatprep.mubr.bf16.mxu0 0
      %1073 = vmatmul.mubr.bf16.gmra.mxu0 %v1008
      %v1074 = vpop.f32.mrf.mxu0
      %v1075 = vadd.f32 0.0, %v1074
      %v1076 = vpop.f32.mrf.mxu0
      %v1077 = vpop.f32.mrf.mxu0
      %v1078 = vadd.f32 0.0, %v1077
      %v1079 = vpop.f32.mrf.mxu0
      %1080 = vmatprep.mubr.bf16.mxu0 0
      %1081 = vmatmul.mubr.bf16.gmra.mxu0 %v1011
      %v1082 = vpop.f32.mrf.mxu0
      %v1083 = vadd.f32 0.0, %v1082
      %v1084 = vpop.f32.mrf.mxu0
      %v1085 = vpop.f32.mrf.mxu0
      %v1086 = vadd.f32 0.0, %v1085
      %v1087 = vpop.f32.mrf.mxu0
      %1088 = vdwg.mxu0
      %v1089 = vadd.f32 %v970, %v1051
      %v1090 = vadd.f32 %v971, %v1054
      %v1091 = vadd.f32 %v972, %v1059
      %v1092 = vadd.f32 %v973, %v1062
      %v1093 = vadd.f32 %v974, %v1067
      %v1094 = vadd.f32 %v975, %v1070
      %v1095 = vadd.f32 %v976, %v1075
      %v1096 = vadd.f32 %v977, %v1078
      %v1097 = vadd.f32 %v978, %v1083
      %v1098 = vadd.f32 %v979, %v1086
      %v1099 = vld [vmem:[%s256 + $0x8] sm:$0xc]
      %v1100 = vld [vmem:[%s256 + $0xc] sm:$0xf]
      %v1101 = vld [vmem:[%s256 + $0x10] sm:$0xf]
      %v1102 = vld [vmem:[%s256 + $0x14] sm:$0xf]
      %v1103 = vld [vmem:[%s256 + $0x18] sm:$0xf]
      %v1104 = vld [vmem:[%s256 + $0x1c] sm:$0xf]
      %v1105 = vld [vmem:[%s256 + $0x20] sm:$0xf]
      %v1106 = vld [vmem:[%s256 + $0x24] sm:$0xf]
      %v1107 = vld [vmem:[%s256 + $0x28] sm:$0xf]
      %v1108 = vld [vmem:[%s256 + $0x2c] sm:$0xf]
      %v1109 = vld [vmem:[%s256 + $0x30] sm:$0x3]
      %s1110 = scalar_lea.vmem %s260, 24
      %v1111 = vld [vmem:[%s1110] sm:$0xf]
      %v1123 = vunpack.c.l.b16 %v1099
      %v1124 = vunpack.c.l.b16 %v1100
      %v1125 = vunpack.c.l.b16 %v1101
      %v1126 = vunpack.c.l.b16 %v1102
      %v1127 = vunpack.c.l.b16 %v1103
      %v1128 = vunpack.c.l.b16 %v1104
      %v1129 = vunpack.c.l.b16 %v1105
      %v1130 = vunpack.c.l.b16 %v1106
      %v1131 = vunpack.c.l.b16 %v1107
      %v1132 = vunpack.c.l.b16 %v1108
      %v1133 = vunpack.c.l.b16 %v1109
      %v1134 = vpack.c.b16 %v1124, %v1123
      %v1135 = vpack.c.b16 %v1126, %v1125
      %v1136 = vpack.c.b16 %v1128, %v1127
      %v1137 = vpack.c.b16 %v1130, %v1129
      %v1138 = vpack.c.b16 %v1132, %v1131
      %v1139 = vpack.c.b16 %v1133, %v1133
      %v1140 = vrot.slane %v1134, 2
      %v1141 = vrot.slane %v1135, 2
      %v1142 = vsel %vm986, %v1140, %v1141
      %v1143 = vrot.slane %v1136, 2
      %v1144 = vsel %vm986, %v1141, %v1143
      %v1145 = vrot.slane %v1137, 2
      %v1146 = vsel %vm986, %v1143, %v1145
      %v1147 = vrot.slane %v1138, 2
      %v1148 = vsel %vm986, %v1145, %v1147
      %v1149 = vrot.slane %v1139, 2
      %v1150 = vsel %vm986, %v1147, %v1149
      %v1152 = vsel %vm368, %v1142, 0
      %v1155 = vsel %vm368, %v1144, 0
      %v1158 = vsel %vm368, %v1146, 0
      %v1161 = vsel %vm368, %v1148, 0
      %v1164 = vsel %vm368, %v1150, 0
      %v1167 = vsel %vm384, %v1111, 0
      %1169 = vmatprep.subr.bf16.mxu0 0
      %1170 = vmatpush1.bf16.msra.mxu0 0
      %1171 = vmatprep.subr.bf16.mxu0 0
      %1172 = vmatpush1.bf16.msra.mxu0 0
      %1173 = vmatprep.subr.bf16.mxu0 0
      %1174 = vmatpush1.bf16.msra.mxu0 0
      %1175 = vmatprep.subr.bf16.mxu0 0
      %1176 = vmatpush1.bf16.msra.mxu0 0
      %1177 = vmatprep.subr.bf16.mxu0 0
      %1178 = vmatpush1.bf16.msra.mxu0 0
      %1179 = vmatprep.subr.bf16.mxu0 0
      %1180 = vmatpush1.bf16.msra.mxu0 0
      %1181 = vmatprep.subr.bf16.mxu0 0
      %1182 = vmatpush1.bf16.msra.mxu0 0
      %1183 = vmatprep.subr.bf16.mxu0 0
      %1184 = vmatpush1.bf16.msra.mxu0 %v1167
      %1185 = vmatprep.subr.bf16.mxu0 0
      %1186 = vmatpush2.bf16.msra.mxu0 0
      %1187 = vmatprep.subr.bf16.mxu0 0
      %1188 = vmatpush2.bf16.msra.mxu0 0
      %1189 = vmatprep.subr.bf16.mxu0 0
      %1190 = vmatpush2.bf16.msra.mxu0 0
      %1191 = vmatprep.subr.bf16.mxu0 0
      %1192 = vmatpush2.bf16.msra.mxu0 0
      %1193 = vmatprep.subr.bf16.mxu0 0
      %1194 = vmatpush2.bf16.msra.mxu0 0
      %1195 = vmatprep.subr.bf16.mxu0 0
      %1196 = vmatpush2.bf16.msra.mxu0 0
      %1197 = vmatprep.subr.bf16.mxu0 0
      %1198 = vmatpush2.bf16.msra.mxu0 0
      %1199 = vmatprep.subr.bf16.mxu0 0
      %1200 = vmatpush2.bf16.msra.mxu0 0
      %1201 = vmatprep.mubr.bf16.mxu0 0
      %1202 = vmatmul.mubr.bf16.gmra.mxu0 %v1152
      %v1203 = vpop.f32.mrf.mxu0
      %v1204 = vadd.f32 0.0, %v1203
      %v1205 = vpop.f32.mrf.mxu0
      %v1206 = vpop.f32.mrf.mxu0
      %v1207 = vadd.f32 0.0, %v1206
      %v1208 = vpop.f32.mrf.mxu0
      %1209 = vmatprep.mubr.bf16.mxu0 0
      %1210 = vmatmul.mubr.bf16.gmra.mxu0 %v1155
      %v1211 = vpop.f32.mrf.mxu0
      %v1212 = vadd.f32 0.0, %v1211
      %v1213 = vpop.f32.mrf.mxu0
      %v1214 = vpop.f32.mrf.mxu0
      %v1215 = vadd.f32 0.0, %v1214
      %v1216 = vpop.f32.mrf.mxu0
      %1217 = vmatprep.mubr.bf16.mxu0 0
      %1218 = vmatmul.mubr.bf16.gmra.mxu0 %v1158
      %v1219 = vpop.f32.mrf.mxu0
      %v1220 = vadd.f32 0.0, %v1219
      %v1221 = vpop.f32.mrf.mxu0
      %v1222 = vpop.f32.mrf.mxu0
      %v1223 = vadd.f32 0.0, %v1222
      %v1224 = vpop.f32.mrf.mxu0
      %1225 = vmatprep.mubr.bf16.mxu0 0
      %1226 = vmatmul.mubr.bf16.gmra.mxu0 %v1161
      %v1227 = vpop.f32.mrf.mxu0
      %v1228 = vadd.f32 0.0, %v1227
      %v1229 = vpop.f32.mrf.mxu0
      %v1230 = vpop.f32.mrf.mxu0
      %v1231 = vadd.f32 0.0, %v1230
      %v1232 = vpop.f32.mrf.mxu0
      %1233 = vmatprep.mubr.bf16.mxu0 0
      %1234 = vmatmul.mubr.bf16.gmra.mxu0 %v1164
      %v1235 = vpop.f32.mrf.mxu0
      %v1236 = vadd.f32 0.0, %v1235
      %v1237 = vpop.f32.mrf.mxu0
      %v1238 = vpop.f32.mrf.mxu0
      %v1239 = vadd.f32 0.0, %v1238
      %v1240 = vpop.f32.mrf.mxu0
      %1241 = vdwg.mxu0
      %v1242 = vadd.f32 %v1089, %v1204
      %v1243 = vadd.f32 %v1090, %v1207
      %v1244 = vadd.f32 %v1091, %v1212
      %v1245 = vadd.f32 %v1092, %v1215
      %v1246 = vadd.f32 %v1093, %v1220
      %v1247 = vadd.f32 %v1094, %v1223
      %v1248 = vadd.f32 %v1095, %v1228
      %v1249 = vadd.f32 %v1096, %v1231
      %v1250 = vadd.f32 %v1097, %v1236
      %v1251 = vadd.f32 %v1098, %v1239
      %v1252 = vld [vmem:[%s256 + $0x30] sm:$0x7]
      %s1253 = scalar_lea.vmem %s260, 28
      %v1254 = vld [vmem:[%s1253] sm:$0xf]
      %v1256 = vunpack.c.l.b16 %v1252
      %v1257 = vpack.c.b16 %v1256, %v1256
      %vm1258 = vsmask.f32 5376
      %v1260 = vshrl.u32 %v1134, 16
      %v1262 = vrot.slane %v1260, 2
      %v1263 = vshll.u32 %v1134, 16
      %v1265 = vrot.slane %v1263, 3
      %v1266 = vor.u32 %v1262, %v1265
      %v1268 = vshrl.u32 %v1135, 16
      %v1270 = vrot.slane %v1268, 2
      %v1271 = vshll.u32 %v1135, 16
      %v1273 = vrot.slane %v1271, 3
      %v1274 = vor.u32 %v1270, %v1273
      %v1275 = vsel %vm1258, %v1266, %v1274
      %v1277 = vshrl.u32 %v1136, 16
      %v1279 = vrot.slane %v1277, 2
      %v1280 = vshll.u32 %v1136, 16
      %v1282 = vrot.slane %v1280, 3
      %v1283 = vor.u32 %v1279, %v1282
      %v1284 = vsel %vm1258, %v1274, %v1283
      %v1286 = vshrl.u32 %v1137, 16
      %v1288 = vrot.slane %v1286, 2
      %v1289 = vshll.u32 %v1137, 16
      %v1291 = vrot.slane %v1289, 3
      %v1292 = vor.u32 %v1288, %v1291
      %v1293 = vsel %vm1258, %v1283, %v1292
      %v1295 = vshrl.u32 %v1138, 16
      %v1297 = vrot.slane %v1295, 2
      %v1298 = vshll.u32 %v1138, 16
      %v1300 = vrot.slane %v1298, 3
      %v1301 = vor.u32 %v1297, %v1300
      %v1302 = vsel %vm1258, %v1292, %v1301
      %v1304 = vshrl.u32 %v1257, 16
      %v1306 = vrot.slane %v1304, 2
      %v1307 = vshll.u32 %v1257, 16
      %v1309 = vrot.slane %v1307, 3
      %v1310 = vor.u32 %v1306, %v1309
      %v1311 = vsel %vm1258, %v1301, %v1310
      %v1313 = vsel %vm368, %v1275, 0
      %v1316 = vsel %vm368, %v1284, 0
      %v1319 = vsel %vm368, %v1293, 0
      %v1322 = vsel %vm368, %v1302, 0
      %v1325 = vsel %vm368, %v1311, 0
      %v1328 = vsel %vm384, %v1254, 0
      %1330 = vmatprep.subr.bf16.mxu0 0
      %1331 = vmatpush1.bf16.msra.mxu0 0
      %1332 = vmatprep.subr.bf16.mxu0 0
      %1333 = vmatpush1.bf16.msra.mxu0 0
      %1334 = vmatprep.subr.bf16.mxu0 0
      %1335 = vmatpush1.bf16.msra.mxu0 0
      %1336 = vmatprep.subr.bf16.mxu0 0
      %1337 = vmatpush1.bf16.msra.mxu0 0
      %1338 = vmatprep.subr.bf16.mxu0 0
      %1339 = vmatpush1.bf16.msra.mxu0 0
      %1340 = vmatprep.subr.bf16.mxu0 0
      %1341 = vmatpush1.bf16.msra.mxu0 0
      %1342 = vmatprep.subr.bf16.mxu0 0
      %1343 = vmatpush1.bf16.msra.mxu0 0
      %1344 = vmatprep.subr.bf16.mxu0 0
      %1345 = vmatpush1.bf16.msra.mxu0 %v1328
      %1346 = vmatprep.subr.bf16.mxu0 0
      %1347 = vmatpush2.bf16.msra.mxu0 0
      %1348 = vmatprep.subr.bf16.mxu0 0
      %1349 = vmatpush2.bf16.msra.mxu0 0
      %1350 = vmatprep.subr.bf16.mxu0 0
      %1351 = vmatpush2.bf16.msra.mxu0 0
      %1352 = vmatprep.subr.bf16.mxu0 0
      %1353 = vmatpush2.bf16.msra.mxu0 0
      %1354 = vmatprep.subr.bf16.mxu0 0
      %1355 = vmatpush2.bf16.msra.mxu0 0
      %1356 = vmatprep.subr.bf16.mxu0 0
      %1357 = vmatpush2.bf16.msra.mxu0 0
      %1358 = vmatprep.subr.bf16.mxu0 0
      %1359 = vmatpush2.bf16.msra.mxu0 0
      %1360 = vmatprep.subr.bf16.mxu0 0
      %1361 = vmatpush2.bf16.msra.mxu0 0
      %1362 = vmatprep.mubr.bf16.mxu0 0
      %1363 = vmatmul.mubr.bf16.gmra.mxu0 %v1313
      %v1364 = vpop.f32.mrf.mxu0
      %v1365 = vadd.f32 0.0, %v1364
      %v1366 = vpop.f32.mrf.mxu0
      %v1367 = vpop.f32.mrf.mxu0
      %v1368 = vadd.f32 0.0, %v1367
      %v1369 = vpop.f32.mrf.mxu0
      %1370 = vmatprep.mubr.bf16.mxu0 0
      %1371 = vmatmul.mubr.bf16.gmra.mxu0 %v1316
      %v1372 = vpop.f32.mrf.mxu0
      %v1373 = vadd.f32 0.0, %v1372
      %v1374 = vpop.f32.mrf.mxu0
      %v1375 = vpop.f32.mrf.mxu0
      %v1376 = vadd.f32 0.0, %v1375
      %v1377 = vpop.f32.mrf.mxu0
      %1378 = vmatprep.mubr.bf16.mxu0 0
      %1379 = vmatmul.mubr.bf16.gmra.mxu0 %v1319
      %v1380 = vpop.f32.mrf.mxu0
      %v1381 = vadd.f32 0.0, %v1380
      %v1382 = vpop.f32.mrf.mxu0
      %v1383 = vpop.f32.mrf.mxu0
      %v1384 = vadd.f32 0.0, %v1383
      %v1385 = vpop.f32.mrf.mxu0
      %1386 = vmatprep.mubr.bf16.mxu0 0
      %1387 = vmatmul.mubr.bf16.gmra.mxu0 %v1322
      %v1388 = vpop.f32.mrf.mxu0
      %v1389 = vadd.f32 0.0, %v1388
      %v1390 = vpop.f32.mrf.mxu0
      %v1391 = vpop.f32.mrf.mxu0
      %v1392 = vadd.f32 0.0, %v1391
      %v1393 = vpop.f32.mrf.mxu0
      %1394 = vmatprep.mubr.bf16.mxu0 0
      %1395 = vmatmul.mubr.bf16.gmra.mxu0 %v1325
      %v1396 = vpop.f32.mrf.mxu0
      %v1397 = vadd.f32 0.0, %v1396
      %v1398 = vpop.f32.mrf.mxu0
      %v1399 = vpop.f32.mrf.mxu0
      %v1400 = vadd.f32 0.0, %v1399
      %v1401 = vpop.f32.mrf.mxu0
      %1402 = vdwg.mxu0
      %v1403 = vadd.f32 %v1242, %v1365
      %v1404 = vadd.f32 %v1243, %v1368
      %v1405 = vadd.f32 %v1244, %v1373
      %v1406 = vadd.f32 %v1245, %v1376
      %v1407 = vadd.f32 %v1246, %v1381
      %v1408 = vadd.f32 %v1247, %v1384
      %v1409 = vadd.f32 %v1248, %v1389
      %v1410 = vadd.f32 %v1249, %v1392
      %v1411 = vadd.f32 %v1250, %v1397
      %v1412 = vadd.f32 %v1251, %v1400
      %v1413 = vld [vmem:[%s256 + $0x8] sm:$0x8]
      %s1414 = scalar_lea.vmem %s260, 32
      %v1415 = vld [vmem:[%s1414] sm:$0xf]
      %v1417 = vunpack.c.l.b16 %v1413
      %v1418 = vpack.c.b16 %v1124, %v1417
      %vm1419 = vcmask 1044480
      %v1420 = vrot.slane %v1418, 3
      %v1421 = vrot.slane %v1135, 3
      %v1422 = vsel %vm1419, %v1420, %v1421
      %v1423 = vrot.slane %v1136, 3
      %v1424 = vsel %vm1419, %v1421, %v1423
      %v1425 = vrot.slane %v1137, 3
      %v1426 = vsel %vm1419, %v1423, %v1425
      %v1427 = vrot.slane %v1138, 3
      %v1428 = vsel %vm1419, %v1425, %v1427
      %v1429 = vrot.slane %v1257, 3
      %v1430 = vsel %vm1419, %v1427, %v1429
      %v1432 = vsel %vm368, %v1422, 0
      %v1435 = vsel %vm368, %v1424, 0
      %v1438 = vsel %vm368, %v1426, 0
      %v1441 = vsel %vm368, %v1428, 0
      %v1444 = vsel %vm368, %v1430, 0
      %v1447 = vsel %vm384, %v1415, 0
      %1449 = vmatprep.subr.bf16.mxu0 0
      %1450 = vmatpush1.bf16.msra.mxu0 0
      %1451 = vmatprep.subr.bf16.mxu0 0
      %1452 = vmatpush1.bf16.msra.mxu0 0
      %1453 = vmatprep.subr.bf16.mxu0 0
      %1454 = vmatpush1.bf16.msra.mxu0 0
      %1455 = vmatprep.subr.bf16.mxu0 0
      %1456 = vmatpush1.bf16.msra.mxu0 0
      %1457 = vmatprep.subr.bf16.mxu0 0
      %1458 = vmatpush1.bf16.msra.mxu0 0
      %1459 = vmatprep.subr.bf16.mxu0 0
      %1460 = vmatpush1.bf16.msra.mxu0 0
      %1461 = vmatprep.subr.bf16.mxu0 0
      %1462 = vmatpush1.bf16.msra.mxu0 0
      %1463 = vmatprep.subr.bf16.mxu0 0
      %1464 = vmatpush1.bf16.msra.mxu0 %v1447
      %1465 = vmatprep.subr.bf16.mxu0 0
      %1466 = vmatpush2.bf16.msra.mxu0 0
      %1467 = vmatprep.subr.bf16.mxu0 0
      %1468 = vmatpush2.bf16.msra.mxu0 0
      %1469 = vmatprep.subr.bf16.mxu0 0
      %1470 = vmatpush2.bf16.msra.mxu0 0
      %1471 = vmatprep.subr.bf16.mxu0 0
      %1472 = vmatpush2.bf16.msra.mxu0 0
      %1473 = vmatprep.subr.bf16.mxu0 0
      %1474 = vmatpush2.bf16.msra.mxu0 0
      %1475 = vmatprep.subr.bf16.mxu0 0
      %1476 = vmatpush2.bf16.msra.mxu0 0
      %1477 = vmatprep.subr.bf16.mxu0 0
      %1478 = vmatpush2.bf16.msra.mxu0 0
      %1479 = vmatprep.subr.bf16.mxu0 0
      %1480 = vmatpush2.bf16.msra.mxu0 0
      %1481 = vmatprep.mubr.bf16.mxu0 0
      %1482 = vmatmul.mubr.bf16.gmra.mxu0 %v1432
      %v1483 = vpop.f32.mrf.mxu0
      %v1484 = vadd.f32 0.0, %v1483
      %v1485 = vpop.f32.mrf.mxu0
      %v1486 = vpop.f32.mrf.mxu0
      %v1487 = vadd.f32 0.0, %v1486
      %v1488 = vpop.f32.mrf.mxu0
      %1489 = vmatprep.mubr.bf16.mxu0 0
      %1490 = vmatmul.mubr.bf16.gmra.mxu0 %v1435
      %v1491 = vpop.f32.mrf.mxu0
      %v1492 = vadd.f32 0.0, %v1491
      %v1493 = vpop.f32.mrf.mxu0
      %v1494 = vpop.f32.mrf.mxu0
      %v1495 = vadd.f32 0.0, %v1494
      %v1496 = vpop.f32.mrf.mxu0
      %1497 = vmatprep.mubr.bf16.mxu0 0
      %1498 = vmatmul.mubr.bf16.gmra.mxu0 %v1438
      %v1499 = vpop.f32.mrf.mxu0
      %v1500 = vadd.f32 0.0, %v1499
      %v1501 = vpop.f32.mrf.mxu0
      %v1502 = vpop.f32.mrf.mxu0
      %v1503 = vadd.f32 0.0, %v1502
      %v1504 = vpop.f32.mrf.mxu0
      %1505 = vmatprep.mubr.bf16.mxu0 0
      %1506 = vmatmul.mubr.bf16.gmra.mxu0 %v1441
      %v1507 = vpop.f32.mrf.mxu0
      %v1508 = vadd.f32 0.0, %v1507
      %v1509 = vpop.f32.mrf.mxu0
      %v1510 = vpop.f32.mrf.mxu0
      %v1511 = vadd.f32 0.0, %v1510
      %v1512 = vpop.f32.mrf.mxu0
      %1513 = vmatprep.mubr.bf16.mxu0 0
      %1514 = vmatmul.mubr.bf16.gmra.mxu0 %v1444
      %v1515 = vpop.f32.mrf.mxu0
      %v1516 = vadd.f32 0.0, %v1515
      %v1517 = vpop.f32.mrf.mxu0
      %v1518 = vpop.f32.mrf.mxu0
      %v1519 = vadd.f32 0.0, %v1518
      %v1520 = vpop.f32.mrf.mxu0
      %1521 = vdwg.mxu0
      %v1522 = vadd.f32 %v1403, %v1484
      %v1523 = vadd.f32 %v1404, %v1487
      %v1524 = vadd.f32 %v1405, %v1492
      %v1525 = vadd.f32 %v1406, %v1495
      %v1526 = vadd.f32 %v1407, %v1500
      %v1527 = vadd.f32 %v1408, %v1503
      %v1528 = vadd.f32 %v1409, %v1508
      %v1529 = vadd.f32 %v1410, %v1511
      %v1530 = vadd.f32 %v1411, %v1516
      %v1531 = vadd.f32 %v1412, %v1519
      %v1532 = vld [vmem:[%s263] sm:$0x1]
      %v1534 = vlaneseq
      %v1535 = vshrl.u32 %v1534, 7
      %v1536 = vsub.s32 0, %v1535
      %v1537 = vrot.slane %v1532, %v1536
      %v1539 = vadd.f32 %v1522, %v1537
      %v1540 = vadd.f32 %v1523, %v1537
      %v1541 = vadd.f32 %v1524, %v1537
      %v1542 = vadd.f32 %v1525, %v1537
      %v1543 = vadd.f32 %v1526, %v1537
      %v1544 = vadd.f32 %v1527, %v1537
      %v1545 = vadd.f32 %v1528, %v1537
      %v1546 = vadd.f32 %v1529, %v1537
      %v1547 = vadd.f32 %v1530, %v1537
      %v1548 = vadd.f32 %v1531, %v1537
      %v1549 = vld [vmem:[%s271] sm:$0xf]
      %v1550 = vld [vmem:[%s271 + $0x4] sm:$0xf]
      %v1551 = vld [vmem:[%s271 + $0x8] sm:$0xf]
      %v1552 = vld [vmem:[%s271 + $0xc] sm:$0xf]
      %v1553 = vld [vmem:[%s271 + $0x10] sm:$0xf]
      %v1554 = vld [vmem:[%s271 + $0x14] sm:$0xf]
      %v1555 = vld [vmem:[%s271 + $0x18] sm:$0xf]
      %v1556 = vld [vmem:[%s271 + $0x1c] sm:$0xf]
      %v1557 = vld [vmem:[%s271 + $0x20] sm:$0xf]
      %v1558 = vld [vmem:[%s271 + $0x24] sm:$0xf]
      %v1559 = vunpack.c.l.bf16 %v1549
      %v1560 = vunpack.c.l.bf16 %v1550
      %v1561 = vunpack.c.l.bf16 %v1551
      %v1562 = vunpack.c.l.bf16 %v1552
      %v1563 = vunpack.c.l.bf16 %v1553
      %v1564 = vunpack.c.l.bf16 %v1554
      %v1565 = vunpack.c.l.bf16 %v1555
      %v1566 = vunpack.c.l.bf16 %v1556
      %v1567 = vunpack.c.l.bf16 %v1557
      %v1568 = vunpack.c.l.bf16 %v1558
      %v1569 = vadd.f32 %v1539, %v1559
      %v1570 = vadd.f32 %v1540, %v1560
      %v1571 = vadd.f32 %v1541, %v1561
      %v1572 = vadd.f32 %v1542, %v1562
      %v1573 = vadd.f32 %v1543, %v1563
      %v1574 = vadd.f32 %v1544, %v1564
      %v1575 = vadd.f32 %v1545, %v1565
      %v1576 = vadd.f32 %v1546, %v1566
      %v1577 = vadd.f32 %v1547, %v1567
      %v1578 = vadd.f32 %v1548, %v1568
      %v1579 = vmax.f32 %v1569, 0.0
      %v1580 = vmax.f32 %v1570, 0.0
      %v1581 = vmax.f32 %v1571, 0.0
      %v1582 = vmax.f32 %v1572, 0.0
      %v1583 = vmax.f32 %v1573, 0.0
      %v1584 = vmax.f32 %v1574, 0.0
      %v1585 = vmax.f32 %v1575, 0.0
      %v1586 = vmax.f32 %v1576, 0.0
      %v1587 = vmax.f32 %v1577, 0.0
      %v1588 = vmax.f32 %v1578, 0.0
      %v1589 = vpack.c.bf16 %v1580, %v1579
      %v1590 = vpack.c.bf16 %v1582, %v1581
      %v1591 = vpack.c.bf16 %v1584, %v1583
      %v1592 = vpack.c.bf16 %v1586, %v1585
      %v1593 = vpack.c.bf16 %v1588, %v1587
      %v1599 = vunpack.c.l.b16 %v1589
      %v1600 = vunpack.c.h.b16 %v1589
      %v1601 = vunpack.c.l.b16 %v1590
      %v1602 = vunpack.c.h.b16 %v1590
      %v1603 = vunpack.c.l.b16 %v1591
      %v1604 = vunpack.c.h.b16 %v1591
      %v1605 = vunpack.c.l.b16 %v1592
      %v1606 = vunpack.c.h.b16 %v1592
      %v1607 = vunpack.c.l.b16 %v1593
      %v1608 = vunpack.c.h.b16 %v1593
      %v1609 = vpack.c.b16 %v1599, %v1599
      %v1610 = vpack.c.b16 %v1600, %v1600
      %v1611 = vpack.c.b16 %v1601, %v1601
      %v1612 = vpack.c.b16 %v1602, %v1602
      %v1613 = vpack.c.b16 %v1603, %v1603
      %v1614 = vpack.c.b16 %v1604, %v1604
      %v1615 = vpack.c.b16 %v1605, %v1605
      %v1616 = vpack.c.b16 %v1606, %v1606
      %v1617 = vpack.c.b16 %v1607, %v1607
      %v1618 = vpack.c.b16 %v1608, %v1608
      %vm1629 = vcmask 60416
      %1630 = vst.msk [vmem:[%s279] sm:$0xf] %vm1629, %v1609
      %1631 = vst.msk [vmem:[%s279 + $0x4] sm:$0xf] %vm1629, %v1610
      %1632 = vst.msk [vmem:[%s279 + $0x8] sm:$0xf] %vm1629, %v1611
      %1633 = vst.msk [vmem:[%s279 + $0xc] sm:$0xf] %vm1629, %v1612
      %1634 = vst.msk [vmem:[%s279 + $0x10] sm:$0xf] %vm1629, %v1613
      %1635 = vst.msk [vmem:[%s279 + $0x14] sm:$0xf] %vm1629, %v1614
      %1636 = vst.msk [vmem:[%s279 + $0x18] sm:$0xf] %vm1629, %v1615
      %1637 = vst.msk [vmem:[%s279 + $0x1c] sm:$0xf] %vm1629, %v1616
      %1638 = vst.msk [vmem:[%s279 + $0x20] sm:$0xf] %vm1629, %v1617
      %1639 = vst.msk [vmem:[%s279 + $0x24] sm:$0xf] %vm1629, %v1618
      %p1640 = scmp.lt.s32.totalorder %s19, 1
      %s1641 = scalar_select %p1640, %s19, 1
      %p1642 = scmp.lt.s32.totalorder %s20, 0
      %s1643 = scalar_select %p1642, %s20, 0
      %s1644 = smul.addr %s1641, 10
      %s1645 = sadd.s32 %s1643, %s1644
      %s1646 = smul.addr %s1645, 4
      %s1647 = scalar_lea.vmem %s4, %s1646
      // Predicated region
      $region37: #{forward.7} parent=35 // pred_check
        %p1648 = pneg %p153
      $region38: #{forward.7} parent=35 // pred_check_branch
        %1650 = sbr.rel (%p1648) target = $region40
      $region39: #{forward.7} parent=35 // pred_region
        _
      $region40: #{forward.7} parent=35 // pred_fallthru
        _
    $region36: #{forward.7} parent=5 // pred_fallthru
      _
    %p1651 = scmp.le.s32.totalorder 2, %s10
    // Predicated region
    $region41: #{forward.7} parent=5 // pred_check
      %p1652 = pneg %p1651
    $region42: #{forward.7} parent=5 // pred_check_branch
      %1654 = sbr.rel (%p1652) target = $region44
    $region43: #{forward.7} parent=5 // pred_region
      %s1655 = ssub.s32 %s10, 2
      // Predicated region
      $region45: #{forward.7} parent=43 // pred_check
        %p1656 = pneg %p159
      $region46: #{forward.7} parent=43 // pred_check_branch
        %1658 = sbr.rel (%p1656) target = $region48
      $region47: #{forward.7} parent=43 // pred_region
        %p1659 = scmp.lt.s32.totalorder %s21, 1
        %s1660 = scalar_select %p1659, %s21, 1
        %p1661 = scmp.lt.s32.totalorder %s22, 0
        %s1662 = scalar_select %p1661, %s22, 0
        %s1663 = smul.addr %s1660, 10
        %s1664 = sadd.s32 %s1662, %s1663
        %s1665 = smul.addr %s1664, 4
        %s1666 = scalar_lea.vmem %s4, %s1665
      $region48: #{forward.7} parent=43 // pred_fallthru
        _
    $region44: #{forward.7} parent=5 // pred_fallthru
      _
  $region6: #{forward.7} parent=0 // loop_footer
    %s14 = sadd.s32 1, %s10
  $region7: #{forward.7} parent=0 // loop_footer_branch
    %9 = sbr.rel target = $region3
  $region8: #{forward.7} parent=0 // loop_exit
    _

// kernel: forward.8
$region0: #{forward.8}
  #allocation0 [shape = 'u32[]', space=smem, size = 0x4, offset = 0x4, fixed_abs, tag = 'smem constant byte address 0x4 - core index']
  #allocation1 [shape = 'u32[144,128]{1,0:T(1,128)}', space=vmem, size = 0x12000, scoped, tag = 'internal scratch']
  %s0 = inlined_call_operand.vmem [shape: bf16[2,110,8], index: 0, kind: input, shape index: {}]
  %s1 = inlined_call_operand.vmem [shape: bf16[9,8,8], index: 1, kind: input, shape index: {}]
  %s2 = inlined_call_operand.vmem [shape: f32[1,8], index: 2, kind: input, shape index: {}]
  %s3 = inlined_call_operand.vmem [shape: bf16[2,80,8], index: 3, kind: output, shape index: {}]
  %s4 = sld [smem:[#allocation0]]
  $region45: #{forward.8} parent=0
    _
  %s6 = ssub.s32 1, %s4
  %s7 = scalar_select 0, %s6, %s4
  loop: start=0, step=1, limit=4
  $region2: #{forward.8} parent=0 // loop_pre_header
    _
  $region3: #{forward.8} parent=0 // loop_header
    %s9 = sphi 0, %s13
    %p10 = scmp.ge.s32.totalorder %s9, 4
    %s16 = sphi 0, %s28
    %s17 = sphi 0, %s24
    %s18 = sphi 0, %s16
    %s19 = sphi 0, %s17
    %s20 = sphi 0, %s18
    %s21 = sphi 0, %s19
    %s31 = sphi 0, %s33
    %s34 = sphi 0, %s31
    %s35 = sphi 0, %s34
    %s51 = sphi 0, %s35
    %s57 = sphi 0, %s59
    %s60 = sphi 0, %s57
    %s61 = sphi 0, %s60
    %s77 = sphi 0, %s61
    %s83 = sphi 0, %s85
    %s86 = sphi 0, %s83
    %s87 = sphi 0, %s86
    %s103 = sphi 0, %s87
    %s111 = sphi 0, %s113
    %s114 = sphi 0, %s111
    %s115 = sphi 0, %s114
    %s131 = sphi 0, %s115
  $region4: #{forward.8} parent=0 // loop_header_branch
    %12 = sbr.rel (%p10) target = $region8
  $region5: #{forward.8} parent=0 // loop_body
    %s14 = ssub.s32 %s9, 1
    %s15 = ssub.s32 %s9, 2
    %s22 = sadd.s32 1, %s17
    %p23 = scmp.ge.s32.totalorder %s22, 1
    %s24 = scalar_select %p23, 0, %s22
    %s25 = sadd.s32 1, %s16
    %s26 = scalar_select %p23, %s25, %s16
    %p27 = scmp.ge.s32.totalorder %s26, 2
    %s28 = scalar_select %p27, 0, %s26
    %s29 = ssub.s32 %s16, %s28
    %p30 = scmp.eq.s32.totalorder %s29, 0
    %s32 = sadd.s32 %s31, 1
    %s33 = scalar_select %p30, %s31, %s32
    %p36 = pneg %p30
    %p37 = scmp.eq.s32.totalorder %s9, 1
    %p38 = por %p36, %p37
    %p39 = scmp.ne.s32.totalorder %s31, %s34
    %p40 = scmp.eq.s32.totalorder %s9, 0
    %p41 = por %p39, %p40
    %p42 = scmp.ne.s32.totalorder %s31, %s34
    %p43 = scmp.eq.s32.totalorder %s14, 1
    %p44 = por %p42, %p43
    %p45 = scmp.ne.s32.totalorder %s34, %s35
    %p46 = scmp.eq.s32.totalorder %s14, 0
    %p47 = por %p45, %p46
    %p48 = scmp.ne.s32.totalorder %s34, %s35
    %p49 = scmp.eq.s32.totalorder %s15, 1
    %p50 = por %p48, %p49
    %p52 = scmp.ne.s32.totalorder %s35, %s51
    %p53 = scmp.eq.s32.totalorder %s15, 0
    %p54 = por %p52, %p53
    %s55 = ssub.s32 %s17, %s24
    %p56 = scmp.eq.s32.totalorder %s55, 0
    %s58 = sadd.s32 %s57, 1
    %s59 = scalar_select %p56, %s57, %s58
    %p62 = pneg %p56
    %p63 = scmp.eq.s32.totalorder %s9, 1
    %p64 = por %p62, %p63
    %p65 = scmp.ne.s32.totalorder %s57, %s60
    %p66 = scmp.eq.s32.totalorder %s9, 0
    %p67 = por %p65, %p66
    %p68 = scmp.ne.s32.totalorder %s57, %s60
    %p69 = scmp.eq.s32.totalorder %s14, 1
    %p70 = por %p68, %p69
    %p71 = scmp.ne.s32.totalorder %s60, %s61
    %p72 = scmp.eq.s32.totalorder %s14, 0
    %p73 = por %p71, %p72
    %p74 = scmp.ne.s32.totalorder %s60, %s61
    %p75 = scmp.eq.s32.totalorder %s15, 1
    %p76 = por %p74, %p75
    %p78 = scmp.ne.s32.totalorder %s61, %s77
    %p79 = scmp.eq.s32.totalorder %s15, 0
    %p80 = por %p78, %p79
    %s81 = ssub.s32 %s17, %s24
    %p82 = scmp.eq.s32.totalorder %s81, 0
    %s84 = sadd.s32 %s83, 1
    %s85 = scalar_select %p82, %s83, %s84
    %p88 = pneg %p82
    %p89 = scmp.eq.s32.totalorder %s9, 1
    %p90 = por %p88, %p89
    %p91 = scmp.ne.s32.totalorder %s83, %s86
    %p92 = scmp.eq.s32.totalorder %s9, 0
    %p93 = por %p91, %p92
    %p94 = scmp.ne.s32.totalorder %s83, %s86
    %p95 = scmp.eq.s32.totalorder %s14, 1
    %p96 = por %p94, %p95
    %p97 = scmp.ne.s32.totalorder %s86, %s87
    %p98 = scmp.eq.s32.totalorder %s14, 0
    %p99 = por %p97, %p98
    %p100 = scmp.ne.s32.totalorder %s86, %s87
    %p101 = scmp.eq.s32.totalorder %s15, 1
    %p102 = por %p100, %p101
    %p104 = scmp.ne.s32.totalorder %s87, %s103
    %p105 = scmp.eq.s32.totalorder %s15, 0
    %p106 = por %p104, %p105
    %s107 = ssub.s32 %s16, %s28
    %s108 = ssub.s32 %s17, %s24
    %s109 = sor.u32 %s107, %s108
    %p110 = scmp.eq.s32.totalorder %s109, 0
    %s112 = sadd.s32 %s111, 1
    %s113 = scalar_select %p110, %s111, %s112
    %p116 = pneg %p110
    %p117 = scmp.eq.s32.totalorder %s9, 1
    %p118 = por %p116, %p117
    %p119 = scmp.ne.s32.totalorder %s111, %s114
    %p120 = scmp.eq.s32.totalorder %s9, 0
    %p121 = por %p119, %p120
    %p122 = scmp.ne.s32.totalorder %s111, %s114
    %p123 = scmp.eq.s32.totalorder %s14, 1
    %p124 = por %p122, %p123
    %p125 = scmp.ne.s32.totalorder %s114, %s115
    %p126 = scmp.eq.s32.totalorder %s14, 0
    %p127 = por %p125, %p126
    %p128 = scmp.ne.s32.totalorder %s114, %s115
    %p129 = scmp.eq.s32.totalorder %s15, 1
    %p130 = por %p128, %p129
    %p132 = scmp.ne.s32.totalorder %s115, %s131
    %p133 = scmp.eq.s32.totalorder %s15, 0
    %p134 = por %p132, %p133
    %p135 = scmp.le.s32.totalorder 1, %s9
    %p136 = scmp.lt.s32.totalorder %s9, 3
    %p137 = pnand %p135, %p136
    %p138 = pneg %p137
    // Predicated region
    $region9: #{forward.8} parent=5 // pred_check
      _
    $region10: #{forward.8} parent=5 // pred_check_branch
      %140 = sbr.rel (%p137) target = $region12
    $region11: #{forward.8} parent=5 // pred_region
      %s141 = ssub.s32 %s9, 1
      // Predicated region
      $region13: #{forward.8} parent=11 // pred_check
        %p142 = pneg %p73
      $region14: #{forward.8} parent=11 // pred_check_branch
        %144 = sbr.rel (%p142) target = $region16
      $region15: #{forward.8} parent=11 // pred_region
        %p145 = scmp.lt.s32.totalorder %s19, 0
        %s146 = scalar_select %p145, %s19, 0
        %s147 = smul.addr %s146, 4
        %s148 = scalar_lea.vmem %s1, %s147
      $region16: #{forward.8} parent=11 // pred_fallthru
        _
      // Predicated region
      $region17: #{forward.8} parent=11 // pred_check
        %p149 = pneg %p99
      $region18: #{forward.8} parent=11 // pred_check_branch
        %151 = sbr.rel (%p149) target = $region20
      $region19: #{forward.8} parent=11 // pred_region
        %p152 = scmp.lt.s32.totalorder %s19, 0
        %s153 = scalar_select %p152, %s19, 0
        %s154 = scalar_lea.vmem %s2, %s153
      $region20: #{forward.8} parent=11 // pred_fallthru
        _
    $region12: #{forward.8} parent=5 // pred_fallthru
      _
    %p155 = scmp.lt.s32.totalorder %s9, 2
    // Predicated region
    $region21: #{forward.8} parent=5 // pred_check
      %p156 = pneg %p155
    $region22: #{forward.8} parent=5 // pred_check_branch
      %158 = sbr.rel (%p156) target = $region24
    $region23: #{forward.8} parent=5 // pred_region
      // Predicated region
      $region25: #{forward.8} parent=23 // pred_check
        %p159 = pneg %p41
      $region26: #{forward.8} parent=23 // pred_check_branch
        %161 = sbr.rel (%p159) target = $region28
      $region27: #{forward.8} parent=23 // pred_region
        %p162 = scmp.lt.s32.totalorder %s16, 1
        %s163 = scalar_select %p162, %s16, 1
        %s164 = smul.addr %s163, 14
        %s165 = smul.addr %s164, 4
        %s166 = scalar_lea.vmem %s0, %s165
      $region28: #{forward.8} parent=23 // pred_fallthru
        _
    $region24: #{forward.8} parent=5 // pred_fallthru
      _
    %p167 = scmp.le.s32.totalorder 1, %s9
    %p168 = scmp.lt.s32.totalorder %s9, 3
    %p169 = pnand %p167, %p168
    %p170 = pneg %p169
    // Predicated region
    $region29: #{forward.8} parent=5 // pred_check
      _
    $region30: #{forward.8} parent=5 // pred_check_branch
      %172 = sbr.rel (%p169) target = $region32
    $region31: #{forward.8} parent=5 // pred_region
      %s173 = ssub.s32 %s9, 1
      %p174 = scmp.lt.s32.totalorder %s18, 1
      %s175 = scalar_select %p174, %s18, 1
      %s176 = smul.addr %s175, 14
      %s177 = smul.addr %s176, 4
      %s178 = scalar_lea.vmem %s0, %s177
      %p179 = pneg %p47
      %p180 = pneg %p44
      %p181 = scmp.lt.s32.totalorder %s19, 0
      %s182 = scalar_select %p181, %s19, 0
      %s183 = smul.addr %s182, 4
      %s184 = scalar_lea.vmem %s1, %s183
      %p185 = pneg %p73
      %p186 = pneg %p70
      %p187 = scmp.lt.s32.totalorder %s19, 0
      %s188 = scalar_select %p187, %s19, 0
      %s189 = scalar_lea.vmem %s2, %s188
      %p190 = pneg %p99
      %p191 = pneg %p96
      %p192 = pneg %p127
      %p193 = pneg %p124
      %p194 = scmp.lt.s32.totalorder %s18, 1
      %s195 = scalar_select %p194, %s18, 1
      %p196 = scmp.lt.s32.totalorder %s19, 0
      %s197 = scalar_select %p196, %s19, 0
      %s198 = smul.addr %s195, 10
      %s199 = sadd.s32 %s197, %s198
      %s200 = smul.addr %s199, 4
      %s201 = scalar_lea.vmem %s3, %s200
      %p202 = scmp.lt.s32.totalorder %s18, 1
      %s203 = scalar_select %p202, %s18, 1
      %s204 = smul.addr %s203, 14
      %s205 = smul.addr %s204, 4
      %s206 = scalar_lea.vmem %s0, %s205
      %p207 = scmp.lt.s32.totalorder %s19, 0
      %s208 = scalar_select %p207, %s19, 0
      %s209 = smul.addr %s208, 4
      %s210 = scalar_lea.vmem %s1, %s209
      %p211 = scmp.lt.s32.totalorder %s19, 0
      %s212 = scalar_select %p211, %s19, 0
      %s213 = scalar_lea.vmem %s2, %s212
      %p214 = scmp.lt.s32.totalorder %s18, 1
      %s215 = scalar_select %p214, %s18, 1
      %p216 = scmp.lt.s32.totalorder %s19, 0
      %s217 = scalar_select %p216, %s19, 0
      %s218 = smul.addr %s215, 10
      %s219 = sadd.s32 %s217, %s218
      %s220 = smul.addr %s219, 4
      %s221 = scalar_lea.vmem %s3, %s220
      %v223 = vld [vmem:[%s206] sm:$0xf]
      %v224 = vld [vmem:[%s206 + $0x4] sm:$0xf]
      %v225 = vld [vmem:[%s206 + $0x8] sm:$0xf]
      %v226 = vld [vmem:[%s206 + $0xc] sm:$0xf]
      %v227 = vld [vmem:[%s206 + $0x10] sm:$0xf]
      %v228 = vld [vmem:[%s206 + $0x14] sm:$0xf]
      %v229 = vld [vmem:[%s206 + $0x18] sm:$0xf]
      %v230 = vld [vmem:[%s206 + $0x1c] sm:$0xf]
      %v231 = vld [vmem:[%s206 + $0x20] sm:$0xf]
      %v232 = vld [vmem:[%s206 + $0x24] sm:$0xf]
      %v233 = vld [vmem:[%s210] sm:$0xf]
      %v234 = vld [vmem:[%s206 + $0x28] sm:$0x1]
      %s235 = scalar_lea.vmem %s210, 4
      %v236 = vld [vmem:[%s235] sm:$0xf]
      %v248 = vunpack.c.l.b16 %v223
      %v249 = vunpack.c.l.b16 %v224
      %v250 = vunpack.c.l.b16 %v225
      %v251 = vunpack.c.l.b16 %v226
      %v252 = vunpack.c.l.b16 %v227
      %v253 = vunpack.c.l.b16 %v228
      %v254 = vunpack.c.l.b16 %v229
      %v255 = vunpack.c.l.b16 %v230
      %v256 = vunpack.c.l.b16 %v231
      %v257 = vunpack.c.l.b16 %v232
      %v258 = vunpack.c.l.b16 %v234
      %v259 = vpack.c.b16 %v249, %v248
      %v260 = vpack.c.b16 %v251, %v250
      %v261 = vpack.c.b16 %v253, %v252
      %v262 = vpack.c.b16 %v255, %v254
      %v263 = vpack.c.b16 %v257, %v256
      %v264 = vpack.c.b16 %v258, %v258
      %vm265 = vsmask.f32 7424
      %v267 = vshrl.u32 %v259, 16
      %v269 = vshll.u32 %v259, 16
      %v271 = vrot.slane %v269, 1
      %v272 = vor.u32 %v267, %v271
      %v274 = vshll.u32 %v260, 16
      %v276 = vrot.slane %v274, 1
      %v277 = vsel %vm265, %v272, %v276
      %v278 = vshrl.u32 %v260, 16
      %v280 = vor.u32 %v278, %v276
      %v282 = vshll.u32 %v261, 16
      %v284 = vrot.slane %v282, 1
      %v285 = vsel %vm265, %v280, %v284
      %v286 = vshrl.u32 %v261, 16
      %v288 = vor.u32 %v286, %v284
      %v290 = vshll.u32 %v262, 16
      %v292 = vrot.slane %v290, 1
      %v293 = vsel %vm265, %v288, %v292
      %v294 = vshrl.u32 %v262, 16
      %v296 = vor.u32 %v294, %v292
      %v298 = vshll.u32 %v263, 16
      %v300 = vrot.slane %v298, 1
      %v301 = vsel %vm265, %v296, %v300
      %v302 = vshrl.u32 %v263, 16
      %v304 = vor.u32 %v302, %v300
      %v306 = vshll.u32 %v264, 16
      %v308 = vrot.slane %v306, 1
      %v309 = vsel %vm265, %v304, %v308
      %vm310 = vcmask 64512
      %v312 = vsel %vm310, %v277, 0
      %v315 = vsel %vm310, %v285, 0
      %v318 = vsel %vm310, %v293, 0
      %v321 = vsel %vm310, %v301, 0
      %v324 = vsel %vm310, %v309, 0
      %vm326 = vcmask 1043456
      %v328 = vsel %vm326, %v236, 0
      %330 = vmatprep.subr.bf16.mxu0 0
      %331 = vmatpush1.bf16.msra.mxu0 0
      %332 = vmatprep.subr.bf16.mxu0 0
      %333 = vmatpush1.bf16.msra.mxu0 0
      %334 = vmatprep.subr.bf16.mxu0 0
      %335 = vmatpush1.bf16.msra.mxu0 0
      %336 = vmatprep.subr.bf16.mxu0 0
      %337 = vmatpush1.bf16.msra.mxu0 0
      %338 = vmatprep.subr.bf16.mxu0 0
      %339 = vmatpush1.bf16.msra.mxu0 0
      %340 = vmatprep.subr.bf16.mxu0 0
      %341 = vmatpush1.bf16.msra.mxu0 0
      %342 = vmatprep.subr.bf16.mxu0 0
      %343 = vmatpush1.bf16.msra.mxu0 0
      %344 = vmatprep.subr.bf16.mxu0 0
      %345 = vmatpush1.bf16.msra.mxu0 %v328
      %346 = vmatprep.subr.bf16.mxu0 0
      %347 = vmatpush2.bf16.msra.mxu0 0
      %348 = vmatprep.subr.bf16.mxu0 0
      %349 = vmatpush2.bf16.msra.mxu0 0
      %350 = vmatprep.subr.bf16.mxu0 0
      %351 = vmatpush2.bf16.msra.mxu0 0
      %352 = vmatprep.subr.bf16.mxu0 0
      %353 = vmatpush2.bf16.msra.mxu0 0
      %354 = vmatprep.subr.bf16.mxu0 0
      %355 = vmatpush2.bf16.msra.mxu0 0
      %356 = vmatprep.subr.bf16.mxu0 0
      %357 = vmatpush2.bf16.msra.mxu0 0
      %358 = vmatprep.subr.bf16.mxu0 0
      %359 = vmatpush2.bf16.msra.mxu0 0
      %360 = vmatprep.subr.bf16.mxu0 0
      %361 = vmatpush2.bf16.msra.mxu0 0
      %362 = vmatprep.mubr.bf16.mxu0 0
      %363 = vmatmul.mubr.bf16.gmra.mxu0 %v312
      %v364 = vpop.f32.mrf.mxu0
      %v365 = vadd.f32 0.0, %v364
      %v366 = vpop.f32.mrf.mxu0
      %v367 = vpop.f32.mrf.mxu0
      %v368 = vadd.f32 0.0, %v367
      %v369 = vpop.f32.mrf.mxu0
      %370 = vmatprep.mubr.bf16.mxu0 0
      %371 = vmatmul.mubr.bf16.gmra.mxu0 %v315
      %v372 = vpop.f32.mrf.mxu0
      %v373 = vadd.f32 0.0, %v372
      %v374 = vpop.f32.mrf.mxu0
      %v375 = vpop.f32.mrf.mxu0
      %v376 = vadd.f32 0.0, %v375
      %v377 = vpop.f32.mrf.mxu0
      %378 = vmatprep.mubr.bf16.mxu0 0
      %379 = vmatmul.mubr.bf16.gmra.mxu0 %v318
      %v380 = vpop.f32.mrf.mxu0
      %v381 = vadd.f32 0.0, %v380
      %v382 = vpop.f32.mrf.mxu0
      %v383 = vpop.f32.mrf.mxu0
      %v384 = vadd.f32 0.0, %v383
      %v385 = vpop.f32.mrf.mxu0
      %386 = vmatprep.mubr.bf16.mxu0 0
      %387 = vmatmul.mubr.bf16.gmra.mxu0 %v321
      %v388 = vpop.f32.mrf.mxu0
      %v389 = vadd.f32 0.0, %v388
      %v390 = vpop.f32.mrf.mxu0
      %v391 = vpop.f32.mrf.mxu0
      %v392 = vadd.f32 0.0, %v391
      %v393 = vpop.f32.mrf.mxu0
      %394 = vmatprep.mubr.bf16.mxu0 0
      %395 = vmatmul.mubr.bf16.gmra.mxu0 %v324
      %v396 = vpop.f32.mrf.mxu0
      %v397 = vadd.f32 0.0, %v396
      %v398 = vpop.f32.mrf.mxu0
      %v399 = vpop.f32.mrf.mxu0
      %v400 = vadd.f32 0.0, %v399
      %v401 = vpop.f32.mrf.mxu0
      %402 = vdwg.mxu0
      %v403 = vsel %vm310, %v259, 0
      %v405 = vsel %vm310, %v260, 0
      %v407 = vsel %vm310, %v261, 0
      %v409 = vsel %vm310, %v262, 0
      %v411 = vsel %vm310, %v263, 0
      %v414 = vsel %vm326, %v233, 0
      %416 = vmatprep.subr.bf16.mxu0 0
      %417 = vmatpush1.bf16.msra.mxu0 0
      %418 = vmatprep.subr.bf16.mxu0 0
      %419 = vmatpush1.bf16.msra.mxu0 0
      %420 = vmatprep.subr.bf16.mxu0 0
      %421 = vmatpush1.bf16.msra.mxu0 0
      %422 = vmatprep.subr.bf16.mxu0 0
      %423 = vmatpush1.bf16.msra.mxu0 0
      %424 = vmatprep.subr.bf16.mxu0 0
      %425 = vmatpush1.bf16.msra.mxu0 0
      %426 = vmatprep.subr.bf16.mxu0 0
      %427 = vmatpush1.bf16.msra.mxu0 0
      %428 = vmatprep.subr.bf16.mxu0 0
      %429 = vmatpush1.bf16.msra.mxu0 0
      %430 = vmatprep.subr.bf16.mxu0 0
      %431 = vmatpush1.bf16.msra.mxu0 %v414
      %432 = vmatprep.subr.bf16.mxu0 0
      %433 = vmatpush2.bf16.msra.mxu0 0
      %434 = vmatprep.subr.bf16.mxu0 0
      %435 = vmatpush2.bf16.msra.mxu0 0
      %436 = vmatprep.subr.bf16.mxu0 0
      %437 = vmatpush2.bf16.msra.mxu0 0
      %438 = vmatprep.subr.bf16.mxu0 0
      %439 = vmatpush2.bf16.msra.mxu0 0
      %440 = vmatprep.subr.bf16.mxu0 0
      %441 = vmatpush2.bf16.msra.mxu0 0
      %442 = vmatprep.subr.bf16.mxu0 0
      %443 = vmatpush2.bf16.msra.mxu0 0
      %444 = vmatprep.subr.bf16.mxu0 0
      %445 = vmatpush2.bf16.msra.mxu0 0
      %446 = vmatprep.subr.bf16.mxu0 0
      %447 = vmatpush2.bf16.msra.mxu0 0
      %448 = vmatprep.mubr.bf16.mxu0 0
      %449 = vmatmul.mubr.bf16.gmra.mxu0 %v403
      %v450 = vpop.f32.mrf.mxu0
      %v451 = vadd.f32 %v365, %v450
      %v452 = vpop.f32.mrf.mxu0
      %v453 = vpop.f32.mrf.mxu0
      %v454 = vadd.f32 %v368, %v453
      %v455 = vpop.f32.mrf.mxu0
      %456 = vmatprep.mubr.bf16.mxu0 0
      %457 = vmatmul.mubr.bf16.gmra.mxu0 %v405
      %v458 = vpop.f32.mrf.mxu0
      %v459 = vadd.f32 %v373, %v458
      %v460 = vpop.f32.mrf.mxu0
      %v461 = vpop.f32.mrf.mxu0
      %v462 = vadd.f32 %v376, %v461
      %v463 = vpop.f32.mrf.mxu0
      %464 = vmatprep.mubr.bf16.mxu0 0
      %465 = vmatmul.mubr.bf16.gmra.mxu0 %v407
      %v466 = vpop.f32.mrf.mxu0
      %v467 = vadd.f32 %v381, %v466
      %v468 = vpop.f32.mrf.mxu0
      %v469 = vpop.f32.mrf.mxu0
      %v470 = vadd.f32 %v384, %v469
      %v471 = vpop.f32.mrf.mxu0
      %472 = vmatprep.mubr.bf16.mxu0 0
      %473 = vmatmul.mubr.bf16.gmra.mxu0 %v409
      %v474 = vpop.f32.mrf.mxu0
      %v475 = vadd.f32 %v389, %v474
      %v476 = vpop.f32.mrf.mxu0
      %v477 = vpop.f32.mrf.mxu0
      %v478 = vadd.f32 %v392, %v477
      %v479 = vpop.f32.mrf.mxu0
      %480 = vmatprep.mubr.bf16.mxu0 0
      %481 = vmatmul.mubr.bf16.gmra.mxu0 %v411
      %v482 = vpop.f32.mrf.mxu0
      %v483 = vadd.f32 %v397, %v482
      %v484 = vpop.f32.mrf.mxu0
      %v485 = vpop.f32.mrf.mxu0
      %v486 = vadd.f32 %v400, %v485
      %v487 = vpop.f32.mrf.mxu0
      %488 = vdwg.mxu0
      %v489 = vld [vmem:[%s206] sm:$0xe]
      %s490 = scalar_lea.vmem %s210, 8
      %v491 = vld [vmem:[%s490] sm:$0xf]
      %v493 = vunpack.c.l.b16 %v489
      %v494 = vpack.c.b16 %v249, %v493
      %vm495 = vcmask 1046528
      %v496 = vrot.slane %v494, 1
      %v497 = vrot.slane %v260, 1
      %v498 = vsel %vm495, %v496, %v497
      %v499 = vrot.slane %v261, 1
      %v500 = vsel %vm495, %v497, %v499
      %v501 = vrot.slane %v262, 1
      %v502 = vsel %vm495, %v499, %v501
      %v503 = vrot.slane %v263, 1
      %v504 = vsel %vm495, %v501, %v503
      %v505 = vrot.slane %v264, 1
      %v506 = vsel %vm495, %v503, %v505
      %v508 = vsel %vm310, %v498, 0
      %v511 = vsel %vm310, %v500, 0
      %v514 = vsel %vm310, %v502, 0
      %v517 = vsel %vm310, %v504, 0
      %v520 = vsel %vm310, %v506, 0
      %v523 = vsel %vm326, %v491, 0
      %525 = vmatprep.subr.bf16.mxu0 0
      %526 = vmatpush1.bf16.msra.mxu0 0
      %527 = vmatprep.subr.bf16.mxu0 0
      %528 = vmatpush1.bf16.msra.mxu0 0
      %529 = vmatprep.subr.bf16.mxu0 0
      %530 = vmatpush1.bf16.msra.mxu0 0
      %531 = vmatprep.subr.bf16.mxu0 0
      %532 = vmatpush1.bf16.msra.mxu0 0
      %533 = vmatprep.subr.bf16.mxu0 0
      %534 = vmatpush1.bf16.msra.mxu0 0
      %535 = vmatprep.subr.bf16.mxu0 0
      %536 = vmatpush1.bf16.msra.mxu0 0
      %537 = vmatprep.subr.bf16.mxu0 0
      %538 = vmatpush1.bf16.msra.mxu0 0
      %539 = vmatprep.subr.bf16.mxu0 0
      %540 = vmatpush1.bf16.msra.mxu0 %v523
      %541 = vmatprep.subr.bf16.mxu0 0
      %542 = vmatpush2.bf16.msra.mxu0 0
      %543 = vmatprep.subr.bf16.mxu0 0
      %544 = vmatpush2.bf16.msra.mxu0 0
      %545 = vmatprep.subr.bf16.mxu0 0
      %546 = vmatpush2.bf16.msra.mxu0 0
      %547 = vmatprep.subr.bf16.mxu0 0
      %548 = vmatpush2.bf16.msra.mxu0 0
      %549 = vmatprep.subr.bf16.mxu0 0
      %550 = vmatpush2.bf16.msra.mxu0 0
      %551 = vmatprep.subr.bf16.mxu0 0
      %552 = vmatpush2.bf16.msra.mxu0 0
      %553 = vmatprep.subr.bf16.mxu0 0
      %554 = vmatpush2.bf16.msra.mxu0 0
      %555 = vmatprep.subr.bf16.mxu0 0
      %556 = vmatpush2.bf16.msra.mxu0 0
      %557 = vmatprep.mubr.bf16.mxu0 0
      %558 = vmatmul.mubr.bf16.gmra.mxu0 %v508
      %v559 = vpop.f32.mrf.mxu0
      %v560 = vadd.f32 0.0, %v559
      %v561 = vpop.f32.mrf.mxu0
      %v562 = vpop.f32.mrf.mxu0
      %v563 = vadd.f32 0.0, %v562
      %v564 = vpop.f32.mrf.mxu0
      %565 = vmatprep.mubr.bf16.mxu0 0
      %566 = vmatmul.mubr.bf16.gmra.mxu0 %v511
      %v567 = vpop.f32.mrf.mxu0
      %v568 = vadd.f32 0.0, %v567
      %v569 = vpop.f32.mrf.mxu0
      %v570 = vpop.f32.mrf.mxu0
      %v571 = vadd.f32 0.0, %v570
      %v572 = vpop.f32.mrf.mxu0
      %573 = vmatprep.mubr.bf16.mxu0 0
      %574 = vmatmul.mubr.bf16.gmra.mxu0 %v514
      %v575 = vpop.f32.mrf.mxu0
      %v576 = vadd.f32 0.0, %v575
      %v577 = vpop.f32.mrf.mxu0
      %v578 = vpop.f32.mrf.mxu0
      %v579 = vadd.f32 0.0, %v578
      %v580 = vpop.f32.mrf.mxu0
      %581 = vmatprep.mubr.bf16.mxu0 0
      %582 = vmatmul.mubr.bf16.gmra.mxu0 %v517
      %v583 = vpop.f32.mrf.mxu0
      %v584 = vadd.f32 0.0, %v583
      %v585 = vpop.f32.mrf.mxu0
      %v586 = vpop.f32.mrf.mxu0
      %v587 = vadd.f32 0.0, %v586
      %v588 = vpop.f32.mrf.mxu0
      %589 = vmatprep.mubr.bf16.mxu0 0
      %590 = vmatmul.mubr.bf16.gmra.mxu0 %v520
      %v591 = vpop.f32.mrf.mxu0
      %v592 = vadd.f32 0.0, %v591
      %v593 = vpop.f32.mrf.mxu0
      %v594 = vpop.f32.mrf.mxu0
      %v595 = vadd.f32 0.0, %v594
      %v596 = vpop.f32.mrf.mxu0
      %597 = vdwg.mxu0
      %v598 = vadd.f32 %v451, %v560
      %v599 = vadd.f32 %v454, %v563
      %v600 = vadd.f32 %v459, %v568
      %v601 = vadd.f32 %v462, %v571
      %v602 = vadd.f32 %v467, %v576
      %v603 = vadd.f32 %v470, %v579
      %v604 = vadd.f32 %v475, %v584
      %v605 = vadd.f32 %v478, %v587
      %v606 = vadd.f32 %v483, %v592
      %v607 = vadd.f32 %v486, %v595
      %v608 = vld [vmem:[%s206 + $0x4] sm:$0xe]
      %v609 = vld [vmem:[%s206 + $0x8] sm:$0xf]
      %v610 = vld [vmem:[%s206 + $0xc] sm:$0xf]
      %v611 = vld [vmem:[%s206 + $0x10] sm:$0xf]
      %v612 = vld [vmem:[%s206 + $0x14] sm:$0xf]
      %v613 = vld [vmem:[%s206 + $0x18] sm:$0xf]
      %v614 = vld [vmem:[%s206 + $0x1c] sm:$0xf]
      %v615 = vld [vmem:[%s206 + $0x20] sm:$0xf]
      %v616 = vld [vmem:[%s206 + $0x24] sm:$0xf]
      %v617 = vld [vmem:[%s206 + $0x28] sm:$0xf]
      %v618 = vld [vmem:[%s206 + $0x2c] sm:$0x1]
      %s619 = scalar_lea.vmem %s210, 12
      %v620 = vld [vmem:[%s619] sm:$0xf]
      %v632 = vunpack.c.l.b16 %v608
      %v633 = vunpack.c.l.b16 %v609
      %v634 = vunpack.c.l.b16 %v610
      %v635 = vunpack.c.l.b16 %v611
      %v636 = vunpack.c.l.b16 %v612
      %v637 = vunpack.c.l.b16 %v613
      %v638 = vunpack.c.l.b16 %v614
      %v639 = vunpack.c.l.b16 %v615
      %v640 = vunpack.c.l.b16 %v616
      %v641 = vunpack.c.l.b16 %v617
      %v642 = vunpack.c.l.b16 %v618
      %v643 = vpack.c.b16 %v633, %v632
      %v644 = vpack.c.b16 %v635, %v634
      %v645 = vpack.c.b16 %v637, %v636
      %v646 = vpack.c.b16 %v639, %v638
      %v647 = vpack.c.b16 %v641, %v640
      %v648 = vpack.c.b16 %v642, %v642
      %v649 = vrot.slane %v643, 1
      %v650 = vrot.slane %v644, 1
      %v651 = vsel %vm495, %v649, %v650
      %v652 = vrot.slane %v645, 1
      %v653 = vsel %vm495, %v650, %v652
      %v654 = vrot.slane %v646, 1
      %v655 = vsel %vm495, %v652, %v654
      %v656 = vrot.slane %v647, 1
      %v657 = vsel %vm495, %v654, %v656
      %v658 = vrot.slane %v648, 1
      %v659 = vsel %vm495, %v656, %v658
      %v661 = vsel %vm310, %v651, 0
      %v664 = vsel %vm310, %v653, 0
      %v667 = vsel %vm310, %v655, 0
      %v670 = vsel %vm310, %v657, 0
      %v673 = vsel %vm310, %v659, 0
      %v676 = vsel %vm326, %v620, 0
      %678 = vmatprep.subr.bf16.mxu0 0
      %679 = vmatpush1.bf16.msra.mxu0 0
      %680 = vmatprep.subr.bf16.mxu0 0
      %681 = vmatpush1.bf16.msra.mxu0 0
      %682 = vmatprep.subr.bf16.mxu0 0
      %683 = vmatpush1.bf16.msra.mxu0 0
      %684 = vmatprep.subr.bf16.mxu0 0
      %685 = vmatpush1.bf16.msra.mxu0 0
      %686 = vmatprep.subr.bf16.mxu0 0
      %687 = vmatpush1.bf16.msra.mxu0 0
      %688 = vmatprep.subr.bf16.mxu0 0
      %689 = vmatpush1.bf16.msra.mxu0 0
      %690 = vmatprep.subr.bf16.mxu0 0
      %691 = vmatpush1.bf16.msra.mxu0 0
      %692 = vmatprep.subr.bf16.mxu0 0
      %693 = vmatpush1.bf16.msra.mxu0 %v676
      %694 = vmatprep.subr.bf16.mxu0 0
      %695 = vmatpush2.bf16.msra.mxu0 0
      %696 = vmatprep.subr.bf16.mxu0 0
      %697 = vmatpush2.bf16.msra.mxu0 0
      %698 = vmatprep.subr.bf16.mxu0 0
      %699 = vmatpush2.bf16.msra.mxu0 0
      %700 = vmatprep.subr.bf16.mxu0 0
      %701 = vmatpush2.bf16.msra.mxu0 0
      %702 = vmatprep.subr.bf16.mxu0 0
      %703 = vmatpush2.bf16.msra.mxu0 0
      %704 = vmatprep.subr.bf16.mxu0 0
      %705 = vmatpush2.bf16.msra.mxu0 0
      %706 = vmatprep.subr.bf16.mxu0 0
      %707 = vmatpush2.bf16.msra.mxu0 0
      %708 = vmatprep.subr.bf16.mxu0 0
      %709 = vmatpush2.bf16.msra.mxu0 0
      %710 = vmatprep.mubr.bf16.mxu0 0
      %711 = vmatmul.mubr.bf16.gmra.mxu0 %v661
      %v712 = vpop.f32.mrf.mxu0
      %v713 = vadd.f32 0.0, %v712
      %v714 = vpop.f32.mrf.mxu0
      %v715 = vpop.f32.mrf.mxu0
      %v716 = vadd.f32 0.0, %v715
      %v717 = vpop.f32.mrf.mxu0
      %718 = vmatprep.mubr.bf16.mxu0 0
      %719 = vmatmul.mubr.bf16.gmra.mxu0 %v664
      %v720 = vpop.f32.mrf.mxu0
      %v721 = vadd.f32 0.0, %v720
      %v722 = vpop.f32.mrf.mxu0
      %v723 = vpop.f32.mrf.mxu0
      %v724 = vadd.f32 0.0, %v723
      %v725 = vpop.f32.mrf.mxu0
      %726 = vmatprep.mubr.bf16.mxu0 0
      %727 = vmatmul.mubr.bf16.gmra.mxu0 %v667
      %v728 = vpop.f32.mrf.mxu0
      %v729 = vadd.f32 0.0, %v728
      %v730 = vpop.f32.mrf.mxu0
      %v731 = vpop.f32.mrf.mxu0
      %v732 = vadd.f32 0.0, %v731
      %v733 = vpop.f32.mrf.mxu0
      %734 = vmatprep.mubr.bf16.mxu0 0
      %735 = vmatmul.mubr.bf16.gmra.mxu0 %v670
      %v736 = vpop.f32.mrf.mxu0
      %v737 = vadd.f32 0.0, %v736
      %v738 = vpop.f32.mrf.mxu0
      %v739 = vpop.f32.mrf.mxu0
      %v740 = vadd.f32 0.0, %v739
      %v741 = vpop.f32.mrf.mxu0
      %742 = vmatprep.mubr.bf16.mxu0 0
      %743 = vmatmul.mubr.bf16.gmra.mxu0 %v673
      %v744 = vpop.f32.mrf.mxu0
      %v745 = vadd.f32 0.0, %v744
      %v746 = vpop.f32.mrf.mxu0
      %v747 = vpop.f32.mrf.mxu0
      %v748 = vadd.f32 0.0, %v747
      %v749 = vpop.f32.mrf.mxu0
      %750 = vdwg.mxu0
      %v751 = vadd.f32 %v598, %v713
      %v752 = vadd.f32 %v599, %v716
      %v753 = vadd.f32 %v600, %v721
      %v754 = vadd.f32 %v601, %v724
      %v755 = vadd.f32 %v602, %v729
      %v756 = vadd.f32 %v603, %v732
      %v757 = vadd.f32 %v604, %v737
      %v758 = vadd.f32 %v605, %v740
      %v759 = vadd.f32 %v606, %v745
      %v760 = vadd.f32 %v607, %v748
      %v761 = vld [vmem:[%s206 + $0x2c] sm:$0x3]
      %s762 = scalar_lea.vmem %s210, 16
      %v763 = vld [vmem:[%s762] sm:$0xf]
      %v765 = vunpack.c.l.b16 %v761
      %v766 = vpack.c.b16 %v765, %v765
      %vm767 = vsmask.f32 6400
      %v769 = vshrl.u32 %v643, 16
      %v771 = vrot.slane %v769, 1
      %v772 = vshll.u32 %v643, 16
      %v774 = vrot.slane %v772, 2
      %v775 = vor.u32 %v771, %v774
      %v777 = vshrl.u32 %v644, 16
      %v779 = vrot.slane %v777, 1
      %v780 = vshll.u32 %v644, 16
      %v782 = vrot.slane %v780, 2
      %v783 = vor.u32 %v779, %v782
      %v784 = vsel %vm767, %v775, %v783
      %v786 = vshrl.u32 %v645, 16
      %v788 = vrot.slane %v786, 1
      %v789 = vshll.u32 %v645, 16
      %v791 = vrot.slane %v789, 2
      %v792 = vor.u32 %v788, %v791
      %v793 = vsel %vm767, %v783, %v792
      %v795 = vshrl.u32 %v646, 16
      %v797 = vrot.slane %v795, 1
      %v798 = vshll.u32 %v646, 16
      %v800 = vrot.slane %v798, 2
      %v801 = vor.u32 %v797, %v800
      %v802 = vsel %vm767, %v792, %v801
      %v804 = vshrl.u32 %v647, 16
      %v806 = vrot.slane %v804, 1
      %v807 = vshll.u32 %v647, 16
      %v809 = vrot.slane %v807, 2
      %v810 = vor.u32 %v806, %v809
      %v811 = vsel %vm767, %v801, %v810
      %v813 = vshrl.u32 %v766, 16
      %v815 = vrot.slane %v813, 1
      %v816 = vshll.u32 %v766, 16
      %v818 = vrot.slane %v816, 2
      %v819 = vor.u32 %v815, %v818
      %v820 = vsel %vm767, %v810, %v819
      %v822 = vsel %vm310, %v784, 0
      %v825 = vsel %vm310, %v793, 0
      %v828 = vsel %vm310, %v802, 0
      %v831 = vsel %vm310, %v811, 0
      %v834 = vsel %vm310, %v820, 0
      %v837 = vsel %vm326, %v763, 0
      %839 = vmatprep.subr.bf16.mxu0 0
      %840 = vmatpush1.bf16.msra.mxu0 0
      %841 = vmatprep.subr.bf16.mxu0 0
      %842 = vmatpush1.bf16.msra.mxu0 0
      %843 = vmatprep.subr.bf16.mxu0 0
      %844 = vmatpush1.bf16.msra.mxu0 0
      %845 = vmatprep.subr.bf16.mxu0 0
      %846 = vmatpush1.bf16.msra.mxu0 0
      %847 = vmatprep.subr.bf16.mxu0 0
      %848 = vmatpush1.bf16.msra.mxu0 0
      %849 = vmatprep.subr.bf16.mxu0 0
      %850 = vmatpush1.bf16.msra.mxu0 0
      %851 = vmatprep.subr.bf16.mxu0 0
      %852 = vmatpush1.bf16.msra.mxu0 0
      %853 = vmatprep.subr.bf16.mxu0 0
      %854 = vmatpush1.bf16.msra.mxu0 %v837
      %855 = vmatprep.subr.bf16.mxu0 0
      %856 = vmatpush2.bf16.msra.mxu0 0
      %857 = vmatprep.subr.bf16.mxu0 0
      %858 = vmatpush2.bf16.msra.mxu0 0
      %859 = vmatprep.subr.bf16.mxu0 0
      %860 = vmatpush2.bf16.msra.mxu0 0
      %861 = vmatprep.subr.bf16.mxu0 0
      %862 = vmatpush2.bf16.msra.mxu0 0
      %863 = vmatprep.subr.bf16.mxu0 0
      %864 = vmatpush2.bf16.msra.mxu0 0
      %865 = vmatprep.subr.bf16.mxu0 0
      %866 = vmatpush2.bf16.msra.mxu0 0
      %867 = vmatprep.subr.bf16.mxu0 0
      %868 = vmatpush2.bf16.msra.mxu0 0
      %869 = vmatprep.subr.bf16.mxu0 0
      %870 = vmatpush2.bf16.msra.mxu0 0
      %871 = vmatprep.mubr.bf16.mxu0 0
      %872 = vmatmul.mubr.bf16.gmra.mxu0 %v822
      %v873 = vpop.f32.mrf.mxu0
      %v874 = vadd.f32 0.0, %v873
      %v875 = vpop.f32.mrf.mxu0
      %v876 = vpop.f32.mrf.mxu0
      %v877 = vadd.f32 0.0, %v876
      %v878 = vpop.f32.mrf.mxu0
      %879 = vmatprep.mubr.bf16.mxu0 0
      %880 = vmatmul.mubr.bf16.gmra.mxu0 %v825
      %v881 = vpop.f32.mrf.mxu0
      %v882 = vadd.f32 0.0, %v881
      %v883 = vpop.f32.mrf.mxu0
      %v884 = vpop.f32.mrf.mxu0
      %v885 = vadd.f32 0.0, %v884
      %v886 = vpop.f32.mrf.mxu0
      %887 = vmatprep.mubr.bf16.mxu0 0
      %888 = vmatmul.mubr.bf16.gmra.mxu0 %v828
      %v889 = vpop.f32.mrf.mxu0
      %v890 = vadd.f32 0.0, %v889
      %v891 = vpop.f32.mrf.mxu0
      %v892 = vpop.f32.mrf.mxu0
      %v893 = vadd.f32 0.0, %v892
      %v894 = vpop.f32.mrf.mxu0
      %895 = vmatprep.mubr.bf16.mxu0 0
      %896 = vmatmul.mubr.bf16.gmra.mxu0 %v831
      %v897 = vpop.f32.mrf.mxu0
      %v898 = vadd.f32 0.0, %v897
      %v899 = vpop.f32.mrf.mxu0
      %v900 = vpop.f32.mrf.mxu0
      %v901 = vadd.f32 0.0, %v900
      %v902 = vpop.f32.mrf.mxu0
      %903 = vmatprep.mubr.bf16.mxu0 0
      %904 = vmatmul.mubr.bf16.gmra.mxu0 %v834
      %v905 = vpop.f32.mrf.mxu0
      %v906 = vadd.f32 0.0, %v905
      %v907 = vpop.f32.mrf.mxu0
      %v908 = vpop.f32.mrf.mxu0
      %v909 = vadd.f32 0.0, %v908
      %v910 = vpop.f32.mrf.mxu0
      %911 = vdwg.mxu0
      %v912 = vadd.f32 %v751, %v874
      %v913 = vadd.f32 %v752, %v877
      %v914 = vadd.f32 %v753, %v882
      %v915 = vadd.f32 %v754, %v885
      %v916 = vadd.f32 %v755, %v890
      %v917 = vadd.f32 %v756, %v893
      %v918 = vadd.f32 %v757, %v898
      %v919 = vadd.f32 %v758, %v901
      %v920 = vadd.f32 %v759, %v906
      %v921 = vadd.f32 %v760, %v909
      %v922 = vld [vmem:[%s206 + $0x4] sm:$0xc]
      %s923 = scalar_lea.vmem %s210, 20
      %v924 = vld [vmem:[%s923] sm:$0xf]
      %v926 = vunpack.c.l.b16 %v922
      %v927 = vpack.c.b16 %v633, %v926
      %vm928 = vcmask 1045504
      %v929 = vrot.slane %v927, 2
      %v930 = vrot.slane %v644, 2
      %v931 = vsel %vm928, %v929, %v930
      %v932 = vrot.slane %v645, 2
      %v933 = vsel %vm928, %v930, %v932
      %v934 = vrot.slane %v646, 2
      %v935 = vsel %vm928, %v932, %v934
      %v936 = vrot.slane %v647, 2
      %v937 = vsel %vm928, %v934, %v936
      %v938 = vrot.slane %v766, 2
      %v939 = vsel %vm928, %v936, %v938
      %v941 = vsel %vm310, %v931, 0
      %v944 = vsel %vm310, %v933, 0
      %v947 = vsel %vm310, %v935, 0
      %v950 = vsel %vm310, %v937, 0
      %v953 = vsel %vm310, %v939, 0
      %v956 = vsel %vm326, %v924, 0
      %958 = vmatprep.subr.bf16.mxu0 0
      %959 = vmatpush1.bf16.msra.mxu0 0
      %960 = vmatprep.subr.bf16.mxu0 0
      %961 = vmatpush1.bf16.msra.mxu0 0
      %962 = vmatprep.subr.bf16.mxu0 0
      %963 = vmatpush1.bf16.msra.mxu0 0
      %964 = vmatprep.subr.bf16.mxu0 0
      %965 = vmatpush1.bf16.msra.mxu0 0
      %966 = vmatprep.subr.bf16.mxu0 0
      %967 = vmatpush1.bf16.msra.mxu0 0
      %968 = vmatprep.subr.bf16.mxu0 0
      %969 = vmatpush1.bf16.msra.mxu0 0
      %970 = vmatprep.subr.bf16.mxu0 0
      %971 = vmatpush1.bf16.msra.mxu0 0
      %972 = vmatprep.subr.bf16.mxu0 0
      %973 = vmatpush1.bf16.msra.mxu0 %v956
      %974 = vmatprep.subr.bf16.mxu0 0
      %975 = vmatpush2.bf16.msra.mxu0 0
      %976 = vmatprep.subr.bf16.mxu0 0
      %977 = vmatpush2.bf16.msra.mxu0 0
      %978 = vmatprep.subr.bf16.mxu0 0
      %979 = vmatpush2.bf16.msra.mxu0 0
      %980 = vmatprep.subr.bf16.mxu0 0
      %981 = vmatpush2.bf16.msra.mxu0 0
      %982 = vmatprep.subr.bf16.mxu0 0
      %983 = vmatpush2.bf16.msra.mxu0 0
      %984 = vmatprep.subr.bf16.mxu0 0
      %985 = vmatpush2.bf16.msra.mxu0 0
      %986 = vmatprep.subr.bf16.mxu0 0
      %987 = vmatpush2.bf16.msra.mxu0 0
      %988 = vmatprep.subr.bf16.mxu0 0
      %989 = vmatpush2.bf16.msra.mxu0 0
      %990 = vmatprep.mubr.bf16.mxu0 0
      %991 = vmatmul.mubr.bf16.gmra.mxu0 %v941
      %v992 = vpop.f32.mrf.mxu0
      %v993 = vadd.f32 0.0, %v992
      %v994 = vpop.f32.mrf.mxu0
      %v995 = vpop.f32.mrf.mxu0
      %v996 = vadd.f32 0.0, %v995
      %v997 = vpop.f32.mrf.mxu0
      %998 = vmatprep.mubr.bf16.mxu0 0
      %999 = vmatmul.mubr.bf16.gmra.mxu0 %v944
      %v1000 = vpop.f32.mrf.mxu0
      %v1001 = vadd.f32 0.0, %v1000
      %v1002 = vpop.f32.mrf.mxu0
      %v1003 = vpop.f32.mrf.mxu0
      %v1004 = vadd.f32 0.0, %v1003
      %v1005 = vpop.f32.mrf.mxu0
      %1006 = vmatprep.mubr.bf16.mxu0 0
      %1007 = vmatmul.mubr.bf16.gmra.mxu0 %v947
      %v1008 = vpop.f32.mrf.mxu0
      %v1009 = vadd.f32 0.0, %v1008
      %v1010 = vpop.f32.mrf.mxu0
      %v1011 = vpop.f32.mrf.mxu0
      %v1012 = vadd.f32 0.0, %v1011
      %v1013 = vpop.f32.mrf.mxu0
      %1014 = vmatprep.mubr.bf16.mxu0 0
      %1015 = vmatmul.mubr.bf16.gmra.mxu0 %v950
      %v1016 = vpop.f32.mrf.mxu0
      %v1017 = vadd.f32 0.0, %v1016
      %v1018 = vpop.f32.mrf.mxu0
      %v1019 = vpop.f32.mrf.mxu0
      %v1020 = vadd.f32 0.0, %v1019
      %v1021 = vpop.f32.mrf.mxu0
      %1022 = vmatprep.mubr.bf16.mxu0 0
      %1023 = vmatmul.mubr.bf16.gmra.mxu0 %v953
      %v1024 = vpop.f32.mrf.mxu0
      %v1025 = vadd.f32 0.0, %v1024
      %v1026 = vpop.f32.mrf.mxu0
      %v1027 = vpop.f32.mrf.mxu0
      %v1028 = vadd.f32 0.0, %v1027
      %v1029 = vpop.f32.mrf.mxu0
      %1030 = vdwg.mxu0
      %v1031 = vadd.f32 %v912, %v993
      %v1032 = vadd.f32 %v913, %v996
      %v1033 = vadd.f32 %v914, %v1001
      %v1034 = vadd.f32 %v915, %v1004
      %v1035 = vadd.f32 %v916, %v1009
      %v1036 = vadd.f32 %v917, %v1012
      %v1037 = vadd.f32 %v918, %v1017
      %v1038 = vadd.f32 %v919, %v1020
      %v1039 = vadd.f32 %v920, %v1025
      %v1040 = vadd.f32 %v921, %v1028
      %v1041 = vld [vmem:[%s206 + $0x8] sm:$0xc]
      %v1042 = vld [vmem:[%s206 + $0xc] sm:$0xf]
      %v1043 = vld [vmem:[%s206 + $0x10] sm:$0xf]
      %v1044 = vld [vmem:[%s206 + $0x14] sm:$0xf]
      %v1045 = vld [vmem:[%s206 + $0x18] sm:$0xf]
      %v1046 = vld [vmem:[%s206 + $0x1c] sm:$0xf]
      %v1047 = vld [vmem:[%s206 + $0x20] sm:$0xf]
      %v1048 = vld [vmem:[%s206 + $0x24] sm:$0xf]
      %v1049 = vld [vmem:[%s206 + $0x28] sm:$0xf]
      %v1050 = vld [vmem:[%s206 + $0x2c] sm:$0xf]
      %v1051 = vld [vmem:[%s206 + $0x30] sm:$0x3]
      %s1052 = scalar_lea.vmem %s210, 24
      %v1053 = vld [vmem:[%s1052] sm:$0xf]
      %v1065 = vunpack.c.l.b16 %v1041
      %v1066 = vunpack.c.l.b16 %v1042
      %v1067 = vunpack.c.l.b16 %v1043
      %v1068 = vunpack.c.l.b16 %v1044
      %v1069 = vunpack.c.l.b16 %v1045
      %v1070 = vunpack.c.l.b16 %v1046
      %v1071 = vunpack.c.l.b16 %v1047
      %v1072 = vunpack.c.l.b16 %v1048
      %v1073 = vunpack.c.l.b16 %v1049
      %v1074 = vunpack.c.l.b16 %v1050
      %v1075 = vunpack.c.l.b16 %v1051
      %v1076 = vpack.c.b16 %v1066, %v1065
      %v1077 = vpack.c.b16 %v1068, %v1067
      %v1078 = vpack.c.b16 %v1070, %v1069
      %v1079 = vpack.c.b16 %v1072, %v1071
      %v1080 = vpack.c.b16 %v1074, %v1073
      %v1081 = vpack.c.b16 %v1075, %v1075
      %v1082 = vrot.slane %v1076, 2
      %v1083 = vrot.slane %v1077, 2
      %v1084 = vsel %vm928, %v1082, %v1083
      %v1085 = vrot.slane %v1078, 2
      %v1086 = vsel %vm928, %v1083, %v1085
      %v1087 = vrot.slane %v1079, 2
      %v1088 = vsel %vm928, %v1085, %v1087
      %v1089 = vrot.slane %v1080, 2
      %v1090 = vsel %vm928, %v1087, %v1089
      %v1091 = vrot.slane %v1081, 2
      %v1092 = vsel %vm928, %v1089, %v1091
      %v1094 = vsel %vm310, %v1084, 0
      %v1097 = vsel %vm310, %v1086, 0
      %v1100 = vsel %vm310, %v1088, 0
      %v1103 = vsel %vm310, %v1090, 0
      %v1106 = vsel %vm310, %v1092, 0
      %v1109 = vsel %vm326, %v1053, 0
      %1111 = vmatprep.subr.bf16.mxu0 0
      %1112 = vmatpush1.bf16.msra.mxu0 0
      %1113 = vmatprep.subr.bf16.mxu0 0
      %1114 = vmatpush1.bf16.msra.mxu0 0
      %1115 = vmatprep.subr.bf16.mxu0 0
      %1116 = vmatpush1.bf16.msra.mxu0 0
      %1117 = vmatprep.subr.bf16.mxu0 0
      %1118 = vmatpush1.bf16.msra.mxu0 0
      %1119 = vmatprep.subr.bf16.mxu0 0
      %1120 = vmatpush1.bf16.msra.mxu0 0
      %1121 = vmatprep.subr.bf16.mxu0 0
      %1122 = vmatpush1.bf16.msra.mxu0 0
      %1123 = vmatprep.subr.bf16.mxu0 0
      %1124 = vmatpush1.bf16.msra.mxu0 0
      %1125 = vmatprep.subr.bf16.mxu0 0
      %1126 = vmatpush1.bf16.msra.mxu0 %v1109
      %1127 = vmatprep.subr.bf16.mxu0 0
      %1128 = vmatpush2.bf16.msra.mxu0 0
      %1129 = vmatprep.subr.bf16.mxu0 0
      %1130 = vmatpush2.bf16.msra.mxu0 0
      %1131 = vmatprep.subr.bf16.mxu0 0
      %1132 = vmatpush2.bf16.msra.mxu0 0
      %1133 = vmatprep.subr.bf16.mxu0 0
      %1134 = vmatpush2.bf16.msra.mxu0 0
      %1135 = vmatprep.subr.bf16.mxu0 0
      %1136 = vmatpush2.bf16.msra.mxu0 0
      %1137 = vmatprep.subr.bf16.mxu0 0
      %1138 = vmatpush2.bf16.msra.mxu0 0
      %1139 = vmatprep.subr.bf16.mxu0 0
      %1140 = vmatpush2.bf16.msra.mxu0 0
      %1141 = vmatprep.subr.bf16.mxu0 0
      %1142 = vmatpush2.bf16.msra.mxu0 0
      %1143 = vmatprep.mubr.bf16.mxu0 0
      %1144 = vmatmul.mubr.bf16.gmra.mxu0 %v1094
      %v1145 = vpop.f32.mrf.mxu0
      %v1146 = vadd.f32 0.0, %v1145
      %v1147 = vpop.f32.mrf.mxu0
      %v1148 = vpop.f32.mrf.mxu0
      %v1149 = vadd.f32 0.0, %v1148
      %v1150 = vpop.f32.mrf.mxu0
      %1151 = vmatprep.mubr.bf16.mxu0 0
      %1152 = vmatmul.mubr.bf16.gmra.mxu0 %v1097
      %v1153 = vpop.f32.mrf.mxu0
      %v1154 = vadd.f32 0.0, %v1153
      %v1155 = vpop.f32.mrf.mxu0
      %v1156 = vpop.f32.mrf.mxu0
      %v1157 = vadd.f32 0.0, %v1156
      %v1158 = vpop.f32.mrf.mxu0
      %1159 = vmatprep.mubr.bf16.mxu0 0
      %1160 = vmatmul.mubr.bf16.gmra.mxu0 %v1100
      %v1161 = vpop.f32.mrf.mxu0
      %v1162 = vadd.f32 0.0, %v1161
      %v1163 = vpop.f32.mrf.mxu0
      %v1164 = vpop.f32.mrf.mxu0
      %v1165 = vadd.f32 0.0, %v1164
      %v1166 = vpop.f32.mrf.mxu0
      %1167 = vmatprep.mubr.bf16.mxu0 0
      %1168 = vmatmul.mubr.bf16.gmra.mxu0 %v1103
      %v1169 = vpop.f32.mrf.mxu0
      %v1170 = vadd.f32 0.0, %v1169
      %v1171 = vpop.f32.mrf.mxu0
      %v1172 = vpop.f32.mrf.mxu0
      %v1173 = vadd.f32 0.0, %v1172
      %v1174 = vpop.f32.mrf.mxu0
      %1175 = vmatprep.mubr.bf16.mxu0 0
      %1176 = vmatmul.mubr.bf16.gmra.mxu0 %v1106
      %v1177 = vpop.f32.mrf.mxu0
      %v1178 = vadd.f32 0.0, %v1177
      %v1179 = vpop.f32.mrf.mxu0
      %v1180 = vpop.f32.mrf.mxu0
      %v1181 = vadd.f32 0.0, %v1180
      %v1182 = vpop.f32.mrf.mxu0
      %1183 = vdwg.mxu0
      %v1184 = vadd.f32 %v1031, %v1146
      %v1185 = vadd.f32 %v1032, %v1149
      %v1186 = vadd.f32 %v1033, %v1154
      %v1187 = vadd.f32 %v1034, %v1157
      %v1188 = vadd.f32 %v1035, %v1162
      %v1189 = vadd.f32 %v1036, %v1165
      %v1190 = vadd.f32 %v1037, %v1170
      %v1191 = vadd.f32 %v1038, %v1173
      %v1192 = vadd.f32 %v1039, %v1178
      %v1193 = vadd.f32 %v1040, %v1181
      %v1194 = vld [vmem:[%s206 + $0x30] sm:$0x7]
      %s1195 = scalar_lea.vmem %s210, 28
      %v1196 = vld [vmem:[%s1195] sm:$0xf]
      %v1198 = vunpack.c.l.b16 %v1194
      %v1199 = vpack.c.b16 %v1198, %v1198
      %vm1200 = vsmask.f32 5376
      %v1202 = vshrl.u32 %v1076, 16
      %v1204 = vrot.slane %v1202, 2
      %v1205 = vshll.u32 %v1076, 16
      %v1207 = vrot.slane %v1205, 3
      %v1208 = vor.u32 %v1204, %v1207
      %v1210 = vshrl.u32 %v1077, 16
      %v1212 = vrot.slane %v1210, 2
      %v1213 = vshll.u32 %v1077, 16
      %v1215 = vrot.slane %v1213, 3
      %v1216 = vor.u32 %v1212, %v1215
      %v1217 = vsel %vm1200, %v1208, %v1216
      %v1219 = vshrl.u32 %v1078, 16
      %v1221 = vrot.slane %v1219, 2
      %v1222 = vshll.u32 %v1078, 16
      %v1224 = vrot.slane %v1222, 3
      %v1225 = vor.u32 %v1221, %v1224
      %v1226 = vsel %vm1200, %v1216, %v1225
      %v1228 = vshrl.u32 %v1079, 16
      %v1230 = vrot.slane %v1228, 2
      %v1231 = vshll.u32 %v1079, 16
      %v1233 = vrot.slane %v1231, 3
      %v1234 = vor.u32 %v1230, %v1233
      %v1235 = vsel %vm1200, %v1225, %v1234
      %v1237 = vshrl.u32 %v1080, 16
      %v1239 = vrot.slane %v1237, 2
      %v1240 = vshll.u32 %v1080, 16
      %v1242 = vrot.slane %v1240, 3
      %v1243 = vor.u32 %v1239, %v1242
      %v1244 = vsel %vm1200, %v1234, %v1243
      %v1246 = vshrl.u32 %v1199, 16
      %v1248 = vrot.slane %v1246, 2
      %v1249 = vshll.u32 %v1199, 16
      %v1251 = vrot.slane %v1249, 3
      %v1252 = vor.u32 %v1248, %v1251
      %v1253 = vsel %vm1200, %v1243, %v1252
      %v1255 = vsel %vm310, %v1217, 0
      %v1258 = vsel %vm310, %v1226, 0
      %v1261 = vsel %vm310, %v1235, 0
      %v1264 = vsel %vm310, %v1244, 0
      %v1267 = vsel %vm310, %v1253, 0
      %v1270 = vsel %vm326, %v1196, 0
      %1272 = vmatprep.subr.bf16.mxu0 0
      %1273 = vmatpush1.bf16.msra.mxu0 0
      %1274 = vmatprep.subr.bf16.mxu0 0
      %1275 = vmatpush1.bf16.msra.mxu0 0
      %1276 = vmatprep.subr.bf16.mxu0 0
      %1277 = vmatpush1.bf16.msra.mxu0 0
      %1278 = vmatprep.subr.bf16.mxu0 0
      %1279 = vmatpush1.bf16.msra.mxu0 0
      %1280 = vmatprep.subr.bf16.mxu0 0
      %1281 = vmatpush1.bf16.msra.mxu0 0
      %1282 = vmatprep.subr.bf16.mxu0 0
      %1283 = vmatpush1.bf16.msra.mxu0 0
      %1284 = vmatprep.subr.bf16.mxu0 0
      %1285 = vmatpush1.bf16.msra.mxu0 0
      %1286 = vmatprep.subr.bf16.mxu0 0
      %1287 = vmatpush1.bf16.msra.mxu0 %v1270
      %1288 = vmatprep.subr.bf16.mxu0 0
      %1289 = vmatpush2.bf16.msra.mxu0 0
      %1290 = vmatprep.subr.bf16.mxu0 0
      %1291 = vmatpush2.bf16.msra.mxu0 0
      %1292 = vmatprep.subr.bf16.mxu0 0
      %1293 = vmatpush2.bf16.msra.mxu0 0
      %1294 = vmatprep.subr.bf16.mxu0 0
      %1295 = vmatpush2.bf16.msra.mxu0 0
      %1296 = vmatprep.subr.bf16.mxu0 0
      %1297 = vmatpush2.bf16.msra.mxu0 0
      %1298 = vmatprep.subr.bf16.mxu0 0
      %1299 = vmatpush2.bf16.msra.mxu0 0
      %1300 = vmatprep.subr.bf16.mxu0 0
      %1301 = vmatpush2.bf16.msra.mxu0 0
      %1302 = vmatprep.subr.bf16.mxu0 0
      %1303 = vmatpush2.bf16.msra.mxu0 0
      %1304 = vmatprep.mubr.bf16.mxu0 0
      %1305 = vmatmul.mubr.bf16.gmra.mxu0 %v1255
      %v1306 = vpop.f32.mrf.mxu0
      %v1307 = vadd.f32 0.0, %v1306
      %v1308 = vpop.f32.mrf.mxu0
      %v1309 = vpop.f32.mrf.mxu0
      %v1310 = vadd.f32 0.0, %v1309
      %v1311 = vpop.f32.mrf.mxu0
      %1312 = vmatprep.mubr.bf16.mxu0 0
      %1313 = vmatmul.mubr.bf16.gmra.mxu0 %v1258
      %v1314 = vpop.f32.mrf.mxu0
      %v1315 = vadd.f32 0.0, %v1314
      %v1316 = vpop.f32.mrf.mxu0
      %v1317 = vpop.f32.mrf.mxu0
      %v1318 = vadd.f32 0.0, %v1317
      %v1319 = vpop.f32.mrf.mxu0
      %1320 = vmatprep.mubr.bf16.mxu0 0
      %1321 = vmatmul.mubr.bf16.gmra.mxu0 %v1261
      %v1322 = vpop.f32.mrf.mxu0
      %v1323 = vadd.f32 0.0, %v1322
      %v1324 = vpop.f32.mrf.mxu0
      %v1325 = vpop.f32.mrf.mxu0
      %v1326 = vadd.f32 0.0, %v1325
      %v1327 = vpop.f32.mrf.mxu0
      %1328 = vmatprep.mubr.bf16.mxu0 0
      %1329 = vmatmul.mubr.bf16.gmra.mxu0 %v1264
      %v1330 = vpop.f32.mrf.mxu0
      %v1331 = vadd.f32 0.0, %v1330
      %v1332 = vpop.f32.mrf.mxu0
      %v1333 = vpop.f32.mrf.mxu0
      %v1334 = vadd.f32 0.0, %v1333
      %v1335 = vpop.f32.mrf.mxu0
      %1336 = vmatprep.mubr.bf16.mxu0 0
      %1337 = vmatmul.mubr.bf16.gmra.mxu0 %v1267
      %v1338 = vpop.f32.mrf.mxu0
      %v1339 = vadd.f32 0.0, %v1338
      %v1340 = vpop.f32.mrf.mxu0
      %v1341 = vpop.f32.mrf.mxu0
      %v1342 = vadd.f32 0.0, %v1341
      %v1343 = vpop.f32.mrf.mxu0
      %1344 = vdwg.mxu0
      %v1345 = vadd.f32 %v1184, %v1307
      %v1346 = vadd.f32 %v1185, %v1310
      %v1347 = vadd.f32 %v1186, %v1315
      %v1348 = vadd.f32 %v1187, %v1318
      %v1349 = vadd.f32 %v1188, %v1323
      %v1350 = vadd.f32 %v1189, %v1326
      %v1351 = vadd.f32 %v1190, %v1331
      %v1352 = vadd.f32 %v1191, %v1334
      %v1353 = vadd.f32 %v1192, %v1339
      %v1354 = vadd.f32 %v1193, %v1342
      %v1355 = vld [vmem:[%s206 + $0x8] sm:$0x8]
      %s1356 = scalar_lea.vmem %s210, 32
      %v1357 = vld [vmem:[%s1356] sm:$0xf]
      %v1359 = vunpack.c.l.b16 %v1355
      %v1360 = vpack.c.b16 %v1066, %v1359
      %vm1361 = vcmask 1044480
      %v1362 = vrot.slane %v1360, 3
      %v1363 = vrot.slane %v1077, 3
      %v1364 = vsel %vm1361, %v1362, %v1363
      %v1365 = vrot.slane %v1078, 3
      %v1366 = vsel %vm1361, %v1363, %v1365
      %v1367 = vrot.slane %v1079, 3
      %v1368 = vsel %vm1361, %v1365, %v1367
      %v1369 = vrot.slane %v1080, 3
      %v1370 = vsel %vm1361, %v1367, %v1369
      %v1371 = vrot.slane %v1199, 3
      %v1372 = vsel %vm1361, %v1369, %v1371
      %v1374 = vsel %vm310, %v1364, 0
      %v1377 = vsel %vm310, %v1366, 0
      %v1380 = vsel %vm310, %v1368, 0
      %v1383 = vsel %vm310, %v1370, 0
      %v1386 = vsel %vm310, %v1372, 0
      %v1389 = vsel %vm326, %v1357, 0
      %1391 = vmatprep.subr.bf16.mxu0 0
      %1392 = vmatpush1.bf16.msra.mxu0 0
      %1393 = vmatprep.subr.bf16.mxu0 0
      %1394 = vmatpush1.bf16.msra.mxu0 0
      %1395 = vmatprep.subr.bf16.mxu0 0
      %1396 = vmatpush1.bf16.msra.mxu0 0
      %1397 = vmatprep.subr.bf16.mxu0 0
      %1398 = vmatpush1.bf16.msra.mxu0 0
      %1399 = vmatprep.subr.bf16.mxu0 0
      %1400 = vmatpush1.bf16.msra.mxu0 0
      %1401 = vmatprep.subr.bf16.mxu0 0
      %1402 = vmatpush1.bf16.msra.mxu0 0
      %1403 = vmatprep.subr.bf16.mxu0 0
      %1404 = vmatpush1.bf16.msra.mxu0 0
      %1405 = vmatprep.subr.bf16.mxu0 0
      %1406 = vmatpush1.bf16.msra.mxu0 %v1389
      %1407 = vmatprep.subr.bf16.mxu0 0
      %1408 = vmatpush2.bf16.msra.mxu0 0
      %1409 = vmatprep.subr.bf16.mxu0 0
      %1410 = vmatpush2.bf16.msra.mxu0 0
      %1411 = vmatprep.subr.bf16.mxu0 0
      %1412 = vmatpush2.bf16.msra.mxu0 0
      %1413 = vmatprep.subr.bf16.mxu0 0
      %1414 = vmatpush2.bf16.msra.mxu0 0
      %1415 = vmatprep.subr.bf16.mxu0 0
      %1416 = vmatpush2.bf16.msra.mxu0 0
      %1417 = vmatprep.subr.bf16.mxu0 0
      %1418 = vmatpush2.bf16.msra.mxu0 0
      %1419 = vmatprep.subr.bf16.mxu0 0
      %1420 = vmatpush2.bf16.msra.mxu0 0
      %1421 = vmatprep.subr.bf16.mxu0 0
      %1422 = vmatpush2.bf16.msra.mxu0 0
      %1423 = vmatprep.mubr.bf16.mxu0 0
      %1424 = vmatmul.mubr.bf16.gmra.mxu0 %v1374
      %v1425 = vpop.f32.mrf.mxu0
      %v1426 = vadd.f32 0.0, %v1425
      %v1427 = vpop.f32.mrf.mxu0
      %v1428 = vpop.f32.mrf.mxu0
      %v1429 = vadd.f32 0.0, %v1428
      %v1430 = vpop.f32.mrf.mxu0
      %1431 = vmatprep.mubr.bf16.mxu0 0
      %1432 = vmatmul.mubr.bf16.gmra.mxu0 %v1377
      %v1433 = vpop.f32.mrf.mxu0
      %v1434 = vadd.f32 0.0, %v1433
      %v1435 = vpop.f32.mrf.mxu0
      %v1436 = vpop.f32.mrf.mxu0
      %v1437 = vadd.f32 0.0, %v1436
      %v1438 = vpop.f32.mrf.mxu0
      %1439 = vmatprep.mubr.bf16.mxu0 0
      %1440 = vmatmul.mubr.bf16.gmra.mxu0 %v1380
      %v1441 = vpop.f32.mrf.mxu0
      %v1442 = vadd.f32 0.0, %v1441
      %v1443 = vpop.f32.mrf.mxu0
      %v1444 = vpop.f32.mrf.mxu0
      %v1445 = vadd.f32 0.0, %v1444
      %v1446 = vpop.f32.mrf.mxu0
      %1447 = vmatprep.mubr.bf16.mxu0 0
      %1448 = vmatmul.mubr.bf16.gmra.mxu0 %v1383
      %v1449 = vpop.f32.mrf.mxu0
      %v1450 = vadd.f32 0.0, %v1449
      %v1451 = vpop.f32.mrf.mxu0
      %v1452 = vpop.f32.mrf.mxu0
      %v1453 = vadd.f32 0.0, %v1452
      %v1454 = vpop.f32.mrf.mxu0
      %1455 = vmatprep.mubr.bf16.mxu0 0
      %1456 = vmatmul.mubr.bf16.gmra.mxu0 %v1386
      %v1457 = vpop.f32.mrf.mxu0
      %v1458 = vadd.f32 0.0, %v1457
      %v1459 = vpop.f32.mrf.mxu0
      %v1460 = vpop.f32.mrf.mxu0
      %v1461 = vadd.f32 0.0, %v1460
      %v1462 = vpop.f32.mrf.mxu0
      %1463 = vdwg.mxu0
      %v1464 = vadd.f32 %v1345, %v1426
      %v1465 = vadd.f32 %v1346, %v1429
      %v1466 = vadd.f32 %v1347, %v1434
      %v1467 = vadd.f32 %v1348, %v1437
      %v1468 = vadd.f32 %v1349, %v1442
      %v1469 = vadd.f32 %v1350, %v1445
      %v1470 = vadd.f32 %v1351, %v1450
      %v1471 = vadd.f32 %v1352, %v1453
      %v1472 = vadd.f32 %v1353, %v1458
      %v1473 = vadd.f32 %v1354, %v1461
      %v1474 = vld [vmem:[%s213] sm:$0x1]
      %v1476 = vlaneseq
      %v1477 = vshrl.u32 %v1476, 7
      %v1478 = vsub.s32 0, %v1477
      %v1479 = vrot.slane %v1474, %v1478
      %v1481 = vadd.f32 %v1464, %v1479
      %v1482 = vadd.f32 %v1465, %v1479
      %v1483 = vadd.f32 %v1466, %v1479
      %v1484 = vadd.f32 %v1467, %v1479
      %v1485 = vadd.f32 %v1468, %v1479
      %v1486 = vadd.f32 %v1469, %v1479
      %v1487 = vadd.f32 %v1470, %v1479
      %v1488 = vadd.f32 %v1471, %v1479
      %v1489 = vadd.f32 %v1472, %v1479
      %v1490 = vadd.f32 %v1473, %v1479
      %v1491 = vmax.f32 %v1481, 0.0
      %v1492 = vmax.f32 %v1482, 0.0
      %v1493 = vmax.f32 %v1483, 0.0
      %v1494 = vmax.f32 %v1484, 0.0
      %v1495 = vmax.f32 %v1485, 0.0
      %v1496 = vmax.f32 %v1486, 0.0
      %v1497 = vmax.f32 %v1487, 0.0
      %v1498 = vmax.f32 %v1488, 0.0
      %v1499 = vmax.f32 %v1489, 0.0
      %v1500 = vmax.f32 %v1490, 0.0
      %v1501 = vpack.c.bf16 %v1492, %v1491
      %v1502 = vpack.c.bf16 %v1494, %v1493
      %v1503 = vpack.c.bf16 %v1496, %v1495
      %v1504 = vpack.c.bf16 %v1498, %v1497
      %v1505 = vpack.c.bf16 %v1500, %v1499
      %v1511 = vunpack.c.l.b16 %v1501
      %v1512 = vunpack.c.h.b16 %v1501
      %v1513 = vunpack.c.l.b16 %v1502
      %v1514 = vunpack.c.h.b16 %v1502
      %v1515 = vunpack.c.l.b16 %v1503
      %v1516 = vunpack.c.h.b16 %v1503
      %v1517 = vunpack.c.l.b16 %v1504
      %v1518 = vunpack.c.h.b16 %v1504
      %v1519 = vunpack.c.l.b16 %v1505
      %v1520 = vunpack.c.h.b16 %v1505
      %v1521 = vpack.c.b16 %v1511, %v1511
      %v1522 = vpack.c.b16 %v1512, %v1512
      %v1523 = vpack.c.b16 %v1513, %v1513
      %v1524 = vpack.c.b16 %v1514, %v1514
      %v1525 = vpack.c.b16 %v1515, %v1515
      %v1526 = vpack.c.b16 %v1516, %v1516
      %v1527 = vpack.c.b16 %v1517, %v1517
      %v1528 = vpack.c.b16 %v1518, %v1518
      %v1529 = vpack.c.b16 %v1519, %v1519
      %v1530 = vpack.c.b16 %v1520, %v1520
      %vm1541 = vcmask 60416
      %1542 = vst.msk [vmem:[%s221] sm:$0xf] %vm1541, %v1521
      %1543 = vst.msk [vmem:[%s221 + $0x4] sm:$0xf] %vm1541, %v1522
      %1544 = vst.msk [vmem:[%s221 + $0x8] sm:$0xf] %vm1541, %v1523
      %1545 = vst.msk [vmem:[%s221 + $0xc] sm:$0xf] %vm1541, %v1524
      %1546 = vst.msk [vmem:[%s221 + $0x10] sm:$0xf] %vm1541, %v1525
      %1547 = vst.msk [vmem:[%s221 + $0x14] sm:$0xf] %vm1541, %v1526
      %1548 = vst.msk [vmem:[%s221 + $0x18] sm:$0xf] %vm1541, %v1527
      %1549 = vst.msk [vmem:[%s221 + $0x1c] sm:$0xf] %vm1541, %v1528
      %1550 = vst.msk [vmem:[%s221 + $0x20] sm:$0xf] %vm1541, %v1529
      %1551 = vst.msk [vmem:[%s221 + $0x24] sm:$0xf] %vm1541, %v1530
      %p1552 = scmp.lt.s32.totalorder %s18, 1
      %s1553 = scalar_select %p1552, %s18, 1
      %p1554 = scmp.lt.s32.totalorder %s19, 0
      %s1555 = scalar_select %p1554, %s19, 0
      %s1556 = smul.addr %s1553, 10
      %s1557 = sadd.s32 %s1555, %s1556
      %s1558 = smul.addr %s1557, 4
      %s1559 = scalar_lea.vmem %s3, %s1558
      // Predicated region
      $region33: #{forward.8} parent=31 // pred_check
        %p1560 = pneg %p124
      $region34: #{forward.8} parent=31 // pred_check_branch
        %1562 = sbr.rel (%p1560) target = $region36
      $region35: #{forward.8} parent=31 // pred_region
        _
      $region36: #{forward.8} parent=31 // pred_fallthru
        _
    $region32: #{forward.8} parent=5 // pred_fallthru
      _
    %p1563 = scmp.le.s32.totalorder 2, %s9
    // Predicated region
    $region37: #{forward.8} parent=5 // pred_check
      %p1564 = pneg %p1563
    $region38: #{forward.8} parent=5 // pred_check_branch
      %1566 = sbr.rel (%p1564) target = $region40
    $region39: #{forward.8} parent=5 // pred_region
      %s1567 = ssub.s32 %s9, 2
      // Predicated region
      $region41: #{forward.8} parent=39 // pred_check
        %p1568 = pneg %p130
      $region42: #{forward.8} parent=39 // pred_check_branch
        %1570 = sbr.rel (%p1568) target = $region44
      $region43: #{forward.8} parent=39 // pred_region
        %p1571 = scmp.lt.s32.totalorder %s20, 1
        %s1572 = scalar_select %p1571, %s20, 1
        %p1573 = scmp.lt.s32.totalorder %s21, 0
        %s1574 = scalar_select %p1573, %s21, 0
        %s1575 = smul.addr %s1572, 10
        %s1576 = sadd.s32 %s1574, %s1575
        %s1577 = smul.addr %s1576, 4
        %s1578 = scalar_lea.vmem %s3, %s1577
      $region44: #{forward.8} parent=39 // pred_fallthru
        _
    $region40: #{forward.8} parent=5 // pred_fallthru
      _
  $region6: #{forward.8} parent=0 // loop_footer
    %s13 = sadd.s32 1, %s9
  $region7: #{forward.8} parent=0 // loop_footer_branch
    %8 = sbr.rel target = $region3
  $region8: #{forward.8} parent=0 // loop_exit
    _

</llo_original>
